<compile_context>
chip_gen: v7x
topology: tpu7x:2x2x1
jax: 0.10.0
libtpu: 0.0.40
codegen_flags: <defaults>
</compile_context>

<pallas_src>
import functools

import numpy as np
import jax
import jax.numpy as jnp
from jax.experimental import pallas as pl
from jax.experimental.pallas import tpu as pltpu

BF16 = jnp.bfloat16

# Conv hyper-parameters fixed by the torch module.
K1, S1 = 8, 4
K2, S2 = 4, 2
K3, S3 = 3, 1
C1_OUT, C2_OUT, C3_OUT, FC1_OUT = 32, 64, 64, 512
OUT_PAD = 128  # lane-dense fc2 output width


def _conv_out(n, k, s):
    return (n - k) // s + 1


# ------------------------------ Pallas kernel ------------------------------ #

def _dqn_kernel(x1p_ref, w1_ref, b1_ref, w2_ref, b2_ref, w3_ref, b3_ref,
                fc1w_ref, fc1b_ref, fc2w_ref, fc2b_ref, out_ref, a2_ref):
    """Fused conv1..conv3 + fc1 + fc2 forward for one batch tile.

    x1p_ref : (n_off, n_pos*bt, C*K1*K1)  conv1 input patches, rows ordered
              (conv2-offset k, conv2-position p, sample b) so every in-kernel
              access is a contiguous slice / leading-axis index.
    a2_ref  : VMEM scratch (n_pos*bt, C2_OUT) holding the conv2 activations.
    """
    f32 = jnp.float32
    n_off = x1p_ref.shape[0]        # conv2 kernel offsets (K2*K2 = 16)
    n_pos = w3_ref.shape[0]         # conv2 output positions = conv3 taps (9)
    bt = out_ref.shape[0]           # batch rows in this tile
    c2 = w2_ref.shape[2]
    c3 = w3_ref.shape[2]

    w1 = w1_ref[...]
    b1 = b1_ref[...]

    # conv1 + conv2 fused: for each conv2 kernel offset k, run conv1 on the
    # patches that offset needs (one deep-K=256 matmul), multiply by conv2's
    # (32, 64) weight slice for that offset, and accumulate in f32.
    acc2 = jnp.zeros((n_pos * bt, c2), f32)
    for k in range(n_off):
        a1k = jnp.dot(x1p_ref[k], w1, preferred_element_type=f32) + b1
        a1k = jnp.maximum(a1k, 0.0).astype(BF16)
        acc2 = acc2 + jnp.dot(a1k, w2_ref[k], preferred_element_type=f32)
    a2_ref[...] = jnp.maximum(acc2 + b2_ref[...], 0.0).astype(BF16)

    # conv3 has a 1x1 spatial output -> fully-connected contraction over the
    # conv2 output positions: one (bt, 64) @ (64, 64) matmul per tap.
    acc3 = jnp.zeros((bt, c3), f32)
    for p in range(n_pos):
        acc3 = acc3 + jnp.dot(a2_ref[pl.ds(p * bt, bt), :], w3_ref[p],
                              preferred_element_type=f32)
    a3 = jnp.maximum(acc3 + b3_ref[...], 0.0).astype(BF16)

    h = jnp.dot(a3, fc1w_ref[...], preferred_element_type=f32) + fc1b_ref[...]
    h = jnp.maximum(h, 0.0).astype(BF16)                      # (bt, 512)

    out_ref[...] = (jnp.dot(h, fc2w_ref[...], preferred_element_type=f32)
                    + fc2b_ref[...])                          # (bt, 128) f32


def _full_const_spec(shape):
    zeros = (0,) * len(shape)
    return pl.BlockSpec(tuple(shape), lambda t, _z=zeros: _z)


def _dqn_pallas_call(consts, x1p_tiles, *, n_tiles, bt, n_pos):
    weights = (consts["w1"], consts["b1"], consts["w2"], consts["b2"],
               consts["w3"], consts["b3"], consts["fc1_w"], consts["fc1_b"],
               consts["fc2_w"], consts["fc2_b"])
    out_shape = jax.ShapeDtypeStruct((n_tiles * bt, OUT_PAD), jnp.float32)
    scratch = [pltpu.VMEM((n_pos * bt, consts["w2"].shape[2]), BF16)]

    if n_tiles == 1:
        # Single resident block: no grid at all (drop the dummy grid=(1,)).
        n_in = 1 + len(weights)
        return pl.pallas_call(
            _dqn_kernel,
            out_shape=out_shape,
            in_specs=[pl.BlockSpec(memory_space=pltpu.MemorySpace.VMEM)
                      for _ in range(n_in)],
            out_specs=pl.BlockSpec(memory_space=pltpu.MemorySpace.VMEM),
            scratch_shapes=scratch,
        )(x1p_tiles, *weights)

    # Batch-tiled path: 1-D "parallel" grid over batch tiles; weights use a
    # constant index_map so they are DMA'd once and stay resident in VMEM.
    n_off, rows, k1dim = x1p_tiles.shape[1:]
    in_specs = [pl.BlockSpec((None, n_off, rows, k1dim),
                             lambda t: (t, 0, 0, 0))]
    in_specs += [_full_const_spec(w.shape) for w in weights]
    out_specs = pl.BlockSpec((bt, OUT_PAD), lambda t: (t, 0))
    return pl.pallas_call(
        _dqn_kernel,
        out_shape=out_shape,
        grid=(n_tiles,),
        in_specs=in_specs,
        out_specs=out_specs,
        scratch_shapes=scratch,
        compiler_params=pltpu.CompilerParams(
            dimension_semantics=("parallel",)),   # v7x: shard tiles on 2 TCs
    )(x1p_tiles, *weights)


# ----------------------- init-time constant preparation -------------------- #

def prepare_consts(params, n_actions, dtype=BF16):
    """One-time weight reshapes / transposes / casts (off the hot path)."""
    w1 = params["conv1_w"].reshape(C1_OUT, -1).T                 # (C*64, 32)
    w2 = params["conv2_w"].transpose(2, 3, 1, 0).reshape(K2 * K2, C1_OUT, C2_OUT)
    w3 = params["conv3_w"].transpose(2, 3, 1, 0).reshape(K3 * K3, C2_OUT, C3_OUT)
    fc1_w = params["fc1_w"].T                                    # (64, 512)

    # Lane-pad fc2 so the final store is a dense 128-lane slab.
    fc2_w = jnp.zeros((FC1_OUT, OUT_PAD), jnp.float32)
    fc2_w = fc2_w.at[:, :n_actions].set(params["fc2_w"].T)
    fc2_b = jnp.zeros((1, OUT_PAD), jnp.float32)
    fc2_b = fc2_b.at[:, :n_actions].set(params["fc2_b"])

    return {
        "w1": w1.astype(dtype),
        "b1": params["conv1_b"].reshape(1, -1).astype(jnp.float32),
        "w2": w2.astype(dtype),
        "b2": params["conv2_b"].reshape(1, -1).astype(jnp.float32),
        "w3": w3.astype(dtype),
        "b3": params["conv3_b"].reshape(1, -1).astype(jnp.float32),
        "fc1_w": fc1_w.astype(dtype),
        "fc1_b": params["fc1_b"].reshape(1, -1).astype(jnp.float32),
        "fc2_w": fc2_w.astype(dtype),
        "fc2_b": fc2_b,
    }


# ------------------------- wrapper-side patch layout ------------------------ #

def _conv1_patches(state, oh1, ow1):
    """(B, C, H, W) -> (B, oh1, ow1, C*K1*K1) patches, flattened (c, u, v)."""
    B, C = state.shape[:2]
    cols = []
    for u in range(K1):
        for v in range(K1):
            cols.append(state[:, :, u:u + S1 * (oh1 - 1) + 1:S1,
                                    v:v + S1 * (ow1 - 1) + 1:S1])
    p = jnp.stack(cols, axis=-1)                 # (B, C, oh1, ow1, K1*K1)
    p = p.transpose(0, 2, 3, 1, 4)               # (B, oh1, ow1, C, K1*K1)
    return p.reshape(B, oh1, ow1, C * K1 * K1)


def _conv2_offset_index(oh2, ow2):
    """(offset k, position p) -> conv1-output position feeding that tap."""
    ky = np.empty((K2 * K2, oh2 * ow2), np.int32)
    kx = np.empty((K2 * K2, oh2 * ow2), np.int32)
    for di in range(K2):
        for dj in range(K2):
            for oy in range(oh2):
                for ox in range(ow2):
                    ky[di * K2 + dj, oy * ow2 + ox] = S2 * oy + di
                    kx[di * K2 + dj, oy * ow2 + ox] = S2 * ox + dj
    return ky, kx


# ------------------------------ DQN forward -------------------------------- #

@functools.partial(jax.jit, static_argnames=("n_actions", "batch_tile"))
def deep_q_forward(consts, state, *, n_actions, batch_tile=8):
    """Equivalent of DeepQNetwork.forward.  state: (B, C, H, W) float32."""
    B, C, H, W = state.shape
    oh1, ow1 = _conv_out(H, K1, S1), _conv_out(W, K1, S1)
    oh2, ow2 = _conv_out(oh1, K2, S2), _conv_out(ow1, K2, S2)
    oh3, ow3 = _conv_out(oh2, K3, S3), _conv_out(ow2, K3, S3)
    # TODO(synk): for oh3*ow3 > 1 (e.g. 84x84 Atari), fold the NCHW flatten
    # into fc1's weights; this kernel assumes the 1x1 conv3 output geometry.
    assert oh3 == 1 and ow3 == 1, "fused kernel assumes a 1x1 conv3 output"
    n_pos = oh2 * ow2

    # XLA-side im2col of the raw input only (tiny): conv1 patches, duplicated/
    # reordered per conv2 kernel offset so the kernel never gathers.
    patches = _conv1_patches(state, oh1, ow1)              # (B, oh1, ow1, 256)
    ky, kx = _conv2_offset_index(oh2, ow2)
    x1p = patches[:, ky, kx, :].astype(BF16)               # (B, 16, n_pos, 256)

    if B <= batch_tile:
        bt, n_tiles = B, 1
        x1p_t = x1p.transpose(1, 2, 0, 3).reshape(K2 * K2, n_pos * B, -1)
    else:
        assert batch_tile % 8 == 0, "batch_tile must be a multiple of 8"
        bt = batch_tile
        n_tiles = pl.cdiv(B, bt)
        b_pad = n_tiles * bt
        if b_pad != B:
            x1p = jnp.pad(x1p, ((0, b_pad - B), (0, 0), (0, 0), (0, 0)))
        x1p_t = (x1p.reshape(n_tiles, bt, K2 * K2, n_pos, -1)
                     .transpose(0, 2, 3, 1, 4)
                     .reshape(n_tiles, K2 * K2, n_pos * bt, -1))

    out = _dqn_pallas_call(consts, x1p_t, n_tiles=n_tiles, bt=bt, n_pos=n_pos)
    return out[:B, :n_actions]
# TODO(synk): optimizer (RMSprop), MSELoss and checkpoint save/load are
# training utilities, not part of the forward pass; intentionally omitted.


def init_params(key, in_channels, n_actions, input_hw):
    """Deterministic synthetic parameters matching the torch module's shapes."""
    h, w = input_hw
    h1, w1 = _conv_out(h, K1, S1), _conv_out(w, K1, S1)
    h2, w2 = _conv_out(h1, K2, S2), _conv_out(w1, K2, S2)
    h3, w3 = _conv_out(h2, K3, S3), _conv_out(w2, K3, S3)
    fc_in = C3_OUT * h3 * w3

    ks = jax.random.split(key, 10)
    s = 0.05
    return {
        "conv1_w": s * jax.random.normal(ks[0], (32, in_channels, 8, 8), jnp.float32),
        "conv1_b": s * jax.random.normal(ks[1], (32,), jnp.float32),
        "conv2_w": s * jax.random.normal(ks[2], (64, 32, 4, 4), jnp.float32),
        "conv2_b": s * jax.random.normal(ks[3], (64,), jnp.float32),
        "conv3_w": s * jax.random.normal(ks[4], (64, 64, 3, 3), jnp.float32),
        "conv3_b": s * jax.random.normal(ks[5], (64,), jnp.float32),
        "fc1_w": s * jax.random.normal(ks[6], (512, fc_in), jnp.float32),
        "fc1_b": s * jax.random.normal(ks[7], (512,), jnp.float32),
        "fc2_w": s * jax.random.normal(ks[8], (n_actions, 512), jnp.float32),
        "fc2_b": s * jax.random.normal(ks[9], (n_actions,), jnp.float32),
    }


def reference_forward(params, state):
    """Pure-JAX f32 reference (lax.conv) used only for the correctness check."""
    def conv(x, w, b, s):
        y = jax.lax.conv_general_dilated(
            x, w, (s, s), "VALID",
            dimension_numbers=("NCHW", "OIHW", "NCHW"))
        return jax.nn.relu(y + b[None, :, None, None])

    x = conv(state, params["conv1_w"], params["conv1_b"], S1)
    x = conv(x, params["conv2_w"], params["conv2_b"], S2)
    x = conv(x, params["conv3_w"], params["conv3_b"], S3)
    flat = x.reshape(x.shape[0], -1)
    h = jax.nn.relu(flat @ params["fc1_w"].T + params["fc1_b"])
    return h @ params["fc2_w"].T + params["fc2_b"]


if __name__ == "__main__":
    # Smallest spatial size valid for the 8/4 -> 4/2 -> 3/1 stack (36->8->3->1);
    # 4 stacked frames, 6 actions.
    C, H, W = 4, 36, 36
    n_actions = 6

    key = jax.random.PRNGKey(0)
    k_params, k_s1, k_s2 = jax.random.split(key, 3)
    params = init_params(k_params, C, n_actions, (H, W))
    consts = prepare_consts(params, n_actions)

    # Small batch: single resident block, no grid.
    state_small = jax.random.normal(k_s1, (2, C, H, W), jnp.float32)
    q_small = jax.block_until_ready(
        deep_q_forward(consts, state_small, n_actions=n_actions))
    assert q_small.shape == (2, n_actions), q_small.shape
    ref_small = reference_forward(params, state_small)
    err = float(jnp.max(jnp.abs(q_small - ref_small)))
    assert jnp.allclose(q_small, ref_small, atol=5e-2, rtol=5e-2), err

    # Larger batch: tiled over a "parallel" grid axis; weights stay resident.
    state_big = jax.random.normal(k_s2, (16, C, H, W), jnp.float32)
    q_big = jax.block_until_ready(
        deep_q_forward(consts, state_big, n_actions=n_actions, batch_tile=8))
    assert q_big.shape == (16, n_actions), q_big.shape
    ref_big = reference_forward(params, state_big)
    err = float(jnp.max(jnp.abs(q_big - ref_big)))
    assert jnp.allclose(q_big, ref_big, atol=5e-2, rtol=5e-2), err

    print("KERNEL_OK")
</pallas_src>

<mosaic_0001>
module attributes {stable_mosaic.version = 11 : i64} {
  func.func @_dqn_kernel(%arg0: memref<16x18x256xbf16, #tpu.memory_space<vmem>>, %arg1: memref<256x32xbf16, #tpu.memory_space<vmem>>, %arg2: memref<1x32xf32, #tpu.memory_space<vmem>>, %arg3: memref<16x32x64xbf16, #tpu.memory_space<vmem>>, %arg4: memref<1x64xf32, #tpu.memory_space<vmem>>, %arg5: memref<9x64x64xbf16, #tpu.memory_space<vmem>>, %arg6: memref<1x64xf32, #tpu.memory_space<vmem>>, %arg7: memref<64x512xbf16, #tpu.memory_space<vmem>>, %arg8: memref<1x512xf32, #tpu.memory_space<vmem>>, %arg9: memref<512x128xbf16, #tpu.memory_space<vmem>>, %arg10: memref<1x128xf32, #tpu.memory_space<vmem>>, %arg11: memref<2x128xf32, #tpu.memory_space<vmem>>, %arg12: memref<18x64xbf16, #tpu.memory_space<vmem>>) attributes {dimension_semantics = [], scalar_prefetch = 0 : i64, scratch_operands = 1 : i64, tpu.core_type = #tpu.core_type<tc>} {
    %c0 = arith.constant 0 : index
    %c0_0 = arith.constant 0 : index
    %0 = vector.load %arg1[%c0, %c0_0] : memref<256x32xbf16, #tpu.memory_space<vmem>>, vector<256x32xbf16>
    %c0_1 = arith.constant 0 : index
    %c0_2 = arith.constant 0 : index
    %1 = vector.load %arg2[%c0_1, %c0_2] : memref<1x32xf32, #tpu.memory_space<vmem>>, vector<1x32xf32>
    %cst = arith.constant 0.000000e+00 : f32
    %2 = vector.broadcast %cst : f32 to vector<18x64xf32>
    %c0_3 = arith.constant 0 : index
    %c0_4 = arith.constant 0 : index
    %c0_5 = arith.constant 0 : index
    %3 = vector.load %arg0[%c0_3, %c0_4, %c0_5] : memref<16x18x256xbf16, #tpu.memory_space<vmem>>, vector<1x18x256xbf16>
    %4 = vector.shape_cast %3 : vector<1x18x256xbf16> to vector<18x256xbf16>
    %cst_6 = arith.constant dense<0.000000e+00> : vector<18x32xf32>
    %5 = tpu.matmul %4, %0, %cst_6 {dimension_numbers = #tpu.dot_dimension_numbers<[1], [0], [0], [1], [0, 0, 1, 1], [], []>} : vector<18x256xbf16>, vector<256x32xbf16>, vector<18x32xf32> -> vector<18x32xf32>
    %6 = vector.broadcast %1 : vector<1x32xf32> to vector<18x32xf32>
    %7 = arith.addf %5, %6 : vector<18x32xf32>
    %cst_7 = arith.constant 0.000000e+00 : f32
    %8 = vector.broadcast %cst_7 : f32 to vector<18x32xf32>
    %9 = arith.maximumf %7, %8 : vector<18x32xf32>
    %10 = arith.truncf %9 : vector<18x32xf32> to vector<18x32xbf16>
    %c0_8 = arith.constant 0 : index
    %c0_9 = arith.constant 0 : index
    %c0_10 = arith.constant 0 : index
    %11 = vector.load %arg3[%c0_8, %c0_9, %c0_10] : memref<16x32x64xbf16, #tpu.memory_space<vmem>>, vector<1x32x64xbf16>
    %12 = vector.shape_cast %11 : vector<1x32x64xbf16> to vector<32x64xbf16>
    %cst_11 = arith.constant dense<0.000000e+00> : vector<18x64xf32>
    %13 = tpu.matmul %10, %12, %cst_11 {dimension_numbers = #tpu.dot_dimension_numbers<[1], [0], [0], [1], [0, 0, 1, 1], [], []>} : vector<18x32xbf16>, vector<32x64xbf16>, vector<18x64xf32> -> vector<18x64xf32>
    %14 = arith.addf %2, %13 : vector<18x64xf32>
    %c1 = arith.constant 1 : index
    %c0_12 = arith.constant 0 : index
    %c0_13 = arith.constant 0 : index
    %15 = vector.load %arg0[%c1, %c0_12, %c0_13] : memref<16x18x256xbf16, #tpu.memory_space<vmem>>, vector<1x18x256xbf16>
    %16 = vector.shape_cast %15 : vector<1x18x256xbf16> to vector<18x256xbf16>
    %cst_14 = arith.constant dense<0.000000e+00> : vector<18x32xf32>
    %17 = tpu.matmul %16, %0, %cst_14 {dimension_numbers = #tpu.dot_dimension_numbers<[1], [0], [0], [1], [0, 0, 1, 1], [], []>} : vector<18x256xbf16>, vector<256x32xbf16>, vector<18x32xf32> -> vector<18x32xf32>
    %18 = vector.broadcast %1 : vector<1x32xf32> to vector<18x32xf32>
    %19 = arith.addf %17, %18 : vector<18x32xf32>
    %cst_15 = arith.constant 0.000000e+00 : f32
    %20 = vector.broadcast %cst_15 : f32 to vector<18x32xf32>
    %21 = arith.maximumf %19, %20 : vector<18x32xf32>
    %22 = arith.truncf %21 : vector<18x32xf32> to vector<18x32xbf16>
    %c1_16 = arith.constant 1 : index
    %c0_17 = arith.constant 0 : index
    %c0_18 = arith.constant 0 : index
    %23 = vector.load %arg3[%c1_16, %c0_17, %c0_18] : memref<16x32x64xbf16, #tpu.memory_space<vmem>>, vector<1x32x64xbf16>
    %24 = vector.shape_cast %23 : vector<1x32x64xbf16> to vector<32x64xbf16>
    %cst_19 = arith.constant dense<0.000000e+00> : vector<18x64xf32>
    %25 = tpu.matmul %22, %24, %cst_19 {dimension_numbers = #tpu.dot_dimension_numbers<[1], [0], [0], [1], [0, 0, 1, 1], [], []>} : vector<18x32xbf16>, vector<32x64xbf16>, vector<18x64xf32> -> vector<18x64xf32>
    %26 = arith.addf %14, %25 : vector<18x64xf32>
    %c2 = arith.constant 2 : index
    %c0_20 = arith.constant 0 : index
    %c0_21 = arith.constant 0 : index
    %27 = vector.load %arg0[%c2, %c0_20, %c0_21] : memref<16x18x256xbf16, #tpu.memory_space<vmem>>, vector<1x18x256xbf16>
    %28 = vector.shape_cast %27 : vector<1x18x256xbf16> to vector<18x256xbf16>
    %cst_22 = arith.constant dense<0.000000e+00> : vector<18x32xf32>
    %29 = tpu.matmul %28, %0, %cst_22 {dimension_numbers = #tpu.dot_dimension_numbers<[1], [0], [0], [1], [0, 0, 1, 1], [], []>} : vector<18x256xbf16>, vector<256x32xbf16>, vector<18x32xf32> -> vector<18x32xf32>
    %30 = vector.broadcast %1 : vector<1x32xf32> to vector<18x32xf32>
    %31 = arith.addf %29, %30 : vector<18x32xf32>
    %cst_23 = arith.constant 0.000000e+00 : f32
    %32 = vector.broadcast %cst_23 : f32 to vector<18x32xf32>
    %33 = arith.maximumf %31, %32 : vector<18x32xf32>
    %34 = arith.truncf %33 : vector<18x32xf32> to vector<18x32xbf16>
    %c2_24 = arith.constant 2 : index
    %c0_25 = arith.constant 0 : index
    %c0_26 = arith.constant 0 : index
    %35 = vector.load %arg3[%c2_24, %c0_25, %c0_26] : memref<16x32x64xbf16, #tpu.memory_space<vmem>>, vector<1x32x64xbf16>
    %36 = vector.shape_cast %35 : vector<1x32x64xbf16> to vector<32x64xbf16>
    %cst_27 = arith.constant dense<0.000000e+00> : vector<18x64xf32>
    %37 = tpu.matmul %34, %36, %cst_27 {dimension_numbers = #tpu.dot_dimension_numbers<[1], [0], [0], [1], [0, 0, 1, 1], [], []>} : vector<18x32xbf16>, vector<32x64xbf16>, vector<18x64xf32> -> vector<18x64xf32>
    %38 = arith.addf %26, %37 : vector<18x64xf32>
    %c3 = arith.constant 3 : index
    %c0_28 = arith.constant 0 : index
    %c0_29 = arith.constant 0 : index
    %39 = vector.load %arg0[%c3, %c0_28, %c0_29] : memref<16x18x256xbf16, #tpu.memory_space<vmem>>, vector<1x18x256xbf16>
    %40 = vector.shape_cast %39 : vector<1x18x256xbf16> to vector<18x256xbf16>
    %cst_30 = arith.constant dense<0.000000e+00> : vector<18x32xf32>
    %41 = tpu.matmul %40, %0, %cst_30 {dimension_numbers = #tpu.dot_dimension_numbers<[1], [0], [0], [1], [0, 0, 1, 1], [], []>} : vector<18x256xbf16>, vector<256x32xbf16>, vector<18x32xf32> -> vector<18x32xf32>
    %42 = vector.broadcast %1 : vector<1x32xf32> to vector<18x32xf32>
    %43 = arith.addf %41, %42 : vector<18x32xf32>
    %cst_31 = arith.constant 0.000000e+00 : f32
    %44 = vector.broadcast %cst_31 : f32 to vector<18x32xf32>
    %45 = arith.maximumf %43, %44 : vector<18x32xf32>
    %46 = arith.truncf %45 : vector<18x32xf32> to vector<18x32xbf16>
    %c3_32 = arith.constant 3 : index
    %c0_33 = arith.constant 0 : index
    %c0_34 = arith.constant 0 : index
    %47 = vector.load %arg3[%c3_32, %c0_33, %c0_34] : memref<16x32x64xbf16, #tpu.memory_space<vmem>>, vector<1x32x64xbf16>
    %48 = vector.shape_cast %47 : vector<1x32x64xbf16> to vector<32x64xbf16>
    %cst_35 = arith.constant dense<0.000000e+00> : vector<18x64xf32>
    %49 = tpu.matmul %46, %48, %cst_35 {dimension_numbers = #tpu.dot_dimension_numbers<[1], [0], [0], [1], [0, 0, 1, 1], [], []>} : vector<18x32xbf16>, vector<32x64xbf16>, vector<18x64xf32> -> vector<18x64xf32>
    %50 = arith.addf %38, %49 : vector<18x64xf32>
    %c4 = arith.constant 4 : index
    %c0_36 = arith.constant 0 : index
    %c0_37 = arith.constant 0 : index
    %51 = vector.load %arg0[%c4, %c0_36, %c0_37] : memref<16x18x256xbf16, #tpu.memory_space<vmem>>, vector<1x18x256xbf16>
    %52 = vector.shape_cast %51 : vector<1x18x256xbf16> to vector<18x256xbf16>
    %cst_38 = arith.constant dense<0.000000e+00> : vector<18x32xf32>
    %53 = tpu.matmul %52, %0, %cst_38 {dimension_numbers = #tpu.dot_dimension_numbers<[1], [0], [0], [1], [0, 0, 1, 1], [], []>} : vector<18x256xbf16>, vector<256x32xbf16>, vector<18x32xf32> -> vector<18x32xf32>
    %54 = vector.broadcast %1 : vector<1x32xf32> to vector<18x32xf32>
    %55 = arith.addf %53, %54 : vector<18x32xf32>
    %cst_39 = arith.constant 0.000000e+00 : f32
    %56 = vector.broadcast %cst_39 : f32 to vector<18x32xf32>
    %57 = arith.maximumf %55, %56 : vector<18x32xf32>
    %58 = arith.truncf %57 : vector<18x32xf32> to vector<18x32xbf16>
    %c4_40 = arith.constant 4 : index
    %c0_41 = arith.constant 0 : index
    %c0_42 = arith.constant 0 : index
    %59 = vector.load %arg3[%c4_40, %c0_41, %c0_42] : memref<16x32x64xbf16, #tpu.memory_space<vmem>>, vector<1x32x64xbf16>
    %60 = vector.shape_cast %59 : vector<1x32x64xbf16> to vector<32x64xbf16>
    %cst_43 = arith.constant dense<0.000000e+00> : vector<18x64xf32>
    %61 = tpu.matmul %58, %60, %cst_43 {dimension_numbers = #tpu.dot_dimension_numbers<[1], [0], [0], [1], [0, 0, 1, 1], [], []>} : vector<18x32xbf16>, vector<32x64xbf16>, vector<18x64xf32> -> vector<18x64xf32>
    %62 = arith.addf %50, %61 : vector<18x64xf32>
    %c5 = arith.constant 5 : index
    %c0_44 = arith.constant 0 : index
    %c0_45 = arith.constant 0 : index
    %63 = vector.load %arg0[%c5, %c0_44, %c0_45] : memref<16x18x256xbf16, #tpu.memory_space<vmem>>, vector<1x18x256xbf16>
    %64 = vector.shape_cast %63 : vector<1x18x256xbf16> to vector<18x256xbf16>
    %cst_46 = arith.constant dense<0.000000e+00> : vector<18x32xf32>
    %65 = tpu.matmul %64, %0, %cst_46 {dimension_numbers = #tpu.dot_dimension_numbers<[1], [0], [0], [1], [0, 0, 1, 1], [], []>} : vector<18x256xbf16>, vector<256x32xbf16>, vector<18x32xf32> -> vector<18x32xf32>
    %66 = vector.broadcast %1 : vector<1x32xf32> to vector<18x32xf32>
    %67 = arith.addf %65, %66 : vector<18x32xf32>
    %cst_47 = arith.constant 0.000000e+00 : f32
    %68 = vector.broadcast %cst_47 : f32 to vector<18x32xf32>
    %69 = arith.maximumf %67, %68 : vector<18x32xf32>
    %70 = arith.truncf %69 : vector<18x32xf32> to vector<18x32xbf16>
    %c5_48 = arith.constant 5 : index
    %c0_49 = arith.constant 0 : index
    %c0_50 = arith.constant 0 : index
    %71 = vector.load %arg3[%c5_48, %c0_49, %c0_50] : memref<16x32x64xbf16, #tpu.memory_space<vmem>>, vector<1x32x64xbf16>
    %72 = vector.shape_cast %71 : vector<1x32x64xbf16> to vector<32x64xbf16>
    %cst_51 = arith.constant dense<0.000000e+00> : vector<18x64xf32>
    %73 = tpu.matmul %70, %72, %cst_51 {dimension_numbers = #tpu.dot_dimension_numbers<[1], [0], [0], [1], [0, 0, 1, 1], [], []>} : vector<18x32xbf16>, vector<32x64xbf16>, vector<18x64xf32> -> vector<18x64xf32>
    %74 = arith.addf %62, %73 : vector<18x64xf32>
    %c6 = arith.constant 6 : index
    %c0_52 = arith.constant 0 : index
    %c0_53 = arith.constant 0 : index
    %75 = vector.load %arg0[%c6, %c0_52, %c0_53] : memref<16x18x256xbf16, #tpu.memory_space<vmem>>, vector<1x18x256xbf16>
    %76 = vector.shape_cast %75 : vector<1x18x256xbf16> to vector<18x256xbf16>
    %cst_54 = arith.constant dense<0.000000e+00> : vector<18x32xf32>
    %77 = tpu.matmul %76, %0, %cst_54 {dimension_numbers = #tpu.dot_dimension_numbers<[1], [0], [0], [1], [0, 0, 1, 1], [], []>} : vector<18x256xbf16>, vector<256x32xbf16>, vector<18x32xf32> -> vector<18x32xf32>
    %78 = vector.broadcast %1 : vector<1x32xf32> to vector<18x32xf32>
    %79 = arith.addf %77, %78 : vector<18x32xf32>
    %cst_55 = arith.constant 0.000000e+00 : f32
    %80 = vector.broadcast %cst_55 : f32 to vector<18x32xf32>
    %81 = arith.maximumf %79, %80 : vector<18x32xf32>
    %82 = arith.truncf %81 : vector<18x32xf32> to vector<18x32xbf16>
    %c6_56 = arith.constant 6 : index
    %c0_57 = arith.constant 0 : index
    %c0_58 = arith.constant 0 : index
    %83 = vector.load %arg3[%c6_56, %c0_57, %c0_58] : memref<16x32x64xbf16, #tpu.memory_space<vmem>>, vector<1x32x64xbf16>
    %84 = vector.shape_cast %83 : vector<1x32x64xbf16> to vector<32x64xbf16>
    %cst_59 = arith.constant dense<0.000000e+00> : vector<18x64xf32>
    %85 = tpu.matmul %82, %84, %cst_59 {dimension_numbers = #tpu.dot_dimension_numbers<[1], [0], [0], [1], [0, 0, 1, 1], [], []>} : vector<18x32xbf16>, vector<32x64xbf16>, vector<18x64xf32> -> vector<18x64xf32>
    %86 = arith.addf %74, %85 : vector<18x64xf32>
    %c7 = arith.constant 7 : index
    %c0_60 = arith.constant 0 : index
    %c0_61 = arith.constant 0 : index
    %87 = vector.load %arg0[%c7, %c0_60, %c0_61] : memref<16x18x256xbf16, #tpu.memory_space<vmem>>, vector<1x18x256xbf16>
    %88 = vector.shape_cast %87 : vector<1x18x256xbf16> to vector<18x256xbf16>
    %cst_62 = arith.constant dense<0.000000e+00> : vector<18x32xf32>
    %89 = tpu.matmul %88, %0, %cst_62 {dimension_numbers = #tpu.dot_dimension_numbers<[1], [0], [0], [1], [0, 0, 1, 1], [], []>} : vector<18x256xbf16>, vector<256x32xbf16>, vector<18x32xf32> -> vector<18x32xf32>
    %90 = vector.broadcast %1 : vector<1x32xf32> to vector<18x32xf32>
    %91 = arith.addf %89, %90 : vector<18x32xf32>
    %cst_63 = arith.constant 0.000000e+00 : f32
    %92 = vector.broadcast %cst_63 : f32 to vector<18x32xf32>
    %93 = arith.maximumf %91, %92 : vector<18x32xf32>
    %94 = arith.truncf %93 : vector<18x32xf32> to vector<18x32xbf16>
    %c7_64 = arith.constant 7 : index
    %c0_65 = arith.constant 0 : index
    %c0_66 = arith.constant 0 : index
    %95 = vector.load %arg3[%c7_64, %c0_65, %c0_66] : memref<16x32x64xbf16, #tpu.memory_space<vmem>>, vector<1x32x64xbf16>
    %96 = vector.shape_cast %95 : vector<1x32x64xbf16> to vector<32x64xbf16>
    %cst_67 = arith.constant dense<0.000000e+00> : vector<18x64xf32>
    %97 = tpu.matmul %94, %96, %cst_67 {dimension_numbers = #tpu.dot_dimension_numbers<[1], [0], [0], [1], [0, 0, 1, 1], [], []>} : vector<18x32xbf16>, vector<32x64xbf16>, vector<18x64xf32> -> vector<18x64xf32>
    %98 = arith.addf %86, %97 : vector<18x64xf32>
    %c8 = arith.constant 8 : index
    %c0_68 = arith.constant 0 : index
    %c0_69 = arith.constant 0 : index
    %99 = vector.load %arg0[%c8, %c0_68, %c0_69] : memref<16x18x256xbf16, #tpu.memory_space<vmem>>, vector<1x18x256xbf16>
    %100 = vector.shape_cast %99 : vector<1x18x256xbf16> to vector<18x256xbf16>
    %cst_70 = arith.constant dense<0.000000e+00> : vector<18x32xf32>
    %101 = tpu.matmul %100, %0, %cst_70 {dimension_numbers = #tpu.dot_dimension_numbers<[1], [0], [0], [1], [0, 0, 1, 1], [], []>} : vector<18x256xbf16>, vector<256x32xbf16>, vector<18x32xf32> -> vector<18x32xf32>
    %102 = vector.broadcast %1 : vector<1x32xf32> to vector<18x32xf32>
    %103 = arith.addf %101, %102 : vector<18x32xf32>
    %cst_71 = arith.constant 0.000000e+00 : f32
    %104 = vector.broadcast %cst_71 : f32 to vector<18x32xf32>
    %105 = arith.maximumf %103, %104 : vector<18x32xf32>
    %106 = arith.truncf %105 : vector<18x32xf32> to vector<18x32xbf16>
    %c8_72 = arith.constant 8 : index
    %c0_73 = arith.constant 0 : index
    %c0_74 = arith.constant 0 : index
    %107 = vector.load %arg3[%c8_72, %c0_73, %c0_74] : memref<16x32x64xbf16, #tpu.memory_space<vmem>>, vector<1x32x64xbf16>
    %108 = vector.shape_cast %107 : vector<1x32x64xbf16> to vector<32x64xbf16>
    %cst_75 = arith.constant dense<0.000000e+00> : vector<18x64xf32>
    %109 = tpu.matmul %106, %108, %cst_75 {dimension_numbers = #tpu.dot_dimension_numbers<[1], [0], [0], [1], [0, 0, 1, 1], [], []>} : vector<18x32xbf16>, vector<32x64xbf16>, vector<18x64xf32> -> vector<18x64xf32>
    %110 = arith.addf %98, %109 : vector<18x64xf32>
    %c9 = arith.constant 9 : index
    %c0_76 = arith.constant 0 : index
    %c0_77 = arith.constant 0 : index
    %111 = vector.load %arg0[%c9, %c0_76, %c0_77] : memref<16x18x256xbf16, #tpu.memory_space<vmem>>, vector<1x18x256xbf16>
    %112 = vector.shape_cast %111 : vector<1x18x256xbf16> to vector<18x256xbf16>
    %cst_78 = arith.constant dense<0.000000e+00> : vector<18x32xf32>
    %113 = tpu.matmul %112, %0, %cst_78 {dimension_numbers = #tpu.dot_dimension_numbers<[1], [0], [0], [1], [0, 0, 1, 1], [], []>} : vector<18x256xbf16>, vector<256x32xbf16>, vector<18x32xf32> -> vector<18x32xf32>
    %114 = vector.broadcast %1 : vector<1x32xf32> to vector<18x32xf32>
    %115 = arith.addf %113, %114 : vector<18x32xf32>
    %cst_79 = arith.constant 0.000000e+00 : f32
    %116 = vector.broadcast %cst_79 : f32 to vector<18x32xf32>
    %117 = arith.maximumf %115, %116 : vector<18x32xf32>
    %118 = arith.truncf %117 : vector<18x32xf32> to vector<18x32xbf16>
    %c9_80 = arith.constant 9 : index
    %c0_81 = arith.constant 0 : index
    %c0_82 = arith.constant 0 : index
    %119 = vector.load %arg3[%c9_80, %c0_81, %c0_82] : memref<16x32x64xbf16, #tpu.memory_space<vmem>>, vector<1x32x64xbf16>
    %120 = vector.shape_cast %119 : vector<1x32x64xbf16> to vector<32x64xbf16>
    %cst_83 = arith.constant dense<0.000000e+00> : vector<18x64xf32>
    %121 = tpu.matmul %118, %120, %cst_83 {dimension_numbers = #tpu.dot_dimension_numbers<[1], [0], [0], [1], [0, 0, 1, 1], [], []>} : vector<18x32xbf16>, vector<32x64xbf16>, vector<18x64xf32> -> vector<18x64xf32>
    %122 = arith.addf %110, %121 : vector<18x64xf32>
    %c10 = arith.constant 10 : index
    %c0_84 = arith.constant 0 : index
    %c0_85 = arith.constant 0 : index
    %123 = vector.load %arg0[%c10, %c0_84, %c0_85] : memref<16x18x256xbf16, #tpu.memory_space<vmem>>, vector<1x18x256xbf16>
    %124 = vector.shape_cast %123 : vector<1x18x256xbf16> to vector<18x256xbf16>
    %cst_86 = arith.constant dense<0.000000e+00> : vector<18x32xf32>
    %125 = tpu.matmul %124, %0, %cst_86 {dimension_numbers = #tpu.dot_dimension_numbers<[1], [0], [0], [1], [0, 0, 1, 1], [], []>} : vector<18x256xbf16>, vector<256x32xbf16>, vector<18x32xf32> -> vector<18x32xf32>
    %126 = vector.broadcast %1 : vector<1x32xf32> to vector<18x32xf32>
    %127 = arith.addf %125, %126 : vector<18x32xf32>
    %cst_87 = arith.constant 0.000000e+00 : f32
    %128 = vector.broadcast %cst_87 : f32 to vector<18x32xf32>
    %129 = arith.maximumf %127, %128 : vector<18x32xf32>
    %130 = arith.truncf %129 : vector<18x32xf32> to vector<18x32xbf16>
    %c10_88 = arith.constant 10 : index
    %c0_89 = arith.constant 0 : index
    %c0_90 = arith.constant 0 : index
    %131 = vector.load %arg3[%c10_88, %c0_89, %c0_90] : memref<16x32x64xbf16, #tpu.memory_space<vmem>>, vector<1x32x64xbf16>
    %132 = vector.shape_cast %131 : vector<1x32x64xbf16> to vector<32x64xbf16>
    %cst_91 = arith.constant dense<0.000000e+00> : vector<18x64xf32>
    %133 = tpu.matmul %130, %132, %cst_91 {dimension_numbers = #tpu.dot_dimension_numbers<[1], [0], [0], [1], [0, 0, 1, 1], [], []>} : vector<18x32xbf16>, vector<32x64xbf16>, vector<18x64xf32> -> vector<18x64xf32>
    %134 = arith.addf %122, %133 : vector<18x64xf32>
    %c11 = arith.constant 11 : index
    %c0_92 = arith.constant 0 : index
    %c0_93 = arith.constant 0 : index
    %135 = vector.load %arg0[%c11, %c0_92, %c0_93] : memref<16x18x256xbf16, #tpu.memory_space<vmem>>, vector<1x18x256xbf16>
    %136 = vector.shape_cast %135 : vector<1x18x256xbf16> to vector<18x256xbf16>
    %cst_94 = arith.constant dense<0.000000e+00> : vector<18x32xf32>
    %137 = tpu.matmul %136, %0, %cst_94 {dimension_numbers = #tpu.dot_dimension_numbers<[1], [0], [0], [1], [0, 0, 1, 1], [], []>} : vector<18x256xbf16>, vector<256x32xbf16>, vector<18x32xf32> -> vector<18x32xf32>
    %138 = vector.broadcast %1 : vector<1x32xf32> to vector<18x32xf32>
    %139 = arith.addf %137, %138 : vector<18x32xf32>
    %cst_95 = arith.constant 0.000000e+00 : f32
    %140 = vector.broadcast %cst_95 : f32 to vector<18x32xf32>
    %141 = arith.maximumf %139, %140 : vector<18x32xf32>
    %142 = arith.truncf %141 : vector<18x32xf32> to vector<18x32xbf16>
    %c11_96 = arith.constant 11 : index
    %c0_97 = arith.constant 0 : index
    %c0_98 = arith.constant 0 : index
    %143 = vector.load %arg3[%c11_96, %c0_97, %c0_98] : memref<16x32x64xbf16, #tpu.memory_space<vmem>>, vector<1x32x64xbf16>
    %144 = vector.shape_cast %143 : vector<1x32x64xbf16> to vector<32x64xbf16>
    %cst_99 = arith.constant dense<0.000000e+00> : vector<18x64xf32>
    %145 = tpu.matmul %142, %144, %cst_99 {dimension_numbers = #tpu.dot_dimension_numbers<[1], [0], [0], [1], [0, 0, 1, 1], [], []>} : vector<18x32xbf16>, vector<32x64xbf16>, vector<18x64xf32> -> vector<18x64xf32>
    %146 = arith.addf %134, %145 : vector<18x64xf32>
    %c12 = arith.constant 12 : index
    %c0_100 = arith.constant 0 : index
    %c0_101 = arith.constant 0 : index
    %147 = vector.load %arg0[%c12, %c0_100, %c0_101] : memref<16x18x256xbf16, #tpu.memory_space<vmem>>, vector<1x18x256xbf16>
    %148 = vector.shape_cast %147 : vector<1x18x256xbf16> to vector<18x256xbf16>
    %cst_102 = arith.constant dense<0.000000e+00> : vector<18x32xf32>
    %149 = tpu.matmul %148, %0, %cst_102 {dimension_numbers = #tpu.dot_dimension_numbers<[1], [0], [0], [1], [0, 0, 1, 1], [], []>} : vector<18x256xbf16>, vector<256x32xbf16>, vector<18x32xf32> -> vector<18x32xf32>
    %150 = vector.broadcast %1 : vector<1x32xf32> to vector<18x32xf32>
    %151 = arith.addf %149, %150 : vector<18x32xf32>
    %cst_103 = arith.constant 0.000000e+00 : f32
    %152 = vector.broadcast %cst_103 : f32 to vector<18x32xf32>
    %153 = arith.maximumf %151, %152 : vector<18x32xf32>
    %154 = arith.truncf %153 : vector<18x32xf32> to vector<18x32xbf16>
    %c12_104 = arith.constant 12 : index
    %c0_105 = arith.constant 0 : index
    %c0_106 = arith.constant 0 : index
    %155 = vector.load %arg3[%c12_104, %c0_105, %c0_106] : memref<16x32x64xbf16, #tpu.memory_space<vmem>>, vector<1x32x64xbf16>
    %156 = vector.shape_cast %155 : vector<1x32x64xbf16> to vector<32x64xbf16>
    %cst_107 = arith.constant dense<0.000000e+00> : vector<18x64xf32>
    %157 = tpu.matmul %154, %156, %cst_107 {dimension_numbers = #tpu.dot_dimension_numbers<[1], [0], [0], [1], [0, 0, 1, 1], [], []>} : vector<18x32xbf16>, vector<32x64xbf16>, vector<18x64xf32> -> vector<18x64xf32>
    %158 = arith.addf %146, %157 : vector<18x64xf32>
    %c13 = arith.constant 13 : index
    %c0_108 = arith.constant 0 : index
    %c0_109 = arith.constant 0 : index
    %159 = vector.load %arg0[%c13, %c0_108, %c0_109] : memref<16x18x256xbf16, #tpu.memory_space<vmem>>, vector<1x18x256xbf16>
    %160 = vector.shape_cast %159 : vector<1x18x256xbf16> to vector<18x256xbf16>
    %cst_110 = arith.constant dense<0.000000e+00> : vector<18x32xf32>
    %161 = tpu.matmul %160, %0, %cst_110 {dimension_numbers = #tpu.dot_dimension_numbers<[1], [0], [0], [1], [0, 0, 1, 1], [], []>} : vector<18x256xbf16>, vector<256x32xbf16>, vector<18x32xf32> -> vector<18x32xf32>
    %162 = vector.broadcast %1 : vector<1x32xf32> to vector<18x32xf32>
    %163 = arith.addf %161, %162 : vector<18x32xf32>
    %cst_111 = arith.constant 0.000000e+00 : f32
    %164 = vector.broadcast %cst_111 : f32 to vector<18x32xf32>
    %165 = arith.maximumf %163, %164 : vector<18x32xf32>
    %166 = arith.truncf %165 : vector<18x32xf32> to vector<18x32xbf16>
    %c13_112 = arith.constant 13 : index
    %c0_113 = arith.constant 0 : index
    %c0_114 = arith.constant 0 : index
    %167 = vector.load %arg3[%c13_112, %c0_113, %c0_114] : memref<16x32x64xbf16, #tpu.memory_space<vmem>>, vector<1x32x64xbf16>
    %168 = vector.shape_cast %167 : vector<1x32x64xbf16> to vector<32x64xbf16>
    %cst_115 = arith.constant dense<0.000000e+00> : vector<18x64xf32>
    %169 = tpu.matmul %166, %168, %cst_115 {dimension_numbers = #tpu.dot_dimension_numbers<[1], [0], [0], [1], [0, 0, 1, 1], [], []>} : vector<18x32xbf16>, vector<32x64xbf16>, vector<18x64xf32> -> vector<18x64xf32>
    %170 = arith.addf %158, %169 : vector<18x64xf32>
    %c14 = arith.constant 14 : index
    %c0_116 = arith.constant 0 : index
    %c0_117 = arith.constant 0 : index
    %171 = vector.load %arg0[%c14, %c0_116, %c0_117] : memref<16x18x256xbf16, #tpu.memory_space<vmem>>, vector<1x18x256xbf16>
    %172 = vector.shape_cast %171 : vector<1x18x256xbf16> to vector<18x256xbf16>
    %cst_118 = arith.constant dense<0.000000e+00> : vector<18x32xf32>
    %173 = tpu.matmul %172, %0, %cst_118 {dimension_numbers = #tpu.dot_dimension_numbers<[1], [0], [0], [1], [0, 0, 1, 1], [], []>} : vector<18x256xbf16>, vector<256x32xbf16>, vector<18x32xf32> -> vector<18x32xf32>
    %174 = vector.broadcast %1 : vector<1x32xf32> to vector<18x32xf32>
    %175 = arith.addf %173, %174 : vector<18x32xf32>
    %cst_119 = arith.constant 0.000000e+00 : f32
    %176 = vector.broadcast %cst_119 : f32 to vector<18x32xf32>
    %177 = arith.maximumf %175, %176 : vector<18x32xf32>
    %178 = arith.truncf %177 : vector<18x32xf32> to vector<18x32xbf16>
    %c14_120 = arith.constant 14 : index
    %c0_121 = arith.constant 0 : index
    %c0_122 = arith.constant 0 : index
    %179 = vector.load %arg3[%c14_120, %c0_121, %c0_122] : memref<16x32x64xbf16, #tpu.memory_space<vmem>>, vector<1x32x64xbf16>
    %180 = vector.shape_cast %179 : vector<1x32x64xbf16> to vector<32x64xbf16>
    %cst_123 = arith.constant dense<0.000000e+00> : vector<18x64xf32>
    %181 = tpu.matmul %178, %180, %cst_123 {dimension_numbers = #tpu.dot_dimension_numbers<[1], [0], [0], [1], [0, 0, 1, 1], [], []>} : vector<18x32xbf16>, vector<32x64xbf16>, vector<18x64xf32> -> vector<18x64xf32>
    %182 = arith.addf %170, %181 : vector<18x64xf32>
    %c15 = arith.constant 15 : index
    %c0_124 = arith.constant 0 : index
    %c0_125 = arith.constant 0 : index
    %183 = vector.load %arg0[%c15, %c0_124, %c0_125] : memref<16x18x256xbf16, #tpu.memory_space<vmem>>, vector<1x18x256xbf16>
    %184 = vector.shape_cast %183 : vector<1x18x256xbf16> to vector<18x256xbf16>
    %cst_126 = arith.constant dense<0.000000e+00> : vector<18x32xf32>
    %185 = tpu.matmul %184, %0, %cst_126 {dimension_numbers = #tpu.dot_dimension_numbers<[1], [0], [0], [1], [0, 0, 1, 1], [], []>} : vector<18x256xbf16>, vector<256x32xbf16>, vector<18x32xf32> -> vector<18x32xf32>
    %186 = vector.broadcast %1 : vector<1x32xf32> to vector<18x32xf32>
    %187 = arith.addf %185, %186 : vector<18x32xf32>
    %cst_127 = arith.constant 0.000000e+00 : f32
    %188 = vector.broadcast %cst_127 : f32 to vector<18x32xf32>
    %189 = arith.maximumf %187, %188 : vector<18x32xf32>
    %190 = arith.truncf %189 : vector<18x32xf32> to vector<18x32xbf16>
    %c15_128 = arith.constant 15 : index
    %c0_129 = arith.constant 0 : index
    %c0_130 = arith.constant 0 : index
    %191 = vector.load %arg3[%c15_128, %c0_129, %c0_130] : memref<16x32x64xbf16, #tpu.memory_space<vmem>>, vector<1x32x64xbf16>
    %192 = vector.shape_cast %191 : vector<1x32x64xbf16> to vector<32x64xbf16>
    %cst_131 = arith.constant dense<0.000000e+00> : vector<18x64xf32>
    %193 = tpu.matmul %190, %192, %cst_131 {dimension_numbers = #tpu.dot_dimension_numbers<[1], [0], [0], [1], [0, 0, 1, 1], [], []>} : vector<18x32xbf16>, vector<32x64xbf16>, vector<18x64xf32> -> vector<18x64xf32>
    %194 = arith.addf %182, %193 : vector<18x64xf32>
    %c0_132 = arith.constant 0 : index
    %c0_133 = arith.constant 0 : index
    %195 = vector.load %arg4[%c0_132, %c0_133] : memref<1x64xf32, #tpu.memory_space<vmem>>, vector<1x64xf32>
    %196 = vector.broadcast %195 : vector<1x64xf32> to vector<18x64xf32>
    %197 = arith.addf %194, %196 : vector<18x64xf32>
    %cst_134 = arith.constant 0.000000e+00 : f32
    %198 = vector.broadcast %cst_134 : f32 to vector<18x64xf32>
    %199 = arith.maximumf %197, %198 : vector<18x64xf32>
    %200 = arith.truncf %199 : vector<18x64xf32> to vector<18x64xbf16>
    %c0_135 = arith.constant 0 : index
    %c0_136 = arith.constant 0 : index
    %201 = vector.load %arg12[%c0_135, %c0_136] : memref<18x64xbf16, #tpu.memory_space<vmem>>, vector<18x64xbf16>
    tpu.vector_store %arg12[%c0_135, %c0_136], %200 {strides = array<i32>} : memref<18x64xbf16, #tpu.memory_space<vmem>>, vector<18x64xbf16>,
    %cst_137 = arith.constant 0.000000e+00 : f32
    %202 = vector.broadcast %cst_137 : f32 to vector<2x64xf32>
    %c0_138 = arith.constant 0 : index
    %c0_139 = arith.constant 0 : index
    %203 = vector.load %arg12[%c0_138, %c0_139] : memref<18x64xbf16, #tpu.memory_space<vmem>>, vector<2x64xbf16>
    %c0_140 = arith.constant 0 : index
    %c0_141 = arith.constant 0 : index
    %c0_142 = arith.constant 0 : index
    %204 = vector.load %arg5[%c0_140, %c0_141, %c0_142] : memref<9x64x64xbf16, #tpu.memory_space<vmem>>, vector<1x64x64xbf16>
    %205 = vector.shape_cast %204 : vector<1x64x64xbf16> to vector<64x64xbf16>
    %cst_143 = arith.constant dense<0.000000e+00> : vector<2x64xf32>
    %206 = tpu.matmul %203, %205, %cst_143 {dimension_numbers = #tpu.dot_dimension_numbers<[1], [0], [0], [1], [0, 0, 1, 1], [], []>} : vector<2x64xbf16>, vector<64x64xbf16>, vector<2x64xf32> -> vector<2x64xf32>
    %207 = arith.addf %202, %206 : vector<2x64xf32>
    %c2_144 = arith.constant 2 : index
    %c0_145 = arith.constant 0 : index
    %208 = vector.load %arg12[%c2_144, %c0_145] : memref<18x64xbf16, #tpu.memory_space<vmem>>, vector<2x64xbf16>
    %c1_146 = arith.constant 1 : index
    %c0_147 = arith.constant 0 : index
    %c0_148 = arith.constant 0 : index
    %209 = vector.load %arg5[%c1_146, %c0_147, %c0_148] : memref<9x64x64xbf16, #tpu.memory_space<vmem>>, vector<1x64x64xbf16>
    %210 = vector.shape_cast %209 : vector<1x64x64xbf16> to vector<64x64xbf16>
    %cst_149 = arith.constant dense<0.000000e+00> : vector<2x64xf32>
    %211 = tpu.matmul %208, %210, %cst_149 {dimension_numbers = #tpu.dot_dimension_numbers<[1], [0], [0], [1], [0, 0, 1, 1], [], []>} : vector<2x64xbf16>, vector<64x64xbf16>, vector<2x64xf32> -> vector<2x64xf32>
    %212 = arith.addf %207, %211 : vector<2x64xf32>
    %c4_150 = arith.constant 4 : index
    %c0_151 = arith.constant 0 : index
    %213 = vector.load %arg12[%c4_150, %c0_151] : memref<18x64xbf16, #tpu.memory_space<vmem>>, vector<2x64xbf16>
    %c2_152 = arith.constant 2 : index
    %c0_153 = arith.constant 0 : index
    %c0_154 = arith.constant 0 : index
    %214 = vector.load %arg5[%c2_152, %c0_153, %c0_154] : memref<9x64x64xbf16, #tpu.memory_space<vmem>>, vector<1x64x64xbf16>
    %215 = vector.shape_cast %214 : vector<1x64x64xbf16> to vector<64x64xbf16>
    %cst_155 = arith.constant dense<0.000000e+00> : vector<2x64xf32>
    %216 = tpu.matmul %213, %215, %cst_155 {dimension_numbers = #tpu.dot_dimension_numbers<[1], [0], [0], [1], [0, 0, 1, 1], [], []>} : vector<2x64xbf16>, vector<64x64xbf16>, vector<2x64xf32> -> vector<2x64xf32>
    %217 = arith.addf %212, %216 : vector<2x64xf32>
    %c6_156 = arith.constant 6 : index
    %c0_157 = arith.constant 0 : index
    %218 = vector.load %arg12[%c6_156, %c0_157] : memref<18x64xbf16, #tpu.memory_space<vmem>>, vector<2x64xbf16>
    %c3_158 = arith.constant 3 : index
    %c0_159 = arith.constant 0 : index
    %c0_160 = arith.constant 0 : index
    %219 = vector.load %arg5[%c3_158, %c0_159, %c0_160] : memref<9x64x64xbf16, #tpu.memory_space<vmem>>, vector<1x64x64xbf16>
    %220 = vector.shape_cast %219 : vector<1x64x64xbf16> to vector<64x64xbf16>
    %cst_161 = arith.constant dense<0.000000e+00> : vector<2x64xf32>
    %221 = tpu.matmul %218, %220, %cst_161 {dimension_numbers = #tpu.dot_dimension_numbers<[1], [0], [0], [1], [0, 0, 1, 1], [], []>} : vector<2x64xbf16>, vector<64x64xbf16>, vector<2x64xf32> -> vector<2x64xf32>
    %222 = arith.addf %217, %221 : vector<2x64xf32>
    %c8_162 = arith.constant 8 : index
    %c0_163 = arith.constant 0 : index
    %223 = vector.load %arg12[%c8_162, %c0_163] : memref<18x64xbf16, #tpu.memory_space<vmem>>, vector<2x64xbf16>
    %c4_164 = arith.constant 4 : index
    %c0_165 = arith.constant 0 : index
    %c0_166 = arith.constant 0 : index
    %224 = vector.load %arg5[%c4_164, %c0_165, %c0_166] : memref<9x64x64xbf16, #tpu.memory_space<vmem>>, vector<1x64x64xbf16>
    %225 = vector.shape_cast %224 : vector<1x64x64xbf16> to vector<64x64xbf16>
    %cst_167 = arith.constant dense<0.000000e+00> : vector<2x64xf32>
    %226 = tpu.matmul %223, %225, %cst_167 {dimension_numbers = #tpu.dot_dimension_numbers<[1], [0], [0], [1], [0, 0, 1, 1], [], []>} : vector<2x64xbf16>, vector<64x64xbf16>, vector<2x64xf32> -> vector<2x64xf32>
    %227 = arith.addf %222, %226 : vector<2x64xf32>
    %c10_168 = arith.constant 10 : index
    %c0_169 = arith.constant 0 : index
    %228 = vector.load %arg12[%c10_168, %c0_169] : memref<18x64xbf16, #tpu.memory_space<vmem>>, vector<2x64xbf16>
    %c5_170 = arith.constant 5 : index
    %c0_171 = arith.constant 0 : index
    %c0_172 = arith.constant 0 : index
    %229 = vector.load %arg5[%c5_170, %c0_171, %c0_172] : memref<9x64x64xbf16, #tpu.memory_space<vmem>>, vector<1x64x64xbf16>
    %230 = vector.shape_cast %229 : vector<1x64x64xbf16> to vector<64x64xbf16>
    %cst_173 = arith.constant dense<0.000000e+00> : vector<2x64xf32>
    %231 = tpu.matmul %228, %230, %cst_173 {dimension_numbers = #tpu.dot_dimension_numbers<[1], [0], [0], [1], [0, 0, 1, 1], [], []>} : vector<2x64xbf16>, vector<64x64xbf16>, vector<2x64xf32> -> vector<2x64xf32>
    %232 = arith.addf %227, %231 : vector<2x64xf32>
    %c12_174 = arith.constant 12 : index
    %c0_175 = arith.constant 0 : index
    %233 = vector.load %arg12[%c12_174, %c0_175] : memref<18x64xbf16, #tpu.memory_space<vmem>>, vector<2x64xbf16>
    %c6_176 = arith.constant 6 : index
    %c0_177 = arith.constant 0 : index
    %c0_178 = arith.constant 0 : index
    %234 = vector.load %arg5[%c6_176, %c0_177, %c0_178] : memref<9x64x64xbf16, #tpu.memory_space<vmem>>, vector<1x64x64xbf16>
    %235 = vector.shape_cast %234 : vector<1x64x64xbf16> to vector<64x64xbf16>
    %cst_179 = arith.constant dense<0.000000e+00> : vector<2x64xf32>
    %236 = tpu.matmul %233, %235, %cst_179 {dimension_numbers = #tpu.dot_dimension_numbers<[1], [0], [0], [1], [0, 0, 1, 1], [], []>} : vector<2x64xbf16>, vector<64x64xbf16>, vector<2x64xf32> -> vector<2x64xf32>
    %237 = arith.addf %232, %236 : vector<2x64xf32>
    %c14_180 = arith.constant 14 : index
    %c0_181 = arith.constant 0 : index
    %238 = vector.load %arg12[%c14_180, %c0_181] : memref<18x64xbf16, #tpu.memory_space<vmem>>, vector<2x64xbf16>
    %c7_182 = arith.constant 7 : index
    %c0_183 = arith.constant 0 : index
    %c0_184 = arith.constant 0 : index
    %239 = vector.load %arg5[%c7_182, %c0_183, %c0_184] : memref<9x64x64xbf16, #tpu.memory_space<vmem>>, vector<1x64x64xbf16>
    %240 = vector.shape_cast %239 : vector<1x64x64xbf16> to vector<64x64xbf16>
    %cst_185 = arith.constant dense<0.000000e+00> : vector<2x64xf32>
    %241 = tpu.matmul %238, %240, %cst_185 {dimension_numbers = #tpu.dot_dimension_numbers<[1], [0], [0], [1], [0, 0, 1, 1], [], []>} : vector<2x64xbf16>, vector<64x64xbf16>, vector<2x64xf32> -> vector<2x64xf32>
    %242 = arith.addf %237, %241 : vector<2x64xf32>
    %c16 = arith.constant 16 : index
    %c0_186 = arith.constant 0 : index
    %243 = vector.load %arg12[%c16, %c0_186] : memref<18x64xbf16, #tpu.memory_space<vmem>>, vector<2x64xbf16>
    %c8_187 = arith.constant 8 : index
    %c0_188 = arith.constant 0 : index
    %c0_189 = arith.constant 0 : index
    %244 = vector.load %arg5[%c8_187, %c0_188, %c0_189] : memref<9x64x64xbf16, #tpu.memory_space<vmem>>, vector<1x64x64xbf16>
    %245 = vector.shape_cast %244 : vector<1x64x64xbf16> to vector<64x64xbf16>
    %cst_190 = arith.constant dense<0.000000e+00> : vector<2x64xf32>
    %246 = tpu.matmul %243, %245, %cst_190 {dimension_numbers = #tpu.dot_dimension_numbers<[1], [0], [0], [1], [0, 0, 1, 1], [], []>} : vector<2x64xbf16>, vector<64x64xbf16>, vector<2x64xf32> -> vector<2x64xf32>
    %247 = arith.addf %242, %246 : vector<2x64xf32>
    %c0_191 = arith.constant 0 : index
    %c0_192 = arith.constant 0 : index
    %248 = vector.load %arg6[%c0_191, %c0_192] : memref<1x64xf32, #tpu.memory_space<vmem>>, vector<1x64xf32>
    %249 = vector.broadcast %248 : vector<1x64xf32> to vector<2x64xf32>
    %250 = arith.addf %247, %249 : vector<2x64xf32>
    %cst_193 = arith.constant 0.000000e+00 : f32
    %251 = vector.broadcast %cst_193 : f32 to vector<2x64xf32>
    %252 = arith.maximumf %250, %251 : vector<2x64xf32>
    %253 = arith.truncf %252 : vector<2x64xf32> to vector<2x64xbf16>
    %c0_194 = arith.constant 0 : index
    %c0_195 = arith.constant 0 : index
    %254 = vector.load %arg7[%c0_194, %c0_195] : memref<64x512xbf16, #tpu.memory_space<vmem>>, vector<64x512xbf16>
    %cst_196 = arith.constant dense<0.000000e+00> : vector<2x512xf32>
    %255 = tpu.matmul %253, %254, %cst_196 {dimension_numbers = #tpu.dot_dimension_numbers<[1], [0], [0], [1], [0, 0, 1, 1], [], []>} : vector<2x64xbf16>, vector<64x512xbf16>, vector<2x512xf32> -> vector<2x512xf32>
    %c0_197 = arith.constant 0 : index
    %c0_198 = arith.constant 0 : index
    %256 = vector.load %arg8[%c0_197, %c0_198] : memref<1x512xf32, #tpu.memory_space<vmem>>, vector<1x512xf32>
    %257 = vector.broadcast %256 : vector<1x512xf32> to vector<2x512xf32>
    %258 = arith.addf %255, %257 : vector<2x512xf32>
    %cst_199 = arith.constant 0.000000e+00 : f32
    %259 = vector.broadcast %cst_199 : f32 to vector<2x512xf32>
    %260 = arith.maximumf %258, %259 : vector<2x512xf32>
    %261 = arith.truncf %260 : vector<2x512xf32> to vector<2x512xbf16>
    %c0_200 = arith.constant 0 : index
    %c0_201 = arith.constant 0 : index
    %262 = vector.load %arg9[%c0_200, %c0_201] : memref<512x128xbf16, #tpu.memory_space<vmem>>, vector<512x128xbf16>
    %cst_202 = arith.constant dense<0.000000e+00> : vector<2x128xf32>
    %263 = tpu.matmul %261, %262, %cst_202 {dimension_numbers = #tpu.dot_dimension_numbers<[1], [0], [0], [1], [0, 0, 1, 1], [], []>} : vector<2x512xbf16>, vector<512x128xbf16>, vector<2x128xf32> -> vector<2x128xf32>
    %c0_203 = arith.constant 0 : index
    %c0_204 = arith.constant 0 : index
    %264 = vector.load %arg10[%c0_203, %c0_204] : memref<1x128xf32, #tpu.memory_space<vmem>>, vector<1x128xf32>
    %265 = vector.broadcast %264 : vector<1x128xf32> to vector<2x128xf32>
    %266 = arith.addf %263, %265 : vector<2x128xf32>
    %c0_205 = arith.constant 0 : index
    %c0_206 = arith.constant 0 : index
    %267 = vector.load %arg11[%c0_205, %c0_206] : memref<2x128xf32, #tpu.memory_space<vmem>>, vector<2x128xf32>
    tpu.vector_store %arg11[%c0_205, %c0_206], %266 {strides = array<i32>} : memref<2x128xf32, #tpu.memory_space<vmem>>, vector<2x128xf32>,
    return
  }
}

</mosaic_0001>

<llo_original>
// kernel: deep_q_forward.1
$region0: #{deep_q_forward.1}
  #allocation0 [shape = 'u32[]', space=smem, size = 0x4, offset = 0x4, fixed_abs, tag = 'smem constant byte address 0x4 - core index']
  #allocation1 [shape = 'u32[144,128]{1,0:T(1,128)}', space=vmem, size = 0x12000, scoped, tag = 'internal scratch']
  #allocation2 [shape = 'bf16[18,64]{1,0:T(8,128)(2,1)}', space=vmem, size = 0x1800, scoped, tag = 'scratch operand']
  %s0 = inlined_call_operand.vmem [shape: bf16[16,18,256], index: 0, kind: input, shape index: {}]
  %s1 = inlined_call_operand.vmem [shape: bf16[256,32], index: 1, kind: input, shape index: {}]
  %s2 = inlined_call_operand.vmem [shape: f32[1,32], index: 2, kind: input, shape index: {}]
  %s3 = inlined_call_operand.vmem [shape: bf16[16,32,64], index: 3, kind: input, shape index: {}]
  %s4 = inlined_call_operand.vmem [shape: f32[1,64], index: 4, kind: input, shape index: {}]
  %s5 = inlined_call_operand.vmem [shape: bf16[9,64,64], index: 5, kind: input, shape index: {}]
  %s6 = inlined_call_operand.vmem [shape: f32[1,64], index: 6, kind: input, shape index: {}]
  %s7 = inlined_call_operand.vmem [shape: bf16[64,512], index: 7, kind: input, shape index: {}]
  %s8 = inlined_call_operand.vmem [shape: f32[1,512], index: 8, kind: input, shape index: {}]
  %s9 = inlined_call_operand.vmem [shape: bf16[512,128], index: 9, kind: input, shape index: {}]
  %s10 = inlined_call_operand.vmem [shape: f32[1,128], index: 10, kind: input, shape index: {}]
  %s11 = inlined_call_operand.hbm [shape: f32[2,128], index: 11, kind: output, shape index: {}]
  %s12 = sld [smem:[#allocation0]]
  $region54: #{deep_q_forward.1} parent=0
    _
  %s14 = ssub.s32 1, %s12
  %s15 = scalar_select 0, %s14, %s12
  $region1: #{deep_q_forward.1} parent=0
    #allocation3 [shape = 'u8[1024]{0}', space=vmem, size = 0x400, scoped, tag = 'output window, operand 0, single buffered']
    #allocation4 [shape = 's32[1]{0}', space=sflag, size = 0x4, scoped, tag = 'scoped memory for deep_q_forward.1']
    %16 = vsyncpa [#allocation4], 0
    // Predicated region
    $region2: #{deep_q_forward.1} parent=1 // pred_check
      _
    $region3: #{deep_q_forward.1} parent=1 // pred_check_branch
      %18 = sbr.rel (0) target = $region5
    $region4: #{deep_q_forward.1} parent=1 // pred_region
      _
    $region5: #{deep_q_forward.1} parent=1 // pred_fallthru
      _
    // Predicated region
    $region6: #{deep_q_forward.1} parent=1 // pred_check
      _
    $region7: #{deep_q_forward.1} parent=1 // pred_check_branch
      %20 = sbr.rel (0) target = $region9
    $region8: #{deep_q_forward.1} parent=1 // pred_region
      _
    $region9: #{deep_q_forward.1} parent=1 // pred_fallthru
      _
    // Predicated region
    $region10: #{deep_q_forward.1} parent=1 // pred_check
      _
    $region11: #{deep_q_forward.1} parent=1 // pred_check_branch
      %22 = sbr.rel (0) target = $region13
    $region12: #{deep_q_forward.1} parent=1 // pred_region
      _
    $region13: #{deep_q_forward.1} parent=1 // pred_fallthru
      _
    // Predicated region
    $region14: #{deep_q_forward.1} parent=1 // pred_check
      _
    $region15: #{deep_q_forward.1} parent=1 // pred_check_branch
      %24 = sbr.rel (0) target = $region17
    $region16: #{deep_q_forward.1} parent=1 // pred_region
      _
    $region17: #{deep_q_forward.1} parent=1 // pred_fallthru
      _
    // Predicated region
    $region18: #{deep_q_forward.1} parent=1 // pred_check
      _
    $region19: #{deep_q_forward.1} parent=1 // pred_check_branch
      %26 = sbr.rel (0) target = $region21
    $region20: #{deep_q_forward.1} parent=1 // pred_region
      _
    $region21: #{deep_q_forward.1} parent=1 // pred_fallthru
      _
    // Predicated region
    $region22: #{deep_q_forward.1} parent=1 // pred_check
      _
    $region23: #{deep_q_forward.1} parent=1 // pred_check_branch
      %28 = sbr.rel (0) target = $region25
    $region24: #{deep_q_forward.1} parent=1 // pred_region
      _
    $region25: #{deep_q_forward.1} parent=1 // pred_fallthru
      _
    // Predicated region
    $region26: #{deep_q_forward.1} parent=1 // pred_check
      _
    $region27: #{deep_q_forward.1} parent=1 // pred_check_branch
      %30 = sbr.rel (0) target = $region29
    $region28: #{deep_q_forward.1} parent=1 // pred_region
      _
    $region29: #{deep_q_forward.1} parent=1 // pred_fallthru
      _
    // Predicated region
    $region30: #{deep_q_forward.1} parent=1 // pred_check
      _
    $region31: #{deep_q_forward.1} parent=1 // pred_check_branch
      %32 = sbr.rel (0) target = $region33
    $region32: #{deep_q_forward.1} parent=1 // pred_region
      _
    $region33: #{deep_q_forward.1} parent=1 // pred_fallthru
      _
    // Predicated region
    $region34: #{deep_q_forward.1} parent=1 // pred_check
      _
    $region35: #{deep_q_forward.1} parent=1 // pred_check_branch
      %34 = sbr.rel (0) target = $region37
    $region36: #{deep_q_forward.1} parent=1 // pred_region
      _
    $region37: #{deep_q_forward.1} parent=1 // pred_fallthru
      _
    // Predicated region
    $region38: #{deep_q_forward.1} parent=1 // pred_check
      _
    $region39: #{deep_q_forward.1} parent=1 // pred_check_branch
      %36 = sbr.rel (0) target = $region41
    $region40: #{deep_q_forward.1} parent=1 // pred_region
      _
    $region41: #{deep_q_forward.1} parent=1 // pred_fallthru
      _
    // Predicated region
    $region42: #{deep_q_forward.1} parent=1 // pred_check
      _
    $region43: #{deep_q_forward.1} parent=1 // pred_check_branch
      %38 = sbr.rel (0) target = $region45
    $region44: #{deep_q_forward.1} parent=1 // pred_region
      _
    $region45: #{deep_q_forward.1} parent=1 // pred_fallthru
      _
    %v40 = vld [vmem:[%s1] sm:$0xf]
    %v41 = vld [vmem:[%s1 + $0x4] sm:$0xf]
    %v42 = vld [vmem:[%s1 + $0x8] sm:$0xf]
    %v43 = vld [vmem:[%s1 + $0xc] sm:$0xf]
    %v44 = vld [vmem:[%s1 + $0x10] sm:$0xf]
    %v45 = vld [vmem:[%s1 + $0x14] sm:$0xf]
    %v46 = vld [vmem:[%s1 + $0x18] sm:$0xf]
    %v47 = vld [vmem:[%s1 + $0x1c] sm:$0xf]
    %v48 = vld [vmem:[%s1 + $0x20] sm:$0xf]
    %v49 = vld [vmem:[%s1 + $0x24] sm:$0xf]
    %v50 = vld [vmem:[%s1 + $0x28] sm:$0xf]
    %v51 = vld [vmem:[%s1 + $0x2c] sm:$0xf]
    %v52 = vld [vmem:[%s1 + $0x30] sm:$0xf]
    %v53 = vld [vmem:[%s1 + $0x34] sm:$0xf]
    %v54 = vld [vmem:[%s1 + $0x38] sm:$0xf]
    %v55 = vld [vmem:[%s1 + $0x3c] sm:$0xf]
    %v56 = vld [vmem:[%s1 + $0x40] sm:$0xf]
    %v57 = vld [vmem:[%s1 + $0x44] sm:$0xf]
    %v58 = vld [vmem:[%s1 + $0x48] sm:$0xf]
    %v59 = vld [vmem:[%s1 + $0x4c] sm:$0xf]
    %v60 = vld [vmem:[%s1 + $0x50] sm:$0xf]
    %v61 = vld [vmem:[%s1 + $0x54] sm:$0xf]
    %v62 = vld [vmem:[%s1 + $0x58] sm:$0xf]
    %v63 = vld [vmem:[%s1 + $0x5c] sm:$0xf]
    %v64 = vld [vmem:[%s1 + $0x60] sm:$0xf]
    %v65 = vld [vmem:[%s1 + $0x64] sm:$0xf]
    %v66 = vld [vmem:[%s1 + $0x68] sm:$0xf]
    %v67 = vld [vmem:[%s1 + $0x6c] sm:$0xf]
    %v68 = vld [vmem:[%s1 + $0x70] sm:$0xf]
    %v69 = vld [vmem:[%s1 + $0x74] sm:$0xf]
    %v70 = vld [vmem:[%s1 + $0x78] sm:$0xf]
    %v71 = vld [vmem:[%s1 + $0x7c] sm:$0xf]
    %v72 = vld [vmem:[%s2] sm:$0x1]
    %v73 = vld [vmem:[%s0] sm:$0xff]
    %v74 = vld [vmem:[%s0 + $0x8] sm:$0xff]
    %v75 = vld [vmem:[%s0 + $0x10] sm:$0x11]
    %v77 = vlaneseq
    %v78 = vshrl.u32 %v77, 7
    %v79 = vsub.s32 0, %v78
    %v80 = vrot.slane %v72, %v79
    %v85 = vunpack.c.l.b16 %v73
    %v86 = vunpack.c.h.b16 %v73
    %v87 = vunpack.c.l.b16 %v74
    %v88 = vunpack.c.h.b16 %v74
    %v89 = vunpack.c.l.b16 %v75
    %v90 = vunpack.c.h.b16 %v75
    %v91 = vpack.c.b16 %v87, %v85
    %v92 = vpack.c.b16 %v88, %v86
    %v93 = vpack.c.b16 %v89, %v89
    %v94 = vpack.c.b16 %v90, %v90
    %v131 = vunpack.c.l.b16 %v40
    %v132 = vunpack.c.l.b16 %v41
    %v133 = vunpack.c.l.b16 %v42
    %v134 = vunpack.c.l.b16 %v43
    %v135 = vunpack.c.l.b16 %v44
    %v136 = vunpack.c.l.b16 %v45
    %v137 = vunpack.c.l.b16 %v46
    %v138 = vunpack.c.l.b16 %v47
    %v139 = vunpack.c.l.b16 %v48
    %v140 = vunpack.c.l.b16 %v49
    %v141 = vunpack.c.l.b16 %v50
    %v142 = vunpack.c.l.b16 %v51
    %v143 = vunpack.c.l.b16 %v52
    %v144 = vunpack.c.l.b16 %v53
    %v145 = vunpack.c.l.b16 %v54
    %v146 = vunpack.c.l.b16 %v55
    %v147 = vunpack.c.l.b16 %v56
    %v148 = vunpack.c.l.b16 %v57
    %v149 = vunpack.c.l.b16 %v58
    %v150 = vunpack.c.l.b16 %v59
    %v151 = vunpack.c.l.b16 %v60
    %v152 = vunpack.c.l.b16 %v61
    %v153 = vunpack.c.l.b16 %v62
    %v154 = vunpack.c.l.b16 %v63
    %v155 = vunpack.c.l.b16 %v64
    %v156 = vunpack.c.l.b16 %v65
    %v157 = vunpack.c.l.b16 %v66
    %v158 = vunpack.c.l.b16 %v67
    %v159 = vunpack.c.l.b16 %v68
    %v160 = vunpack.c.l.b16 %v69
    %v161 = vunpack.c.l.b16 %v70
    %v162 = vunpack.c.l.b16 %v71
    %v163 = vpack.c.b16 %v132, %v131
    %v164 = vpack.c.b16 %v134, %v133
    %v165 = vpack.c.b16 %v136, %v135
    %v166 = vpack.c.b16 %v138, %v137
    %v167 = vpack.c.b16 %v140, %v139
    %v168 = vpack.c.b16 %v142, %v141
    %v169 = vpack.c.b16 %v144, %v143
    %v170 = vpack.c.b16 %v146, %v145
    %v171 = vpack.c.b16 %v148, %v147
    %v172 = vpack.c.b16 %v150, %v149
    %v173 = vpack.c.b16 %v152, %v151
    %v174 = vpack.c.b16 %v154, %v153
    %v175 = vpack.c.b16 %v156, %v155
    %v176 = vpack.c.b16 %v158, %v157
    %v177 = vpack.c.b16 %v160, %v159
    %v178 = vpack.c.b16 %v162, %v161
    %195 = vmatprep.subr.bf16.mxu0 0
    %196 = vmatpush1.bf16.msra.mxu0 %v163
    %197 = vmatprep.subr.bf16.mxu0 0
    %198 = vmatpush1.bf16.msra.mxu0 %v164
    %199 = vmatprep.subr.bf16.mxu0 0
    %200 = vmatpush1.bf16.msra.mxu0 %v165
    %201 = vmatprep.subr.bf16.mxu0 0
    %202 = vmatpush1.bf16.msra.mxu0 %v166
    %203 = vmatprep.subr.bf16.mxu0 0
    %204 = vmatpush1.bf16.msra.mxu0 %v167
    %205 = vmatprep.subr.bf16.mxu0 0
    %206 = vmatpush1.bf16.msra.mxu0 %v168
    %207 = vmatprep.subr.bf16.mxu0 0
    %208 = vmatpush1.bf16.msra.mxu0 %v169
    %209 = vmatprep.subr.bf16.mxu0 0
    %210 = vmatpush1.bf16.msra.mxu0 %v170
    %211 = vmatprep.subr.bf16.mxu0 0
    %212 = vmatpush1.bf16.msra.mxu0 %v171
    %213 = vmatprep.subr.bf16.mxu0 0
    %214 = vmatpush1.bf16.msra.mxu0 %v172
    %215 = vmatprep.subr.bf16.mxu0 0
    %216 = vmatpush1.bf16.msra.mxu0 %v173
    %217 = vmatprep.subr.bf16.mxu0 0
    %218 = vmatpush1.bf16.msra.mxu0 %v174
    %219 = vmatprep.subr.bf16.mxu0 0
    %220 = vmatpush1.bf16.msra.mxu0 %v175
    %221 = vmatprep.subr.bf16.mxu0 0
    %222 = vmatpush1.bf16.msra.mxu0 %v176
    %223 = vmatprep.subr.bf16.mxu0 0
    %224 = vmatpush1.bf16.msra.mxu0 %v177
    %225 = vmatprep.subr.bf16.mxu0 0
    %226 = vmatpush1.bf16.msra.mxu0 %v178
    %227 = vmatprep.mubr.bf16.mxu0 %v92
    %228 = vmatmul.mubr.bf16.gmra.mrb[0].mxu0 %v91
    %v229 = vpop.f32.mrb[0].mxu0
    %v230 = vadd.f32 %v80, %v229
    %v231 = vpop.f32.mrb[0].mxu0
    %v232 = vpop.f32.mrb[0].mxu0
    %v233 = vadd.f32 %v80, %v232
    %v234 = vpop.f32.mrb[0].mxu0
    %235 = vmatprep.mubr.bf16.mxu0 %v94
    %236 = vmatmul.mubr.bf16.gmra.mrb[0].mxu0 %v93
    %v237 = vpop.f32.mrb[0].mxu0
    %v238 = vadd.f32 %v80, %v237
    %v239 = vpop.f32.mrb[0].mxu0
    %v240 = vpop.f32.mrb[0].mxu0
    %v241 = vpop.f32.mrb[0].mxu0
    %242 = vdwg.mxu0
    %v243 = vmax.f32 %v230, 0.0
    %v244 = vmax.f32 %v233, 0.0
    %v245 = vmax.f32 %v238, 0.0
    %v246 = vpack.c.bf16 %v244, %v243
    %v247 = vpack.c.bf16 %v245, %v245
    %v248 = vld [vmem:[%s3] sm:$0xf]
    %v249 = vld [vmem:[%s3 + $0x4] sm:$0xf]
    %v250 = vld [vmem:[%s3 + $0x8] sm:$0xf]
    %v251 = vld [vmem:[%s3 + $0xc] sm:$0xf]
    %s252 = scalar_lea.vmem %s0, 24
    %v253 = vld [vmem:[%s252] sm:$0xff]
    %v254 = vld [vmem:[%s252 + $0x8] sm:$0xff]
    %v255 = vld [vmem:[%s252 + $0x10] sm:$0x11]
    %v259 = vunpack.c.l.b16 %v253
    %v260 = vunpack.c.h.b16 %v253
    %v261 = vunpack.c.l.b16 %v254
    %v262 = vunpack.c.h.b16 %v254
    %v263 = vunpack.c.l.b16 %v255
    %v264 = vunpack.c.h.b16 %v255
    %v265 = vpack.c.b16 %v261, %v259
    %v266 = vpack.c.b16 %v262, %v260
    %v267 = vpack.c.b16 %v263, %v263
    %v268 = vpack.c.b16 %v264, %v264
    %273 = vmatprep.subr.bf16.mxu0 0
    %274 = vmatpush1.bf16.msra.mxu0 %v163
    %275 = vmatprep.subr.bf16.mxu0 0
    %276 = vmatpush1.bf16.msra.mxu0 %v164
    %277 = vmatprep.subr.bf16.mxu0 0
    %278 = vmatpush1.bf16.msra.mxu0 %v165
    %279 = vmatprep.subr.bf16.mxu0 0
    %280 = vmatpush1.bf16.msra.mxu0 %v166
    %281 = vmatprep.subr.bf16.mxu0 0
    %282 = vmatpush1.bf16.msra.mxu0 %v167
    %283 = vmatprep.subr.bf16.mxu0 0
    %284 = vmatpush1.bf16.msra.mxu0 %v168
    %285 = vmatprep.subr.bf16.mxu0 0
    %286 = vmatpush1.bf16.msra.mxu0 %v169
    %287 = vmatprep.subr.bf16.mxu0 0
    %288 = vmatpush1.bf16.msra.mxu0 %v170
    %289 = vmatprep.subr.bf16.mxu0 0
    %290 = vmatpush1.bf16.msra.mxu0 %v171
    %291 = vmatprep.subr.bf16.mxu0 0
    %292 = vmatpush1.bf16.msra.mxu0 %v172
    %293 = vmatprep.subr.bf16.mxu0 0
    %294 = vmatpush1.bf16.msra.mxu0 %v173
    %295 = vmatprep.subr.bf16.mxu0 0
    %296 = vmatpush1.bf16.msra.mxu0 %v174
    %297 = vmatprep.subr.bf16.mxu0 0
    %298 = vmatpush1.bf16.msra.mxu0 %v175
    %299 = vmatprep.subr.bf16.mxu0 0
    %300 = vmatpush1.bf16.msra.mxu0 %v176
    %301 = vmatprep.subr.bf16.mxu0 0
    %302 = vmatpush1.bf16.msra.mxu0 %v177
    %303 = vmatprep.subr.bf16.mxu0 0
    %304 = vmatpush1.bf16.msra.mxu0 %v178
    %305 = vmatprep.mubr.bf16.mxu0 %v266
    %306 = vmatmul.mubr.bf16.gmra.mrb[0].mxu0 %v265
    %v307 = vpop.f32.mrb[0].mxu0
    %v308 = vadd.f32 %v80, %v307
    %v309 = vpop.f32.mrb[0].mxu0
    %v310 = vpop.f32.mrb[0].mxu0
    %v311 = vadd.f32 %v80, %v310
    %v312 = vpop.f32.mrb[0].mxu0
    %313 = vmatprep.mubr.bf16.mxu0 %v268
    %314 = vmatmul.mubr.bf16.gmra.mrb[0].mxu0 %v267
    %v315 = vpop.f32.mrb[0].mxu0
    %v316 = vadd.f32 %v80, %v315
    %v317 = vpop.f32.mrb[0].mxu0
    %v318 = vpop.f32.mrb[0].mxu0
    %v319 = vpop.f32.mrb[0].mxu0
    %320 = vdwg.mxu0
    %v321 = vmax.f32 %v308, 0.0
    %v322 = vmax.f32 %v311, 0.0
    %v323 = vmax.f32 %v316, 0.0
    %v324 = vpack.c.bf16 %v322, %v321
    %v325 = vpack.c.bf16 %v323, %v323
    %s326 = scalar_lea.vmem %s3, 16
    %v327 = vld [vmem:[%s326] sm:$0xf]
    %v328 = vld [vmem:[%s326 + $0x4] sm:$0xf]
    %v329 = vld [vmem:[%s326 + $0x8] sm:$0xf]
    %v330 = vld [vmem:[%s326 + $0xc] sm:$0xf]
    %v335 = vunpack.c.l.b16 %v327
    %v336 = vunpack.c.l.b16 %v328
    %v337 = vunpack.c.l.b16 %v329
    %v338 = vunpack.c.l.b16 %v330
    %v339 = vpack.c.b16 %v336, %v335
    %v340 = vpack.c.b16 %v338, %v337
    %vm343 = vcmask 261120
    %v345 = vsel %vm343, %v324, 0
    %v348 = vsel %vm343, %v325, 0
    %350 = vmatprep.subr.bf16.mxu0 0
    %351 = vmatpush1.bf16.msra.mxu0 %v339
    %352 = vmatprep.subr.bf16.mxu0 0
    %353 = vmatpush1.bf16.msra.mxu0 %v340
    %354 = vmatprep.subr.bf16.mxu0 0
    %355 = vmatpush1.bf16.msra.mxu0 0
    %356 = vmatprep.subr.bf16.mxu0 0
    %357 = vmatpush1.bf16.msra.mxu0 0
    %358 = vmatprep.subr.bf16.mxu0 0
    %359 = vmatpush1.bf16.msra.mxu0 0
    %360 = vmatprep.subr.bf16.mxu0 0
    %361 = vmatpush1.bf16.msra.mxu0 0
    %362 = vmatprep.subr.bf16.mxu0 0
    %363 = vmatpush1.bf16.msra.mxu0 0
    %364 = vmatprep.subr.bf16.mxu0 0
    %365 = vmatpush1.bf16.msra.mxu0 0
    %366 = vmatprep.subr.bf16.mxu0 0
    %367 = vmatpush1.bf16.msra.mxu0 0
    %368 = vmatprep.subr.bf16.mxu0 0
    %369 = vmatpush1.bf16.msra.mxu0 0
    %370 = vmatprep.subr.bf16.mxu0 0
    %371 = vmatpush1.bf16.msra.mxu0 0
    %372 = vmatprep.subr.bf16.mxu0 0
    %373 = vmatpush1.bf16.msra.mxu0 0
    %374 = vmatprep.subr.bf16.mxu0 0
    %375 = vmatpush1.bf16.msra.mxu0 0
    %376 = vmatprep.subr.bf16.mxu0 0
    %377 = vmatpush1.bf16.msra.mxu0 0
    %378 = vmatprep.subr.bf16.mxu0 0
    %379 = vmatpush1.bf16.msra.mxu0 0
    %380 = vmatprep.subr.bf16.mxu0 0
    %381 = vmatpush1.bf16.msra.mxu0 0
    %382 = vmatprep.mubr.bf16.mxu0 0
    %383 = vmatmul.mubr.bf16.gmra.mrb[0].mxu0 %v345
    %v384 = vpop.f32.mrb[0].mxu0
    %v385 = vadd.f32 0.0, %v384
    %v386 = vpop.f32.mrb[0].mxu0
    %v387 = vpop.f32.mrb[0].mxu0
    %v388 = vadd.f32 0.0, %v387
    %v389 = vpop.f32.mrb[0].mxu0
    %390 = vmatprep.mubr.bf16.mxu0 0
    %391 = vmatmul.mubr.bf16.gmra.mrb[0].mxu0 %v348
    %v392 = vpop.f32.mrb[0].mxu0
    %v393 = vadd.f32 0.0, %v392
    %v394 = vpop.f32.mrb[0].mxu0
    %v395 = vpop.f32.mrb[0].mxu0
    %v396 = vpop.f32.mrb[0].mxu0
    %397 = vdwg.mxu0
    %v402 = vunpack.c.l.b16 %v248
    %v403 = vunpack.c.l.b16 %v249
    %v404 = vunpack.c.l.b16 %v250
    %v405 = vunpack.c.l.b16 %v251
    %v406 = vpack.c.b16 %v403, %v402
    %v407 = vpack.c.b16 %v405, %v404
    %v411 = vsel %vm343, %v246, 0
    %v414 = vsel %vm343, %v247, 0
    %416 = vmatprep.subr.bf16.mxu0 0
    %417 = vmatpush1.bf16.msra.mxu0 %v406
    %418 = vmatprep.subr.bf16.mxu0 0
    %419 = vmatpush1.bf16.msra.mxu0 %v407
    %420 = vmatprep.subr.bf16.mxu0 0
    %421 = vmatpush1.bf16.msra.mxu0 0
    %422 = vmatprep.subr.bf16.mxu0 0
    %423 = vmatpush1.bf16.msra.mxu0 0
    %424 = vmatprep.subr.bf16.mxu0 0
    %425 = vmatpush1.bf16.msra.mxu0 0
    %426 = vmatprep.subr.bf16.mxu0 0
    %427 = vmatpush1.bf16.msra.mxu0 0
    %428 = vmatprep.subr.bf16.mxu0 0
    %429 = vmatpush1.bf16.msra.mxu0 0
    %430 = vmatprep.subr.bf16.mxu0 0
    %431 = vmatpush1.bf16.msra.mxu0 0
    %432 = vmatprep.subr.bf16.mxu0 0
    %433 = vmatpush1.bf16.msra.mxu0 0
    %434 = vmatprep.subr.bf16.mxu0 0
    %435 = vmatpush1.bf16.msra.mxu0 0
    %436 = vmatprep.subr.bf16.mxu0 0
    %437 = vmatpush1.bf16.msra.mxu0 0
    %438 = vmatprep.subr.bf16.mxu0 0
    %439 = vmatpush1.bf16.msra.mxu0 0
    %440 = vmatprep.subr.bf16.mxu0 0
    %441 = vmatpush1.bf16.msra.mxu0 0
    %442 = vmatprep.subr.bf16.mxu0 0
    %443 = vmatpush1.bf16.msra.mxu0 0
    %444 = vmatprep.subr.bf16.mxu0 0
    %445 = vmatpush1.bf16.msra.mxu0 0
    %446 = vmatprep.subr.bf16.mxu0 0
    %447 = vmatpush1.bf16.msra.mxu0 0
    %448 = vmatprep.mubr.bf16.mxu0 0
    %449 = vmatmul.mubr.bf16.gmra.mrb[0].mxu0 %v411
    %v450 = vpop.f32.mrb[0].mxu0
    %v451 = vadd.f32 %v385, %v450
    %v452 = vpop.f32.mrb[0].mxu0
    %v453 = vpop.f32.mrb[0].mxu0
    %v454 = vadd.f32 %v388, %v453
    %v455 = vpop.f32.mrb[0].mxu0
    %456 = vmatprep.mubr.bf16.mxu0 0
    %457 = vmatmul.mubr.bf16.gmra.mrb[0].mxu0 %v414
    %v458 = vpop.f32.mrb[0].mxu0
    %v459 = vadd.f32 %v393, %v458
    %v460 = vpop.f32.mrb[0].mxu0
    %v461 = vpop.f32.mrb[0].mxu0
    %v462 = vpop.f32.mrb[0].mxu0
    %463 = vdwg.mxu0
    %s464 = scalar_lea.vmem %s0, 48
    %v465 = vld [vmem:[%s464] sm:$0xff]
    %v466 = vld [vmem:[%s464 + $0x8] sm:$0xff]
    %v467 = vld [vmem:[%s464 + $0x10] sm:$0x11]
    %v471 = vunpack.c.l.b16 %v465
    %v472 = vunpack.c.h.b16 %v465
    %v473 = vunpack.c.l.b16 %v466
    %v474 = vunpack.c.h.b16 %v466
    %v475 = vunpack.c.l.b16 %v467
    %v476 = vunpack.c.h.b16 %v467
    %v477 = vpack.c.b16 %v473, %v471
    %v478 = vpack.c.b16 %v474, %v472
    %v479 = vpack.c.b16 %v475, %v475
    %v480 = vpack.c.b16 %v476, %v476
    %485 = vmatprep.subr.bf16.mxu0 0
    %486 = vmatpush1.bf16.msra.mxu0 %v163
    %487 = vmatprep.subr.bf16.mxu0 0
    %488 = vmatpush1.bf16.msra.mxu0 %v164
    %489 = vmatprep.subr.bf16.mxu0 0
    %490 = vmatpush1.bf16.msra.mxu0 %v165
    %491 = vmatprep.subr.bf16.mxu0 0
    %492 = vmatpush1.bf16.msra.mxu0 %v166
    %493 = vmatprep.subr.bf16.mxu0 0
    %494 = vmatpush1.bf16.msra.mxu0 %v167
    %495 = vmatprep.subr.bf16.mxu0 0
    %496 = vmatpush1.bf16.msra.mxu0 %v168
    %497 = vmatprep.subr.bf16.mxu0 0
    %498 = vmatpush1.bf16.msra.mxu0 %v169
    %499 = vmatprep.subr.bf16.mxu0 0
    %500 = vmatpush1.bf16.msra.mxu0 %v170
    %501 = vmatprep.subr.bf16.mxu0 0
    %502 = vmatpush1.bf16.msra.mxu0 %v171
    %503 = vmatprep.subr.bf16.mxu0 0
    %504 = vmatpush1.bf16.msra.mxu0 %v172
    %505 = vmatprep.subr.bf16.mxu0 0
    %506 = vmatpush1.bf16.msra.mxu0 %v173
    %507 = vmatprep.subr.bf16.mxu0 0
    %508 = vmatpush1.bf16.msra.mxu0 %v174
    %509 = vmatprep.subr.bf16.mxu0 0
    %510 = vmatpush1.bf16.msra.mxu0 %v175
    %511 = vmatprep.subr.bf16.mxu0 0
    %512 = vmatpush1.bf16.msra.mxu0 %v176
    %513 = vmatprep.subr.bf16.mxu0 0
    %514 = vmatpush1.bf16.msra.mxu0 %v177
    %515 = vmatprep.subr.bf16.mxu0 0
    %516 = vmatpush1.bf16.msra.mxu0 %v178
    %517 = vmatprep.mubr.bf16.mxu0 %v478
    %518 = vmatmul.mubr.bf16.gmra.mrb[0].mxu0 %v477
    %v519 = vpop.f32.mrb[0].mxu0
    %v520 = vadd.f32 %v80, %v519
    %v521 = vpop.f32.mrb[0].mxu0
    %v522 = vpop.f32.mrb[0].mxu0
    %v523 = vadd.f32 %v80, %v522
    %v524 = vpop.f32.mrb[0].mxu0
    %525 = vmatprep.mubr.bf16.mxu0 %v480
    %526 = vmatmul.mubr.bf16.gmra.mrb[0].mxu0 %v479
    %v527 = vpop.f32.mrb[0].mxu0
    %v528 = vadd.f32 %v80, %v527
    %v529 = vpop.f32.mrb[0].mxu0
    %v530 = vpop.f32.mrb[0].mxu0
    %v531 = vpop.f32.mrb[0].mxu0
    %532 = vdwg.mxu0
    %v533 = vmax.f32 %v520, 0.0
    %v534 = vmax.f32 %v523, 0.0
    %v535 = vmax.f32 %v528, 0.0
    %v536 = vpack.c.bf16 %v534, %v533
    %v537 = vpack.c.bf16 %v535, %v535
    %s538 = scalar_lea.vmem %s3, 32
    %v539 = vld [vmem:[%s538] sm:$0xf]
    %v540 = vld [vmem:[%s538 + $0x4] sm:$0xf]
    %v541 = vld [vmem:[%s538 + $0x8] sm:$0xf]
    %v542 = vld [vmem:[%s538 + $0xc] sm:$0xf]
    %v547 = vunpack.c.l.b16 %v539
    %v548 = vunpack.c.l.b16 %v540
    %v549 = vunpack.c.l.b16 %v541
    %v550 = vunpack.c.l.b16 %v542
    %v551 = vpack.c.b16 %v548, %v547
    %v552 = vpack.c.b16 %v550, %v549
    %v556 = vsel %vm343, %v536, 0
    %v559 = vsel %vm343, %v537, 0
    %561 = vmatprep.subr.bf16.mxu0 0
    %562 = vmatpush1.bf16.msra.mxu0 %v551
    %563 = vmatprep.subr.bf16.mxu0 0
    %564 = vmatpush1.bf16.msra.mxu0 %v552
    %565 = vmatprep.subr.bf16.mxu0 0
    %566 = vmatpush1.bf16.msra.mxu0 0
    %567 = vmatprep.subr.bf16.mxu0 0
    %568 = vmatpush1.bf16.msra.mxu0 0
    %569 = vmatprep.subr.bf16.mxu0 0
    %570 = vmatpush1.bf16.msra.mxu0 0
    %571 = vmatprep.subr.bf16.mxu0 0
    %572 = vmatpush1.bf16.msra.mxu0 0
    %573 = vmatprep.subr.bf16.mxu0 0
    %574 = vmatpush1.bf16.msra.mxu0 0
    %575 = vmatprep.subr.bf16.mxu0 0
    %576 = vmatpush1.bf16.msra.mxu0 0
    %577 = vmatprep.subr.bf16.mxu0 0
    %578 = vmatpush1.bf16.msra.mxu0 0
    %579 = vmatprep.subr.bf16.mxu0 0
    %580 = vmatpush1.bf16.msra.mxu0 0
    %581 = vmatprep.subr.bf16.mxu0 0
    %582 = vmatpush1.bf16.msra.mxu0 0
    %583 = vmatprep.subr.bf16.mxu0 0
    %584 = vmatpush1.bf16.msra.mxu0 0
    %585 = vmatprep.subr.bf16.mxu0 0
    %586 = vmatpush1.bf16.msra.mxu0 0
    %587 = vmatprep.subr.bf16.mxu0 0
    %588 = vmatpush1.bf16.msra.mxu0 0
    %589 = vmatprep.subr.bf16.mxu0 0
    %590 = vmatpush1.bf16.msra.mxu0 0
    %591 = vmatprep.subr.bf16.mxu0 0
    %592 = vmatpush1.bf16.msra.mxu0 0
    %593 = vmatprep.mubr.bf16.mxu0 0
    %594 = vmatmul.mubr.bf16.gmra.mrb[0].mxu0 %v556
    %v595 = vpop.f32.mrb[0].mxu0
    %v596 = vadd.f32 0.0, %v595
    %v597 = vpop.f32.mrb[0].mxu0
    %v598 = vpop.f32.mrb[0].mxu0
    %v599 = vadd.f32 0.0, %v598
    %v600 = vpop.f32.mrb[0].mxu0
    %601 = vmatprep.mubr.bf16.mxu0 0
    %602 = vmatmul.mubr.bf16.gmra.mrb[0].mxu0 %v559
    %v603 = vpop.f32.mrb[0].mxu0
    %v604 = vadd.f32 0.0, %v603
    %v605 = vpop.f32.mrb[0].mxu0
    %v606 = vpop.f32.mrb[0].mxu0
    %v607 = vpop.f32.mrb[0].mxu0
    %608 = vdwg.mxu0
    %v609 = vadd.f32 %v451, %v596
    %v610 = vadd.f32 %v454, %v599
    %v611 = vadd.f32 %v459, %v604
    %s612 = scalar_lea.vmem %s0, 72
    %v613 = vld [vmem:[%s612] sm:$0xff]
    %v614 = vld [vmem:[%s612 + $0x8] sm:$0xff]
    %v615 = vld [vmem:[%s612 + $0x10] sm:$0x11]
    %v619 = vunpack.c.l.b16 %v613
    %v620 = vunpack.c.h.b16 %v613
    %v621 = vunpack.c.l.b16 %v614
    %v622 = vunpack.c.h.b16 %v614
    %v623 = vunpack.c.l.b16 %v615
    %v624 = vunpack.c.h.b16 %v615
    %v625 = vpack.c.b16 %v621, %v619
    %v626 = vpack.c.b16 %v622, %v620
    %v627 = vpack.c.b16 %v623, %v623
    %v628 = vpack.c.b16 %v624, %v624
    %633 = vmatprep.subr.bf16.mxu0 0
    %634 = vmatpush1.bf16.msra.mxu0 %v163
    %635 = vmatprep.subr.bf16.mxu0 0
    %636 = vmatpush1.bf16.msra.mxu0 %v164
    %637 = vmatprep.subr.bf16.mxu0 0
    %638 = vmatpush1.bf16.msra.mxu0 %v165
    %639 = vmatprep.subr.bf16.mxu0 0
    %640 = vmatpush1.bf16.msra.mxu0 %v166
    %641 = vmatprep.subr.bf16.mxu0 0
    %642 = vmatpush1.bf16.msra.mxu0 %v167
    %643 = vmatprep.subr.bf16.mxu0 0
    %644 = vmatpush1.bf16.msra.mxu0 %v168
    %645 = vmatprep.subr.bf16.mxu0 0
    %646 = vmatpush1.bf16.msra.mxu0 %v169
    %647 = vmatprep.subr.bf16.mxu0 0
    %648 = vmatpush1.bf16.msra.mxu0 %v170
    %649 = vmatprep.subr.bf16.mxu0 0
    %650 = vmatpush1.bf16.msra.mxu0 %v171
    %651 = vmatprep.subr.bf16.mxu0 0
    %652 = vmatpush1.bf16.msra.mxu0 %v172
    %653 = vmatprep.subr.bf16.mxu0 0
    %654 = vmatpush1.bf16.msra.mxu0 %v173
    %655 = vmatprep.subr.bf16.mxu0 0
    %656 = vmatpush1.bf16.msra.mxu0 %v174
    %657 = vmatprep.subr.bf16.mxu0 0
    %658 = vmatpush1.bf16.msra.mxu0 %v175
    %659 = vmatprep.subr.bf16.mxu0 0
    %660 = vmatpush1.bf16.msra.mxu0 %v176
    %661 = vmatprep.subr.bf16.mxu0 0
    %662 = vmatpush1.bf16.msra.mxu0 %v177
    %663 = vmatprep.subr.bf16.mxu0 0
    %664 = vmatpush1.bf16.msra.mxu0 %v178
    %665 = vmatprep.mubr.bf16.mxu0 %v626
    %666 = vmatmul.mubr.bf16.gmra.mrb[0].mxu0 %v625
    %v667 = vpop.f32.mrb[0].mxu0
    %v668 = vadd.f32 %v80, %v667
    %v669 = vpop.f32.mrb[0].mxu0
    %v670 = vpop.f32.mrb[0].mxu0
    %v671 = vadd.f32 %v80, %v670
    %v672 = vpop.f32.mrb[0].mxu0
    %673 = vmatprep.mubr.bf16.mxu0 %v628
    %674 = vmatmul.mubr.bf16.gmra.mrb[0].mxu0 %v627
    %v675 = vpop.f32.mrb[0].mxu0
    %v676 = vadd.f32 %v80, %v675
    %v677 = vpop.f32.mrb[0].mxu0
    %v678 = vpop.f32.mrb[0].mxu0
    %v679 = vpop.f32.mrb[0].mxu0
    %680 = vdwg.mxu0
    %v681 = vmax.f32 %v668, 0.0
    %v682 = vmax.f32 %v671, 0.0
    %v683 = vmax.f32 %v676, 0.0
    %v684 = vpack.c.bf16 %v682, %v681
    %v685 = vpack.c.bf16 %v683, %v683
    %s686 = scalar_lea.vmem %s3, 48
    %v687 = vld [vmem:[%s686] sm:$0xf]
    %v688 = vld [vmem:[%s686 + $0x4] sm:$0xf]
    %v689 = vld [vmem:[%s686 + $0x8] sm:$0xf]
    %v690 = vld [vmem:[%s686 + $0xc] sm:$0xf]
    %v695 = vunpack.c.l.b16 %v687
    %v696 = vunpack.c.l.b16 %v688
    %v697 = vunpack.c.l.b16 %v689
    %v698 = vunpack.c.l.b16 %v690
    %v699 = vpack.c.b16 %v696, %v695
    %v700 = vpack.c.b16 %v698, %v697
    %v704 = vsel %vm343, %v684, 0
    %v707 = vsel %vm343, %v685, 0
    %709 = vmatprep.subr.bf16.mxu0 0
    %710 = vmatpush1.bf16.msra.mxu0 %v699
    %711 = vmatprep.subr.bf16.mxu0 0
    %712 = vmatpush1.bf16.msra.mxu0 %v700
    %713 = vmatprep.subr.bf16.mxu0 0
    %714 = vmatpush1.bf16.msra.mxu0 0
    %715 = vmatprep.subr.bf16.mxu0 0
    %716 = vmatpush1.bf16.msra.mxu0 0
    %717 = vmatprep.subr.bf16.mxu0 0
    %718 = vmatpush1.bf16.msra.mxu0 0
    %719 = vmatprep.subr.bf16.mxu0 0
    %720 = vmatpush1.bf16.msra.mxu0 0
    %721 = vmatprep.subr.bf16.mxu0 0
    %722 = vmatpush1.bf16.msra.mxu0 0
    %723 = vmatprep.subr.bf16.mxu0 0
    %724 = vmatpush1.bf16.msra.mxu0 0
    %725 = vmatprep.subr.bf16.mxu0 0
    %726 = vmatpush1.bf16.msra.mxu0 0
    %727 = vmatprep.subr.bf16.mxu0 0
    %728 = vmatpush1.bf16.msra.mxu0 0
    %729 = vmatprep.subr.bf16.mxu0 0
    %730 = vmatpush1.bf16.msra.mxu0 0
    %731 = vmatprep.subr.bf16.mxu0 0
    %732 = vmatpush1.bf16.msra.mxu0 0
    %733 = vmatprep.subr.bf16.mxu0 0
    %734 = vmatpush1.bf16.msra.mxu0 0
    %735 = vmatprep.subr.bf16.mxu0 0
    %736 = vmatpush1.bf16.msra.mxu0 0
    %737 = vmatprep.subr.bf16.mxu0 0
    %738 = vmatpush1.bf16.msra.mxu0 0
    %739 = vmatprep.subr.bf16.mxu0 0
    %740 = vmatpush1.bf16.msra.mxu0 0
    %741 = vmatprep.mubr.bf16.mxu0 0
    %742 = vmatmul.mubr.bf16.gmra.mrb[0].mxu0 %v704
    %v743 = vpop.f32.mrb[0].mxu0
    %v744 = vadd.f32 0.0, %v743
    %v745 = vpop.f32.mrb[0].mxu0
    %v746 = vpop.f32.mrb[0].mxu0
    %v747 = vadd.f32 0.0, %v746
    %v748 = vpop.f32.mrb[0].mxu0
    %749 = vmatprep.mubr.bf16.mxu0 0
    %750 = vmatmul.mubr.bf16.gmra.mrb[0].mxu0 %v707
    %v751 = vpop.f32.mrb[0].mxu0
    %v752 = vadd.f32 0.0, %v751
    %v753 = vpop.f32.mrb[0].mxu0
    %v754 = vpop.f32.mrb[0].mxu0
    %v755 = vpop.f32.mrb[0].mxu0
    %756 = vdwg.mxu0
    %v757 = vadd.f32 %v609, %v744
    %v758 = vadd.f32 %v610, %v747
    %v759 = vadd.f32 %v611, %v752
    %s760 = scalar_lea.vmem %s0, 96
    %v761 = vld [vmem:[%s760] sm:$0xff]
    %v762 = vld [vmem:[%s760 + $0x8] sm:$0xff]
    %v763 = vld [vmem:[%s760 + $0x10] sm:$0x11]
    %v767 = vunpack.c.l.b16 %v761
    %v768 = vunpack.c.h.b16 %v761
    %v769 = vunpack.c.l.b16 %v762
    %v770 = vunpack.c.h.b16 %v762
    %v771 = vunpack.c.l.b16 %v763
    %v772 = vunpack.c.h.b16 %v763
    %v773 = vpack.c.b16 %v769, %v767
    %v774 = vpack.c.b16 %v770, %v768
    %v775 = vpack.c.b16 %v771, %v771
    %v776 = vpack.c.b16 %v772, %v772
    %781 = vmatprep.subr.bf16.mxu0 0
    %782 = vmatpush1.bf16.msra.mxu0 %v163
    %783 = vmatprep.subr.bf16.mxu0 0
    %784 = vmatpush1.bf16.msra.mxu0 %v164
    %785 = vmatprep.subr.bf16.mxu0 0
    %786 = vmatpush1.bf16.msra.mxu0 %v165
    %787 = vmatprep.subr.bf16.mxu0 0
    %788 = vmatpush1.bf16.msra.mxu0 %v166
    %789 = vmatprep.subr.bf16.mxu0 0
    %790 = vmatpush1.bf16.msra.mxu0 %v167
    %791 = vmatprep.subr.bf16.mxu0 0
    %792 = vmatpush1.bf16.msra.mxu0 %v168
    %793 = vmatprep.subr.bf16.mxu0 0
    %794 = vmatpush1.bf16.msra.mxu0 %v169
    %795 = vmatprep.subr.bf16.mxu0 0
    %796 = vmatpush1.bf16.msra.mxu0 %v170
    %797 = vmatprep.subr.bf16.mxu0 0
    %798 = vmatpush1.bf16.msra.mxu0 %v171
    %799 = vmatprep.subr.bf16.mxu0 0
    %800 = vmatpush1.bf16.msra.mxu0 %v172
    %801 = vmatprep.subr.bf16.mxu0 0
    %802 = vmatpush1.bf16.msra.mxu0 %v173
    %803 = vmatprep.subr.bf16.mxu0 0
    %804 = vmatpush1.bf16.msra.mxu0 %v174
    %805 = vmatprep.subr.bf16.mxu0 0
    %806 = vmatpush1.bf16.msra.mxu0 %v175
    %807 = vmatprep.subr.bf16.mxu0 0
    %808 = vmatpush1.bf16.msra.mxu0 %v176
    %809 = vmatprep.subr.bf16.mxu0 0
    %810 = vmatpush1.bf16.msra.mxu0 %v177
    %811 = vmatprep.subr.bf16.mxu0 0
    %812 = vmatpush1.bf16.msra.mxu0 %v178
    %813 = vmatprep.mubr.bf16.mxu0 %v774
    %814 = vmatmul.mubr.bf16.gmra.mrb[0].mxu0 %v773
    %v815 = vpop.f32.mrb[0].mxu0
    %v816 = vadd.f32 %v80, %v815
    %v817 = vpop.f32.mrb[0].mxu0
    %v818 = vpop.f32.mrb[0].mxu0
    %v819 = vadd.f32 %v80, %v818
    %v820 = vpop.f32.mrb[0].mxu0
    %821 = vmatprep.mubr.bf16.mxu0 %v776
    %822 = vmatmul.mubr.bf16.gmra.mrb[0].mxu0 %v775
    %v823 = vpop.f32.mrb[0].mxu0
    %v824 = vadd.f32 %v80, %v823
    %v825 = vpop.f32.mrb[0].mxu0
    %v826 = vpop.f32.mrb[0].mxu0
    %v827 = vpop.f32.mrb[0].mxu0
    %828 = vdwg.mxu0
    %v829 = vmax.f32 %v816, 0.0
    %v830 = vmax.f32 %v819, 0.0
    %v831 = vmax.f32 %v824, 0.0
    %v832 = vpack.c.bf16 %v830, %v829
    %v833 = vpack.c.bf16 %v831, %v831
    %s834 = scalar_lea.vmem %s3, 64
    %v835 = vld [vmem:[%s834] sm:$0xf]
    %v836 = vld [vmem:[%s834 + $0x4] sm:$0xf]
    %v837 = vld [vmem:[%s834 + $0x8] sm:$0xf]
    %v838 = vld [vmem:[%s834 + $0xc] sm:$0xf]
    %v843 = vunpack.c.l.b16 %v835
    %v844 = vunpack.c.l.b16 %v836
    %v845 = vunpack.c.l.b16 %v837
    %v846 = vunpack.c.l.b16 %v838
    %v847 = vpack.c.b16 %v844, %v843
    %v848 = vpack.c.b16 %v846, %v845
    %v852 = vsel %vm343, %v832, 0
    %v855 = vsel %vm343, %v833, 0
    %857 = vmatprep.subr.bf16.mxu0 0
    %858 = vmatpush1.bf16.msra.mxu0 %v847
    %859 = vmatprep.subr.bf16.mxu0 0
    %860 = vmatpush1.bf16.msra.mxu0 %v848
    %861 = vmatprep.subr.bf16.mxu0 0
    %862 = vmatpush1.bf16.msra.mxu0 0
    %863 = vmatprep.subr.bf16.mxu0 0
    %864 = vmatpush1.bf16.msra.mxu0 0
    %865 = vmatprep.subr.bf16.mxu0 0
    %866 = vmatpush1.bf16.msra.mxu0 0
    %867 = vmatprep.subr.bf16.mxu0 0
    %868 = vmatpush1.bf16.msra.mxu0 0
    %869 = vmatprep.subr.bf16.mxu0 0
    %870 = vmatpush1.bf16.msra.mxu0 0
    %871 = vmatprep.subr.bf16.mxu0 0
    %872 = vmatpush1.bf16.msra.mxu0 0
    %873 = vmatprep.subr.bf16.mxu0 0
    %874 = vmatpush1.bf16.msra.mxu0 0
    %875 = vmatprep.subr.bf16.mxu0 0
    %876 = vmatpush1.bf16.msra.mxu0 0
    %877 = vmatprep.subr.bf16.mxu0 0
    %878 = vmatpush1.bf16.msra.mxu0 0
    %879 = vmatprep.subr.bf16.mxu0 0
    %880 = vmatpush1.bf16.msra.mxu0 0
    %881 = vmatprep.subr.bf16.mxu0 0
    %882 = vmatpush1.bf16.msra.mxu0 0
    %883 = vmatprep.subr.bf16.mxu0 0
    %884 = vmatpush1.bf16.msra.mxu0 0
    %885 = vmatprep.subr.bf16.mxu0 0
    %886 = vmatpush1.bf16.msra.mxu0 0
    %887 = vmatprep.subr.bf16.mxu0 0
    %888 = vmatpush1.bf16.msra.mxu0 0
    %889 = vmatprep.mubr.bf16.mxu0 0
    %890 = vmatmul.mubr.bf16.gmra.mrb[0].mxu0 %v852
    %v891 = vpop.f32.mrb[0].mxu0
    %v892 = vadd.f32 0.0, %v891
    %v893 = vpop.f32.mrb[0].mxu0
    %v894 = vpop.f32.mrb[0].mxu0
    %v895 = vadd.f32 0.0, %v894
    %v896 = vpop.f32.mrb[0].mxu0
    %897 = vmatprep.mubr.bf16.mxu0 0
    %898 = vmatmul.mubr.bf16.gmra.mrb[0].mxu0 %v855
    %v899 = vpop.f32.mrb[0].mxu0
    %v900 = vadd.f32 0.0, %v899
    %v901 = vpop.f32.mrb[0].mxu0
    %v902 = vpop.f32.mrb[0].mxu0
    %v903 = vpop.f32.mrb[0].mxu0
    %904 = vdwg.mxu0
    %v905 = vadd.f32 %v757, %v892
    %v906 = vadd.f32 %v758, %v895
    %v907 = vadd.f32 %v759, %v900
    %s908 = scalar_lea.vmem %s0, 120
    %v909 = vld [vmem:[%s908] sm:$0xff]
    %v910 = vld [vmem:[%s908 + $0x8] sm:$0xff]
    %v911 = vld [vmem:[%s908 + $0x10] sm:$0x11]
    %v915 = vunpack.c.l.b16 %v909
    %v916 = vunpack.c.h.b16 %v909
    %v917 = vunpack.c.l.b16 %v910
    %v918 = vunpack.c.h.b16 %v910
    %v919 = vunpack.c.l.b16 %v911
    %v920 = vunpack.c.h.b16 %v911
    %v921 = vpack.c.b16 %v917, %v915
    %v922 = vpack.c.b16 %v918, %v916
    %v923 = vpack.c.b16 %v919, %v919
    %v924 = vpack.c.b16 %v920, %v920
    %929 = vmatprep.subr.bf16.mxu0 0
    %930 = vmatpush1.bf16.msra.mxu0 %v163
    %931 = vmatprep.subr.bf16.mxu0 0
    %932 = vmatpush1.bf16.msra.mxu0 %v164
    %933 = vmatprep.subr.bf16.mxu0 0
    %934 = vmatpush1.bf16.msra.mxu0 %v165
    %935 = vmatprep.subr.bf16.mxu0 0
    %936 = vmatpush1.bf16.msra.mxu0 %v166
    %937 = vmatprep.subr.bf16.mxu0 0
    %938 = vmatpush1.bf16.msra.mxu0 %v167
    %939 = vmatprep.subr.bf16.mxu0 0
    %940 = vmatpush1.bf16.msra.mxu0 %v168
    %941 = vmatprep.subr.bf16.mxu0 0
    %942 = vmatpush1.bf16.msra.mxu0 %v169
    %943 = vmatprep.subr.bf16.mxu0 0
    %944 = vmatpush1.bf16.msra.mxu0 %v170
    %945 = vmatprep.subr.bf16.mxu0 0
    %946 = vmatpush1.bf16.msra.mxu0 %v171
    %947 = vmatprep.subr.bf16.mxu0 0
    %948 = vmatpush1.bf16.msra.mxu0 %v172
    %949 = vmatprep.subr.bf16.mxu0 0
    %950 = vmatpush1.bf16.msra.mxu0 %v173
    %951 = vmatprep.subr.bf16.mxu0 0
    %952 = vmatpush1.bf16.msra.mxu0 %v174
    %953 = vmatprep.subr.bf16.mxu0 0
    %954 = vmatpush1.bf16.msra.mxu0 %v175
    %955 = vmatprep.subr.bf16.mxu0 0
    %956 = vmatpush1.bf16.msra.mxu0 %v176
    %957 = vmatprep.subr.bf16.mxu0 0
    %958 = vmatpush1.bf16.msra.mxu0 %v177
    %959 = vmatprep.subr.bf16.mxu0 0
    %960 = vmatpush1.bf16.msra.mxu0 %v178
    %961 = vmatprep.mubr.bf16.mxu0 %v922
    %962 = vmatmul.mubr.bf16.gmra.mrb[0].mxu0 %v921
    %v963 = vpop.f32.mrb[0].mxu0
    %v964 = vadd.f32 %v80, %v963
    %v965 = vpop.f32.mrb[0].mxu0
    %v966 = vpop.f32.mrb[0].mxu0
    %v967 = vadd.f32 %v80, %v966
    %v968 = vpop.f32.mrb[0].mxu0
    %969 = vmatprep.mubr.bf16.mxu0 %v924
    %970 = vmatmul.mubr.bf16.gmra.mrb[0].mxu0 %v923
    %v971 = vpop.f32.mrb[0].mxu0
    %v972 = vadd.f32 %v80, %v971
    %v973 = vpop.f32.mrb[0].mxu0
    %v974 = vpop.f32.mrb[0].mxu0
    %v975 = vpop.f32.mrb[0].mxu0
    %976 = vdwg.mxu0
    %v977 = vmax.f32 %v964, 0.0
    %v978 = vmax.f32 %v967, 0.0
    %v979 = vmax.f32 %v972, 0.0
    %v980 = vpack.c.bf16 %v978, %v977
    %v981 = vpack.c.bf16 %v979, %v979
    %s982 = scalar_lea.vmem %s3, 80
    %v983 = vld [vmem:[%s982] sm:$0xf]
    %v984 = vld [vmem:[%s982 + $0x4] sm:$0xf]
    %v985 = vld [vmem:[%s982 + $0x8] sm:$0xf]
    %v986 = vld [vmem:[%s982 + $0xc] sm:$0xf]
    %v991 = vunpack.c.l.b16 %v983
    %v992 = vunpack.c.l.b16 %v984
    %v993 = vunpack.c.l.b16 %v985
    %v994 = vunpack.c.l.b16 %v986
    %v995 = vpack.c.b16 %v992, %v991
    %v996 = vpack.c.b16 %v994, %v993
    %v1000 = vsel %vm343, %v980, 0
    %v1003 = vsel %vm343, %v981, 0
    %1005 = vmatprep.subr.bf16.mxu0 0
    %1006 = vmatpush1.bf16.msra.mxu0 %v995
    %1007 = vmatprep.subr.bf16.mxu0 0
    %1008 = vmatpush1.bf16.msra.mxu0 %v996
    %1009 = vmatprep.subr.bf16.mxu0 0
    %1010 = vmatpush1.bf16.msra.mxu0 0
    %1011 = vmatprep.subr.bf16.mxu0 0
    %1012 = vmatpush1.bf16.msra.mxu0 0
    %1013 = vmatprep.subr.bf16.mxu0 0
    %1014 = vmatpush1.bf16.msra.mxu0 0
    %1015 = vmatprep.subr.bf16.mxu0 0
    %1016 = vmatpush1.bf16.msra.mxu0 0
    %1017 = vmatprep.subr.bf16.mxu0 0
    %1018 = vmatpush1.bf16.msra.mxu0 0
    %1019 = vmatprep.subr.bf16.mxu0 0
    %1020 = vmatpush1.bf16.msra.mxu0 0
    %1021 = vmatprep.subr.bf16.mxu0 0
    %1022 = vmatpush1.bf16.msra.mxu0 0
    %1023 = vmatprep.subr.bf16.mxu0 0
    %1024 = vmatpush1.bf16.msra.mxu0 0
    %1025 = vmatprep.subr.bf16.mxu0 0
    %1026 = vmatpush1.bf16.msra.mxu0 0
    %1027 = vmatprep.subr.bf16.mxu0 0
    %1028 = vmatpush1.bf16.msra.mxu0 0
    %1029 = vmatprep.subr.bf16.mxu0 0
    %1030 = vmatpush1.bf16.msra.mxu0 0
    %1031 = vmatprep.subr.bf16.mxu0 0
    %1032 = vmatpush1.bf16.msra.mxu0 0
    %1033 = vmatprep.subr.bf16.mxu0 0
    %1034 = vmatpush1.bf16.msra.mxu0 0
    %1035 = vmatprep.subr.bf16.mxu0 0
    %1036 = vmatpush1.bf16.msra.mxu0 0
    %1037 = vmatprep.mubr.bf16.mxu0 0
    %1038 = vmatmul.mubr.bf16.gmra.mrb[0].mxu0 %v1000
    %v1039 = vpop.f32.mrb[0].mxu0
    %v1040 = vadd.f32 0.0, %v1039
    %v1041 = vpop.f32.mrb[0].mxu0
    %v1042 = vpop.f32.mrb[0].mxu0
    %v1043 = vadd.f32 0.0, %v1042
    %v1044 = vpop.f32.mrb[0].mxu0
    %1045 = vmatprep.mubr.bf16.mxu0 0
    %1046 = vmatmul.mubr.bf16.gmra.mrb[0].mxu0 %v1003
    %v1047 = vpop.f32.mrb[0].mxu0
    %v1048 = vadd.f32 0.0, %v1047
    %v1049 = vpop.f32.mrb[0].mxu0
    %v1050 = vpop.f32.mrb[0].mxu0
    %v1051 = vpop.f32.mrb[0].mxu0
    %1052 = vdwg.mxu0
    %v1053 = vadd.f32 %v905, %v1040
    %v1054 = vadd.f32 %v906, %v1043
    %v1055 = vadd.f32 %v907, %v1048
    %s1056 = scalar_lea.vmem %s0, 144
    %v1057 = vld [vmem:[%s1056] sm:$0xff]
    %v1058 = vld [vmem:[%s1056 + $0x8] sm:$0xff]
    %v1059 = vld [vmem:[%s1056 + $0x10] sm:$0x11]
    %v1063 = vunpack.c.l.b16 %v1057
    %v1064 = vunpack.c.h.b16 %v1057
    %v1065 = vunpack.c.l.b16 %v1058
    %v1066 = vunpack.c.h.b16 %v1058
    %v1067 = vunpack.c.l.b16 %v1059
    %v1068 = vunpack.c.h.b16 %v1059
    %v1069 = vpack.c.b16 %v1065, %v1063
    %v1070 = vpack.c.b16 %v1066, %v1064
    %v1071 = vpack.c.b16 %v1067, %v1067
    %v1072 = vpack.c.b16 %v1068, %v1068
    %1077 = vmatprep.subr.bf16.mxu0 0
    %1078 = vmatpush1.bf16.msra.mxu0 %v163
    %1079 = vmatprep.subr.bf16.mxu0 0
    %1080 = vmatpush1.bf16.msra.mxu0 %v164
    %1081 = vmatprep.subr.bf16.mxu0 0
    %1082 = vmatpush1.bf16.msra.mxu0 %v165
    %1083 = vmatprep.subr.bf16.mxu0 0
    %1084 = vmatpush1.bf16.msra.mxu0 %v166
    %1085 = vmatprep.subr.bf16.mxu0 0
    %1086 = vmatpush1.bf16.msra.mxu0 %v167
    %1087 = vmatprep.subr.bf16.mxu0 0
    %1088 = vmatpush1.bf16.msra.mxu0 %v168
    %1089 = vmatprep.subr.bf16.mxu0 0
    %1090 = vmatpush1.bf16.msra.mxu0 %v169
    %1091 = vmatprep.subr.bf16.mxu0 0
    %1092 = vmatpush1.bf16.msra.mxu0 %v170
    %1093 = vmatprep.subr.bf16.mxu0 0
    %1094 = vmatpush1.bf16.msra.mxu0 %v171
    %1095 = vmatprep.subr.bf16.mxu0 0
    %1096 = vmatpush1.bf16.msra.mxu0 %v172
    %1097 = vmatprep.subr.bf16.mxu0 0
    %1098 = vmatpush1.bf16.msra.mxu0 %v173
    %1099 = vmatprep.subr.bf16.mxu0 0
    %1100 = vmatpush1.bf16.msra.mxu0 %v174
    %1101 = vmatprep.subr.bf16.mxu0 0
    %1102 = vmatpush1.bf16.msra.mxu0 %v175
    %1103 = vmatprep.subr.bf16.mxu0 0
    %1104 = vmatpush1.bf16.msra.mxu0 %v176
    %1105 = vmatprep.subr.bf16.mxu0 0
    %1106 = vmatpush1.bf16.msra.mxu0 %v177
    %1107 = vmatprep.subr.bf16.mxu0 0
    %1108 = vmatpush1.bf16.msra.mxu0 %v178
    %1109 = vmatprep.mubr.bf16.mxu0 %v1070
    %1110 = vmatmul.mubr.bf16.gmra.mrb[0].mxu0 %v1069
    %v1111 = vpop.f32.mrb[0].mxu0
    %v1112 = vadd.f32 %v80, %v1111
    %v1113 = vpop.f32.mrb[0].mxu0
    %v1114 = vpop.f32.mrb[0].mxu0
    %v1115 = vadd.f32 %v80, %v1114
    %v1116 = vpop.f32.mrb[0].mxu0
    %1117 = vmatprep.mubr.bf16.mxu0 %v1072
    %1118 = vmatmul.mubr.bf16.gmra.mrb[0].mxu0 %v1071
    %v1119 = vpop.f32.mrb[0].mxu0
    %v1120 = vadd.f32 %v80, %v1119
    %v1121 = vpop.f32.mrb[0].mxu0
    %v1122 = vpop.f32.mrb[0].mxu0
    %v1123 = vpop.f32.mrb[0].mxu0
    %1124 = vdwg.mxu0
    %v1125 = vmax.f32 %v1112, 0.0
    %v1126 = vmax.f32 %v1115, 0.0
    %v1127 = vmax.f32 %v1120, 0.0
    %v1128 = vpack.c.bf16 %v1126, %v1125
    %v1129 = vpack.c.bf16 %v1127, %v1127
    %s1130 = scalar_lea.vmem %s3, 96
    %v1131 = vld [vmem:[%s1130] sm:$0xf]
    %v1132 = vld [vmem:[%s1130 + $0x4] sm:$0xf]
    %v1133 = vld [vmem:[%s1130 + $0x8] sm:$0xf]
    %v1134 = vld [vmem:[%s1130 + $0xc] sm:$0xf]
    %v1139 = vunpack.c.l.b16 %v1131
    %v1140 = vunpack.c.l.b16 %v1132
    %v1141 = vunpack.c.l.b16 %v1133
    %v1142 = vunpack.c.l.b16 %v1134
    %v1143 = vpack.c.b16 %v1140, %v1139
    %v1144 = vpack.c.b16 %v1142, %v1141
    %v1148 = vsel %vm343, %v1128, 0
    %v1151 = vsel %vm343, %v1129, 0
    %1153 = vmatprep.subr.bf16.mxu0 0
    %1154 = vmatpush1.bf16.msra.mxu0 %v1143
    %1155 = vmatprep.subr.bf16.mxu0 0
    %1156 = vmatpush1.bf16.msra.mxu0 %v1144
    %1157 = vmatprep.subr.bf16.mxu0 0
    %1158 = vmatpush1.bf16.msra.mxu0 0
    %1159 = vmatprep.subr.bf16.mxu0 0
    %1160 = vmatpush1.bf16.msra.mxu0 0
    %1161 = vmatprep.subr.bf16.mxu0 0
    %1162 = vmatpush1.bf16.msra.mxu0 0
    %1163 = vmatprep.subr.bf16.mxu0 0
    %1164 = vmatpush1.bf16.msra.mxu0 0
    %1165 = vmatprep.subr.bf16.mxu0 0
    %1166 = vmatpush1.bf16.msra.mxu0 0
    %1167 = vmatprep.subr.bf16.mxu0 0
    %1168 = vmatpush1.bf16.msra.mxu0 0
    %1169 = vmatprep.subr.bf16.mxu0 0
    %1170 = vmatpush1.bf16.msra.mxu0 0
    %1171 = vmatprep.subr.bf16.mxu0 0
    %1172 = vmatpush1.bf16.msra.mxu0 0
    %1173 = vmatprep.subr.bf16.mxu0 0
    %1174 = vmatpush1.bf16.msra.mxu0 0
    %1175 = vmatprep.subr.bf16.mxu0 0
    %1176 = vmatpush1.bf16.msra.mxu0 0
    %1177 = vmatprep.subr.bf16.mxu0 0
    %1178 = vmatpush1.bf16.msra.mxu0 0
    %1179 = vmatprep.subr.bf16.mxu0 0
    %1180 = vmatpush1.bf16.msra.mxu0 0
    %1181 = vmatprep.subr.bf16.mxu0 0
    %1182 = vmatpush1.bf16.msra.mxu0 0
    %1183 = vmatprep.subr.bf16.mxu0 0
    %1184 = vmatpush1.bf16.msra.mxu0 0
    %1185 = vmatprep.mubr.bf16.mxu0 0
    %1186 = vmatmul.mubr.bf16.gmra.mrb[0].mxu0 %v1148
    %v1187 = vpop.f32.mrb[0].mxu0
    %v1188 = vadd.f32 0.0, %v1187
    %v1189 = vpop.f32.mrb[0].mxu0
    %v1190 = vpop.f32.mrb[0].mxu0
    %v1191 = vadd.f32 0.0, %v1190
    %v1192 = vpop.f32.mrb[0].mxu0
    %1193 = vmatprep.mubr.bf16.mxu0 0
    %1194 = vmatmul.mubr.bf16.gmra.mrb[0].mxu0 %v1151
    %v1195 = vpop.f32.mrb[0].mxu0
    %v1196 = vadd.f32 0.0, %v1195
    %v1197 = vpop.f32.mrb[0].mxu0
    %v1198 = vpop.f32.mrb[0].mxu0
    %v1199 = vpop.f32.mrb[0].mxu0
    %1200 = vdwg.mxu0
    %v1201 = vadd.f32 %v1053, %v1188
    %v1202 = vadd.f32 %v1054, %v1191
    %v1203 = vadd.f32 %v1055, %v1196
    %s1204 = scalar_lea.vmem %s0, 168
    %v1205 = vld [vmem:[%s1204] sm:$0xff]
    %v1206 = vld [vmem:[%s1204 + $0x8] sm:$0xff]
    %v1207 = vld [vmem:[%s1204 + $0x10] sm:$0x11]
    %v1211 = vunpack.c.l.b16 %v1205
    %v1212 = vunpack.c.h.b16 %v1205
    %v1213 = vunpack.c.l.b16 %v1206
    %v1214 = vunpack.c.h.b16 %v1206
    %v1215 = vunpack.c.l.b16 %v1207
    %v1216 = vunpack.c.h.b16 %v1207
    %v1217 = vpack.c.b16 %v1213, %v1211
    %v1218 = vpack.c.b16 %v1214, %v1212
    %v1219 = vpack.c.b16 %v1215, %v1215
    %v1220 = vpack.c.b16 %v1216, %v1216
    %1225 = vmatprep.subr.bf16.mxu0 0
    %1226 = vmatpush1.bf16.msra.mxu0 %v163
    %1227 = vmatprep.subr.bf16.mxu0 0
    %1228 = vmatpush1.bf16.msra.mxu0 %v164
    %1229 = vmatprep.subr.bf16.mxu0 0
    %1230 = vmatpush1.bf16.msra.mxu0 %v165
    %1231 = vmatprep.subr.bf16.mxu0 0
    %1232 = vmatpush1.bf16.msra.mxu0 %v166
    %1233 = vmatprep.subr.bf16.mxu0 0
    %1234 = vmatpush1.bf16.msra.mxu0 %v167
    %1235 = vmatprep.subr.bf16.mxu0 0
    %1236 = vmatpush1.bf16.msra.mxu0 %v168
    %1237 = vmatprep.subr.bf16.mxu0 0
    %1238 = vmatpush1.bf16.msra.mxu0 %v169
    %1239 = vmatprep.subr.bf16.mxu0 0
    %1240 = vmatpush1.bf16.msra.mxu0 %v170
    %1241 = vmatprep.subr.bf16.mxu0 0
    %1242 = vmatpush1.bf16.msra.mxu0 %v171
    %1243 = vmatprep.subr.bf16.mxu0 0
    %1244 = vmatpush1.bf16.msra.mxu0 %v172
    %1245 = vmatprep.subr.bf16.mxu0 0
    %1246 = vmatpush1.bf16.msra.mxu0 %v173
    %1247 = vmatprep.subr.bf16.mxu0 0
    %1248 = vmatpush1.bf16.msra.mxu0 %v174
    %1249 = vmatprep.subr.bf16.mxu0 0
    %1250 = vmatpush1.bf16.msra.mxu0 %v175
    %1251 = vmatprep.subr.bf16.mxu0 0
    %1252 = vmatpush1.bf16.msra.mxu0 %v176
    %1253 = vmatprep.subr.bf16.mxu0 0
    %1254 = vmatpush1.bf16.msra.mxu0 %v177
    %1255 = vmatprep.subr.bf16.mxu0 0
    %1256 = vmatpush1.bf16.msra.mxu0 %v178
    %1257 = vmatprep.mubr.bf16.mxu0 %v1218
    %1258 = vmatmul.mubr.bf16.gmra.mrb[0].mxu0 %v1217
    %v1259 = vpop.f32.mrb[0].mxu0
    %v1260 = vadd.f32 %v80, %v1259
    %v1261 = vpop.f32.mrb[0].mxu0
    %v1262 = vpop.f32.mrb[0].mxu0
    %v1263 = vadd.f32 %v80, %v1262
    %v1264 = vpop.f32.mrb[0].mxu0
    %1265 = vmatprep.mubr.bf16.mxu0 %v1220
    %1266 = vmatmul.mubr.bf16.gmra.mrb[0].mxu0 %v1219
    %v1267 = vpop.f32.mrb[0].mxu0
    %v1268 = vadd.f32 %v80, %v1267
    %v1269 = vpop.f32.mrb[0].mxu0
    %v1270 = vpop.f32.mrb[0].mxu0
    %v1271 = vpop.f32.mrb[0].mxu0
    %1272 = vdwg.mxu0
    %v1273 = vmax.f32 %v1260, 0.0
    %v1274 = vmax.f32 %v1263, 0.0
    %v1275 = vmax.f32 %v1268, 0.0
    %v1276 = vpack.c.bf16 %v1274, %v1273
    %v1277 = vpack.c.bf16 %v1275, %v1275
    %s1278 = scalar_lea.vmem %s3, 112
    %v1279 = vld [vmem:[%s1278] sm:$0xf]
    %v1280 = vld [vmem:[%s1278 + $0x4] sm:$0xf]
    %v1281 = vld [vmem:[%s1278 + $0x8] sm:$0xf]
    %v1282 = vld [vmem:[%s1278 + $0xc] sm:$0xf]
    %v1287 = vunpack.c.l.b16 %v1279
    %v1288 = vunpack.c.l.b16 %v1280
    %v1289 = vunpack.c.l.b16 %v1281
    %v1290 = vunpack.c.l.b16 %v1282
    %v1291 = vpack.c.b16 %v1288, %v1287
    %v1292 = vpack.c.b16 %v1290, %v1289
    %v1296 = vsel %vm343, %v1276, 0
    %v1299 = vsel %vm343, %v1277, 0
    %1301 = vmatprep.subr.bf16.mxu0 0
    %1302 = vmatpush1.bf16.msra.mxu0 %v1291
    %1303 = vmatprep.subr.bf16.mxu0 0
    %1304 = vmatpush1.bf16.msra.mxu0 %v1292
    %1305 = vmatprep.subr.bf16.mxu0 0
    %1306 = vmatpush1.bf16.msra.mxu0 0
    %1307 = vmatprep.subr.bf16.mxu0 0
    %1308 = vmatpush1.bf16.msra.mxu0 0
    %1309 = vmatprep.subr.bf16.mxu0 0
    %1310 = vmatpush1.bf16.msra.mxu0 0
    %1311 = vmatprep.subr.bf16.mxu0 0
    %1312 = vmatpush1.bf16.msra.mxu0 0
    %1313 = vmatprep.subr.bf16.mxu0 0
    %1314 = vmatpush1.bf16.msra.mxu0 0
    %1315 = vmatprep.subr.bf16.mxu0 0
    %1316 = vmatpush1.bf16.msra.mxu0 0
    %1317 = vmatprep.subr.bf16.mxu0 0
    %1318 = vmatpush1.bf16.msra.mxu0 0
    %1319 = vmatprep.subr.bf16.mxu0 0
    %1320 = vmatpush1.bf16.msra.mxu0 0
    %1321 = vmatprep.subr.bf16.mxu0 0
    %1322 = vmatpush1.bf16.msra.mxu0 0
    %1323 = vmatprep.subr.bf16.mxu0 0
    %1324 = vmatpush1.bf16.msra.mxu0 0
    %1325 = vmatprep.subr.bf16.mxu0 0
    %1326 = vmatpush1.bf16.msra.mxu0 0
    %1327 = vmatprep.subr.bf16.mxu0 0
    %1328 = vmatpush1.bf16.msra.mxu0 0
    %1329 = vmatprep.subr.bf16.mxu0 0
    %1330 = vmatpush1.bf16.msra.mxu0 0
    %1331 = vmatprep.subr.bf16.mxu0 0
    %1332 = vmatpush1.bf16.msra.mxu0 0
    %1333 = vmatprep.mubr.bf16.mxu0 0
    %1334 = vmatmul.mubr.bf16.gmra.mrb[0].mxu0 %v1296
    %v1335 = vpop.f32.mrb[0].mxu0
    %v1336 = vadd.f32 0.0, %v1335
    %v1337 = vpop.f32.mrb[0].mxu0
    %v1338 = vpop.f32.mrb[0].mxu0
    %v1339 = vadd.f32 0.0, %v1338
    %v1340 = vpop.f32.mrb[0].mxu0
    %1341 = vmatprep.mubr.bf16.mxu0 0
    %1342 = vmatmul.mubr.bf16.gmra.mrb[0].mxu0 %v1299
    %v1343 = vpop.f32.mrb[0].mxu0
    %v1344 = vadd.f32 0.0, %v1343
    %v1345 = vpop.f32.mrb[0].mxu0
    %v1346 = vpop.f32.mrb[0].mxu0
    %v1347 = vpop.f32.mrb[0].mxu0
    %1348 = vdwg.mxu0
    %v1349 = vadd.f32 %v1201, %v1336
    %v1350 = vadd.f32 %v1202, %v1339
    %v1351 = vadd.f32 %v1203, %v1344
    %s1352 = scalar_lea.vmem %s0, 192
    %v1353 = vld [vmem:[%s1352] sm:$0xff]
    %v1354 = vld [vmem:[%s1352 + $0x8] sm:$0xff]
    %v1355 = vld [vmem:[%s1352 + $0x10] sm:$0x11]
    %v1359 = vunpack.c.l.b16 %v1353
    %v1360 = vunpack.c.h.b16 %v1353
    %v1361 = vunpack.c.l.b16 %v1354
    %v1362 = vunpack.c.h.b16 %v1354
    %v1363 = vunpack.c.l.b16 %v1355
    %v1364 = vunpack.c.h.b16 %v1355
    %v1365 = vpack.c.b16 %v1361, %v1359
    %v1366 = vpack.c.b16 %v1362, %v1360
    %v1367 = vpack.c.b16 %v1363, %v1363
    %v1368 = vpack.c.b16 %v1364, %v1364
    %1373 = vmatprep.subr.bf16.mxu0 0
    %1374 = vmatpush1.bf16.msra.mxu0 %v163
    %1375 = vmatprep.subr.bf16.mxu0 0
    %1376 = vmatpush1.bf16.msra.mxu0 %v164
    %1377 = vmatprep.subr.bf16.mxu0 0
    %1378 = vmatpush1.bf16.msra.mxu0 %v165
    %1379 = vmatprep.subr.bf16.mxu0 0
    %1380 = vmatpush1.bf16.msra.mxu0 %v166
    %1381 = vmatprep.subr.bf16.mxu0 0
    %1382 = vmatpush1.bf16.msra.mxu0 %v167
    %1383 = vmatprep.subr.bf16.mxu0 0
    %1384 = vmatpush1.bf16.msra.mxu0 %v168
    %1385 = vmatprep.subr.bf16.mxu0 0
    %1386 = vmatpush1.bf16.msra.mxu0 %v169
    %1387 = vmatprep.subr.bf16.mxu0 0
    %1388 = vmatpush1.bf16.msra.mxu0 %v170
    %1389 = vmatprep.subr.bf16.mxu0 0
    %1390 = vmatpush1.bf16.msra.mxu0 %v171
    %1391 = vmatprep.subr.bf16.mxu0 0
    %1392 = vmatpush1.bf16.msra.mxu0 %v172
    %1393 = vmatprep.subr.bf16.mxu0 0
    %1394 = vmatpush1.bf16.msra.mxu0 %v173
    %1395 = vmatprep.subr.bf16.mxu0 0
    %1396 = vmatpush1.bf16.msra.mxu0 %v174
    %1397 = vmatprep.subr.bf16.mxu0 0
    %1398 = vmatpush1.bf16.msra.mxu0 %v175
    %1399 = vmatprep.subr.bf16.mxu0 0
    %1400 = vmatpush1.bf16.msra.mxu0 %v176
    %1401 = vmatprep.subr.bf16.mxu0 0
    %1402 = vmatpush1.bf16.msra.mxu0 %v177
    %1403 = vmatprep.subr.bf16.mxu0 0
    %1404 = vmatpush1.bf16.msra.mxu0 %v178
    %1405 = vmatprep.mubr.bf16.mxu0 %v1366
    %1406 = vmatmul.mubr.bf16.gmra.mrb[0].mxu0 %v1365
    %v1407 = vpop.f32.mrb[0].mxu0
    %v1408 = vadd.f32 %v80, %v1407
    %v1409 = vpop.f32.mrb[0].mxu0
    %v1410 = vpop.f32.mrb[0].mxu0
    %v1411 = vadd.f32 %v80, %v1410
    %v1412 = vpop.f32.mrb[0].mxu0
    %1413 = vmatprep.mubr.bf16.mxu0 %v1368
    %1414 = vmatmul.mubr.bf16.gmra.mrb[0].mxu0 %v1367
    %v1415 = vpop.f32.mrb[0].mxu0
    %v1416 = vadd.f32 %v80, %v1415
    %v1417 = vpop.f32.mrb[0].mxu0
    %v1418 = vpop.f32.mrb[0].mxu0
    %v1419 = vpop.f32.mrb[0].mxu0
    %1420 = vdwg.mxu0
    %v1421 = vmax.f32 %v1408, 0.0
    %v1422 = vmax.f32 %v1411, 0.0
    %v1423 = vmax.f32 %v1416, 0.0
    %v1424 = vpack.c.bf16 %v1422, %v1421
    %v1425 = vpack.c.bf16 %v1423, %v1423
    %s1426 = scalar_lea.vmem %s3, 128
    %v1427 = vld [vmem:[%s1426] sm:$0xf]
    %v1428 = vld [vmem:[%s1426 + $0x4] sm:$0xf]
    %v1429 = vld [vmem:[%s1426 + $0x8] sm:$0xf]
    %v1430 = vld [vmem:[%s1426 + $0xc] sm:$0xf]
    %v1435 = vunpack.c.l.b16 %v1427
    %v1436 = vunpack.c.l.b16 %v1428
    %v1437 = vunpack.c.l.b16 %v1429
    %v1438 = vunpack.c.l.b16 %v1430
    %v1439 = vpack.c.b16 %v1436, %v1435
    %v1440 = vpack.c.b16 %v1438, %v1437
    %v1444 = vsel %vm343, %v1424, 0
    %v1447 = vsel %vm343, %v1425, 0
    %1449 = vmatprep.subr.bf16.mxu0 0
    %1450 = vmatpush1.bf16.msra.mxu0 %v1439
    %1451 = vmatprep.subr.bf16.mxu0 0
    %1452 = vmatpush1.bf16.msra.mxu0 %v1440
    %1453 = vmatprep.subr.bf16.mxu0 0
    %1454 = vmatpush1.bf16.msra.mxu0 0
    %1455 = vmatprep.subr.bf16.mxu0 0
    %1456 = vmatpush1.bf16.msra.mxu0 0
    %1457 = vmatprep.subr.bf16.mxu0 0
    %1458 = vmatpush1.bf16.msra.mxu0 0
    %1459 = vmatprep.subr.bf16.mxu0 0
    %1460 = vmatpush1.bf16.msra.mxu0 0
    %1461 = vmatprep.subr.bf16.mxu0 0
    %1462 = vmatpush1.bf16.msra.mxu0 0
    %1463 = vmatprep.subr.bf16.mxu0 0
    %1464 = vmatpush1.bf16.msra.mxu0 0
    %1465 = vmatprep.subr.bf16.mxu0 0
    %1466 = vmatpush1.bf16.msra.mxu0 0
    %1467 = vmatprep.subr.bf16.mxu0 0
    %1468 = vmatpush1.bf16.msra.mxu0 0
    %1469 = vmatprep.subr.bf16.mxu0 0
    %1470 = vmatpush1.bf16.msra.mxu0 0
    %1471 = vmatprep.subr.bf16.mxu0 0
    %1472 = vmatpush1.bf16.msra.mxu0 0
    %1473 = vmatprep.subr.bf16.mxu0 0
    %1474 = vmatpush1.bf16.msra.mxu0 0
    %1475 = vmatprep.subr.bf16.mxu0 0
    %1476 = vmatpush1.bf16.msra.mxu0 0
    %1477 = vmatprep.subr.bf16.mxu0 0
    %1478 = vmatpush1.bf16.msra.mxu0 0
    %1479 = vmatprep.subr.bf16.mxu0 0
    %1480 = vmatpush1.bf16.msra.mxu0 0
    %1481 = vmatprep.mubr.bf16.mxu0 0
    %1482 = vmatmul.mubr.bf16.gmra.mrb[0].mxu0 %v1444
    %v1483 = vpop.f32.mrb[0].mxu0
    %v1484 = vadd.f32 0.0, %v1483
    %v1485 = vpop.f32.mrb[0].mxu0
    %v1486 = vpop.f32.mrb[0].mxu0
    %v1487 = vadd.f32 0.0, %v1486
    %v1488 = vpop.f32.mrb[0].mxu0
    %1489 = vmatprep.mubr.bf16.mxu0 0
    %1490 = vmatmul.mubr.bf16.gmra.mrb[0].mxu0 %v1447
    %v1491 = vpop.f32.mrb[0].mxu0
    %v1492 = vadd.f32 0.0, %v1491
    %v1493 = vpop.f32.mrb[0].mxu0
    %v1494 = vpop.f32.mrb[0].mxu0
    %v1495 = vpop.f32.mrb[0].mxu0
    %1496 = vdwg.mxu0
    %v1497 = vadd.f32 %v1349, %v1484
    %v1498 = vadd.f32 %v1350, %v1487
    %v1499 = vadd.f32 %v1351, %v1492
    %s1500 = scalar_lea.vmem %s0, 216
    %v1501 = vld [vmem:[%s1500] sm:$0xff]
    %v1502 = vld [vmem:[%s1500 + $0x8] sm:$0xff]
    %v1503 = vld [vmem:[%s1500 + $0x10] sm:$0x11]
    %v1507 = vunpack.c.l.b16 %v1501
    %v1508 = vunpack.c.h.b16 %v1501
    %v1509 = vunpack.c.l.b16 %v1502
    %v1510 = vunpack.c.h.b16 %v1502
    %v1511 = vunpack.c.l.b16 %v1503
    %v1512 = vunpack.c.h.b16 %v1503
    %v1513 = vpack.c.b16 %v1509, %v1507
    %v1514 = vpack.c.b16 %v1510, %v1508
    %v1515 = vpack.c.b16 %v1511, %v1511
    %v1516 = vpack.c.b16 %v1512, %v1512
    %1521 = vmatprep.subr.bf16.mxu0 0
    %1522 = vmatpush1.bf16.msra.mxu0 %v163
    %1523 = vmatprep.subr.bf16.mxu0 0
    %1524 = vmatpush1.bf16.msra.mxu0 %v164
    %1525 = vmatprep.subr.bf16.mxu0 0
    %1526 = vmatpush1.bf16.msra.mxu0 %v165
    %1527 = vmatprep.subr.bf16.mxu0 0
    %1528 = vmatpush1.bf16.msra.mxu0 %v166
    %1529 = vmatprep.subr.bf16.mxu0 0
    %1530 = vmatpush1.bf16.msra.mxu0 %v167
    %1531 = vmatprep.subr.bf16.mxu0 0
    %1532 = vmatpush1.bf16.msra.mxu0 %v168
    %1533 = vmatprep.subr.bf16.mxu0 0
    %1534 = vmatpush1.bf16.msra.mxu0 %v169
    %1535 = vmatprep.subr.bf16.mxu0 0
    %1536 = vmatpush1.bf16.msra.mxu0 %v170
    %1537 = vmatprep.subr.bf16.mxu0 0
    %1538 = vmatpush1.bf16.msra.mxu0 %v171
    %1539 = vmatprep.subr.bf16.mxu0 0
    %1540 = vmatpush1.bf16.msra.mxu0 %v172
    %1541 = vmatprep.subr.bf16.mxu0 0
    %1542 = vmatpush1.bf16.msra.mxu0 %v173
    %1543 = vmatprep.subr.bf16.mxu0 0
    %1544 = vmatpush1.bf16.msra.mxu0 %v174
    %1545 = vmatprep.subr.bf16.mxu0 0
    %1546 = vmatpush1.bf16.msra.mxu0 %v175
    %1547 = vmatprep.subr.bf16.mxu0 0
    %1548 = vmatpush1.bf16.msra.mxu0 %v176
    %1549 = vmatprep.subr.bf16.mxu0 0
    %1550 = vmatpush1.bf16.msra.mxu0 %v177
    %1551 = vmatprep.subr.bf16.mxu0 0
    %1552 = vmatpush1.bf16.msra.mxu0 %v178
    %1553 = vmatprep.mubr.bf16.mxu0 %v1514
    %1554 = vmatmul.mubr.bf16.gmra.mrb[0].mxu0 %v1513
    %v1555 = vpop.f32.mrb[0].mxu0
    %v1556 = vadd.f32 %v80, %v1555
    %v1557 = vpop.f32.mrb[0].mxu0
    %v1558 = vpop.f32.mrb[0].mxu0
    %v1559 = vadd.f32 %v80, %v1558
    %v1560 = vpop.f32.mrb[0].mxu0
    %1561 = vmatprep.mubr.bf16.mxu0 %v1516
    %1562 = vmatmul.mubr.bf16.gmra.mrb[0].mxu0 %v1515
    %v1563 = vpop.f32.mrb[0].mxu0
    %v1564 = vadd.f32 %v80, %v1563
    %v1565 = vpop.f32.mrb[0].mxu0
    %v1566 = vpop.f32.mrb[0].mxu0
    %v1567 = vpop.f32.mrb[0].mxu0
    %1568 = vdwg.mxu0
    %v1569 = vmax.f32 %v1556, 0.0
    %v1570 = vmax.f32 %v1559, 0.0
    %v1571 = vmax.f32 %v1564, 0.0
    %v1572 = vpack.c.bf16 %v1570, %v1569
    %v1573 = vpack.c.bf16 %v1571, %v1571
    %s1574 = scalar_lea.vmem %s3, 144
    %v1575 = vld [vmem:[%s1574] sm:$0xf]
    %v1576 = vld [vmem:[%s1574 + $0x4] sm:$0xf]
    %v1577 = vld [vmem:[%s1574 + $0x8] sm:$0xf]
    %v1578 = vld [vmem:[%s1574 + $0xc] sm:$0xf]
    %v1583 = vunpack.c.l.b16 %v1575
    %v1584 = vunpack.c.l.b16 %v1576
    %v1585 = vunpack.c.l.b16 %v1577
    %v1586 = vunpack.c.l.b16 %v1578
    %v1587 = vpack.c.b16 %v1584, %v1583
    %v1588 = vpack.c.b16 %v1586, %v1585
    %v1592 = vsel %vm343, %v1572, 0
    %v1595 = vsel %vm343, %v1573, 0
    %1597 = vmatprep.subr.bf16.mxu0 0
    %1598 = vmatpush1.bf16.msra.mxu0 %v1587
    %1599 = vmatprep.subr.bf16.mxu0 0
    %1600 = vmatpush1.bf16.msra.mxu0 %v1588
    %1601 = vmatprep.subr.bf16.mxu0 0
    %1602 = vmatpush1.bf16.msra.mxu0 0
    %1603 = vmatprep.subr.bf16.mxu0 0
    %1604 = vmatpush1.bf16.msra.mxu0 0
    %1605 = vmatprep.subr.bf16.mxu0 0
    %1606 = vmatpush1.bf16.msra.mxu0 0
    %1607 = vmatprep.subr.bf16.mxu0 0
    %1608 = vmatpush1.bf16.msra.mxu0 0
    %1609 = vmatprep.subr.bf16.mxu0 0
    %1610 = vmatpush1.bf16.msra.mxu0 0
    %1611 = vmatprep.subr.bf16.mxu0 0
    %1612 = vmatpush1.bf16.msra.mxu0 0
    %1613 = vmatprep.subr.bf16.mxu0 0
    %1614 = vmatpush1.bf16.msra.mxu0 0
    %1615 = vmatprep.subr.bf16.mxu0 0
    %1616 = vmatpush1.bf16.msra.mxu0 0
    %1617 = vmatprep.subr.bf16.mxu0 0
    %1618 = vmatpush1.bf16.msra.mxu0 0
    %1619 = vmatprep.subr.bf16.mxu0 0
    %1620 = vmatpush1.bf16.msra.mxu0 0
    %1621 = vmatprep.subr.bf16.mxu0 0
    %1622 = vmatpush1.bf16.msra.mxu0 0
    %1623 = vmatprep.subr.bf16.mxu0 0
    %1624 = vmatpush1.bf16.msra.mxu0 0
    %1625 = vmatprep.subr.bf16.mxu0 0
    %1626 = vmatpush1.bf16.msra.mxu0 0
    %1627 = vmatprep.subr.bf16.mxu0 0
    %1628 = vmatpush1.bf16.msra.mxu0 0
    %1629 = vmatprep.mubr.bf16.mxu0 0
    %1630 = vmatmul.mubr.bf16.gmra.mrb[0].mxu0 %v1592
    %v1631 = vpop.f32.mrb[0].mxu0
    %v1632 = vadd.f32 0.0, %v1631
    %v1633 = vpop.f32.mrb[0].mxu0
    %v1634 = vpop.f32.mrb[0].mxu0
    %v1635 = vadd.f32 0.0, %v1634
    %v1636 = vpop.f32.mrb[0].mxu0
    %1637 = vmatprep.mubr.bf16.mxu0 0
    %1638 = vmatmul.mubr.bf16.gmra.mrb[0].mxu0 %v1595
    %v1639 = vpop.f32.mrb[0].mxu0
    %v1640 = vadd.f32 0.0, %v1639
    %v1641 = vpop.f32.mrb[0].mxu0
    %v1642 = vpop.f32.mrb[0].mxu0
    %v1643 = vpop.f32.mrb[0].mxu0
    %1644 = vdwg.mxu0
    %v1645 = vadd.f32 %v1497, %v1632
    %v1646 = vadd.f32 %v1498, %v1635
    %v1647 = vadd.f32 %v1499, %v1640
    %s1648 = scalar_lea.vmem %s0, 240
    %v1649 = vld [vmem:[%s1648] sm:$0xff]
    %v1650 = vld [vmem:[%s1648 + $0x8] sm:$0xff]
    %v1651 = vld [vmem:[%s1648 + $0x10] sm:$0x11]
    %v1655 = vunpack.c.l.b16 %v1649
    %v1656 = vunpack.c.h.b16 %v1649
    %v1657 = vunpack.c.l.b16 %v1650
    %v1658 = vunpack.c.h.b16 %v1650
    %v1659 = vunpack.c.l.b16 %v1651
    %v1660 = vunpack.c.h.b16 %v1651
    %v1661 = vpack.c.b16 %v1657, %v1655
    %v1662 = vpack.c.b16 %v1658, %v1656
    %v1663 = vpack.c.b16 %v1659, %v1659
    %v1664 = vpack.c.b16 %v1660, %v1660
    %1669 = vmatprep.subr.bf16.mxu0 0
    %1670 = vmatpush1.bf16.msra.mxu0 %v163
    %1671 = vmatprep.subr.bf16.mxu0 0
    %1672 = vmatpush1.bf16.msra.mxu0 %v164
    %1673 = vmatprep.subr.bf16.mxu0 0
    %1674 = vmatpush1.bf16.msra.mxu0 %v165
    %1675 = vmatprep.subr.bf16.mxu0 0
    %1676 = vmatpush1.bf16.msra.mxu0 %v166
    %1677 = vmatprep.subr.bf16.mxu0 0
    %1678 = vmatpush1.bf16.msra.mxu0 %v167
    %1679 = vmatprep.subr.bf16.mxu0 0
    %1680 = vmatpush1.bf16.msra.mxu0 %v168
    %1681 = vmatprep.subr.bf16.mxu0 0
    %1682 = vmatpush1.bf16.msra.mxu0 %v169
    %1683 = vmatprep.subr.bf16.mxu0 0
    %1684 = vmatpush1.bf16.msra.mxu0 %v170
    %1685 = vmatprep.subr.bf16.mxu0 0
    %1686 = vmatpush1.bf16.msra.mxu0 %v171
    %1687 = vmatprep.subr.bf16.mxu0 0
    %1688 = vmatpush1.bf16.msra.mxu0 %v172
    %1689 = vmatprep.subr.bf16.mxu0 0
    %1690 = vmatpush1.bf16.msra.mxu0 %v173
    %1691 = vmatprep.subr.bf16.mxu0 0
    %1692 = vmatpush1.bf16.msra.mxu0 %v174
    %1693 = vmatprep.subr.bf16.mxu0 0
    %1694 = vmatpush1.bf16.msra.mxu0 %v175
    %1695 = vmatprep.subr.bf16.mxu0 0
    %1696 = vmatpush1.bf16.msra.mxu0 %v176
    %1697 = vmatprep.subr.bf16.mxu0 0
    %1698 = vmatpush1.bf16.msra.mxu0 %v177
    %1699 = vmatprep.subr.bf16.mxu0 0
    %1700 = vmatpush1.bf16.msra.mxu0 %v178
    %1701 = vmatprep.mubr.bf16.mxu0 %v1662
    %1702 = vmatmul.mubr.bf16.gmra.mrb[0].mxu0 %v1661
    %v1703 = vpop.f32.mrb[0].mxu0
    %v1704 = vadd.f32 %v80, %v1703
    %v1705 = vpop.f32.mrb[0].mxu0
    %v1706 = vpop.f32.mrb[0].mxu0
    %v1707 = vadd.f32 %v80, %v1706
    %v1708 = vpop.f32.mrb[0].mxu0
    %1709 = vmatprep.mubr.bf16.mxu0 %v1664
    %1710 = vmatmul.mubr.bf16.gmra.mrb[0].mxu0 %v1663
    %v1711 = vpop.f32.mrb[0].mxu0
    %v1712 = vadd.f32 %v80, %v1711
    %v1713 = vpop.f32.mrb[0].mxu0
    %v1714 = vpop.f32.mrb[0].mxu0
    %v1715 = vpop.f32.mrb[0].mxu0
    %1716 = vdwg.mxu0
    %v1717 = vmax.f32 %v1704, 0.0
    %v1718 = vmax.f32 %v1707, 0.0
    %v1719 = vmax.f32 %v1712, 0.0
    %v1720 = vpack.c.bf16 %v1718, %v1717
    %v1721 = vpack.c.bf16 %v1719, %v1719
    %s1722 = scalar_lea.vmem %s3, 160
    %v1723 = vld [vmem:[%s1722] sm:$0xf]
    %v1724 = vld [vmem:[%s1722 + $0x4] sm:$0xf]
    %v1725 = vld [vmem:[%s1722 + $0x8] sm:$0xf]
    %v1726 = vld [vmem:[%s1722 + $0xc] sm:$0xf]
    %v1731 = vunpack.c.l.b16 %v1723
    %v1732 = vunpack.c.l.b16 %v1724
    %v1733 = vunpack.c.l.b16 %v1725
    %v1734 = vunpack.c.l.b16 %v1726
    %v1735 = vpack.c.b16 %v1732, %v1731
    %v1736 = vpack.c.b16 %v1734, %v1733
    %v1740 = vsel %vm343, %v1720, 0
    %v1743 = vsel %vm343, %v1721, 0
    %1745 = vmatprep.subr.bf16.mxu0 0
    %1746 = vmatpush1.bf16.msra.mxu0 %v1735
    %1747 = vmatprep.subr.bf16.mxu0 0
    %1748 = vmatpush1.bf16.msra.mxu0 %v1736
    %1749 = vmatprep.subr.bf16.mxu0 0
    %1750 = vmatpush1.bf16.msra.mxu0 0
    %1751 = vmatprep.subr.bf16.mxu0 0
    %1752 = vmatpush1.bf16.msra.mxu0 0
    %1753 = vmatprep.subr.bf16.mxu0 0
    %1754 = vmatpush1.bf16.msra.mxu0 0
    %1755 = vmatprep.subr.bf16.mxu0 0
    %1756 = vmatpush1.bf16.msra.mxu0 0
    %1757 = vmatprep.subr.bf16.mxu0 0
    %1758 = vmatpush1.bf16.msra.mxu0 0
    %1759 = vmatprep.subr.bf16.mxu0 0
    %1760 = vmatpush1.bf16.msra.mxu0 0
    %1761 = vmatprep.subr.bf16.mxu0 0
    %1762 = vmatpush1.bf16.msra.mxu0 0
    %1763 = vmatprep.subr.bf16.mxu0 0
    %1764 = vmatpush1.bf16.msra.mxu0 0
    %1765 = vmatprep.subr.bf16.mxu0 0
    %1766 = vmatpush1.bf16.msra.mxu0 0
    %1767 = vmatprep.subr.bf16.mxu0 0
    %1768 = vmatpush1.bf16.msra.mxu0 0
    %1769 = vmatprep.subr.bf16.mxu0 0
    %1770 = vmatpush1.bf16.msra.mxu0 0
    %1771 = vmatprep.subr.bf16.mxu0 0
    %1772 = vmatpush1.bf16.msra.mxu0 0
    %1773 = vmatprep.subr.bf16.mxu0 0
    %1774 = vmatpush1.bf16.msra.mxu0 0
    %1775 = vmatprep.subr.bf16.mxu0 0
    %1776 = vmatpush1.bf16.msra.mxu0 0
    %1777 = vmatprep.mubr.bf16.mxu0 0
    %1778 = vmatmul.mubr.bf16.gmra.mrb[0].mxu0 %v1740
    %v1779 = vpop.f32.mrb[0].mxu0
    %v1780 = vadd.f32 0.0, %v1779
    %v1781 = vpop.f32.mrb[0].mxu0
    %v1782 = vpop.f32.mrb[0].mxu0
    %v1783 = vadd.f32 0.0, %v1782
    %v1784 = vpop.f32.mrb[0].mxu0
    %1785 = vmatprep.mubr.bf16.mxu0 0
    %1786 = vmatmul.mubr.bf16.gmra.mrb[0].mxu0 %v1743
    %v1787 = vpop.f32.mrb[0].mxu0
    %v1788 = vadd.f32 0.0, %v1787
    %v1789 = vpop.f32.mrb[0].mxu0
    %v1790 = vpop.f32.mrb[0].mxu0
    %v1791 = vpop.f32.mrb[0].mxu0
    %1792 = vdwg.mxu0
    %v1793 = vadd.f32 %v1645, %v1780
    %v1794 = vadd.f32 %v1646, %v1783
    %v1795 = vadd.f32 %v1647, %v1788
    %s1796 = scalar_lea.vmem %s0, 264
    %v1797 = vld [vmem:[%s1796] sm:$0xff]
    %v1798 = vld [vmem:[%s1796 + $0x8] sm:$0xff]
    %v1799 = vld [vmem:[%s1796 + $0x10] sm:$0x11]
    %v1803 = vunpack.c.l.b16 %v1797
    %v1804 = vunpack.c.h.b16 %v1797
    %v1805 = vunpack.c.l.b16 %v1798
    %v1806 = vunpack.c.h.b16 %v1798
    %v1807 = vunpack.c.l.b16 %v1799
    %v1808 = vunpack.c.h.b16 %v1799
    %v1809 = vpack.c.b16 %v1805, %v1803
    %v1810 = vpack.c.b16 %v1806, %v1804
    %v1811 = vpack.c.b16 %v1807, %v1807
    %v1812 = vpack.c.b16 %v1808, %v1808
    %1817 = vmatprep.subr.bf16.mxu0 0
    %1818 = vmatpush1.bf16.msra.mxu0 %v163
    %1819 = vmatprep.subr.bf16.mxu0 0
    %1820 = vmatpush1.bf16.msra.mxu0 %v164
    %1821 = vmatprep.subr.bf16.mxu0 0
    %1822 = vmatpush1.bf16.msra.mxu0 %v165
    %1823 = vmatprep.subr.bf16.mxu0 0
    %1824 = vmatpush1.bf16.msra.mxu0 %v166
    %1825 = vmatprep.subr.bf16.mxu0 0
    %1826 = vmatpush1.bf16.msra.mxu0 %v167
    %1827 = vmatprep.subr.bf16.mxu0 0
    %1828 = vmatpush1.bf16.msra.mxu0 %v168
    %1829 = vmatprep.subr.bf16.mxu0 0
    %1830 = vmatpush1.bf16.msra.mxu0 %v169
    %1831 = vmatprep.subr.bf16.mxu0 0
    %1832 = vmatpush1.bf16.msra.mxu0 %v170
    %1833 = vmatprep.subr.bf16.mxu0 0
    %1834 = vmatpush1.bf16.msra.mxu0 %v171
    %1835 = vmatprep.subr.bf16.mxu0 0
    %1836 = vmatpush1.bf16.msra.mxu0 %v172
    %1837 = vmatprep.subr.bf16.mxu0 0
    %1838 = vmatpush1.bf16.msra.mxu0 %v173
    %1839 = vmatprep.subr.bf16.mxu0 0
    %1840 = vmatpush1.bf16.msra.mxu0 %v174
    %1841 = vmatprep.subr.bf16.mxu0 0
    %1842 = vmatpush1.bf16.msra.mxu0 %v175
    %1843 = vmatprep.subr.bf16.mxu0 0
    %1844 = vmatpush1.bf16.msra.mxu0 %v176
    %1845 = vmatprep.subr.bf16.mxu0 0
    %1846 = vmatpush1.bf16.msra.mxu0 %v177
    %1847 = vmatprep.subr.bf16.mxu0 0
    %1848 = vmatpush1.bf16.msra.mxu0 %v178
    %1849 = vmatprep.mubr.bf16.mxu0 %v1810
    %1850 = vmatmul.mubr.bf16.gmra.mrb[0].mxu0 %v1809
    %v1851 = vpop.f32.mrb[0].mxu0
    %v1852 = vadd.f32 %v80, %v1851
    %v1853 = vpop.f32.mrb[0].mxu0
    %v1854 = vpop.f32.mrb[0].mxu0
    %v1855 = vadd.f32 %v80, %v1854
    %v1856 = vpop.f32.mrb[0].mxu0
    %1857 = vmatprep.mubr.bf16.mxu0 %v1812
    %1858 = vmatmul.mubr.bf16.gmra.mrb[0].mxu0 %v1811
    %v1859 = vpop.f32.mrb[0].mxu0
    %v1860 = vadd.f32 %v80, %v1859
    %v1861 = vpop.f32.mrb[0].mxu0
    %v1862 = vpop.f32.mrb[0].mxu0
    %v1863 = vpop.f32.mrb[0].mxu0
    %1864 = vdwg.mxu0
    %v1865 = vmax.f32 %v1852, 0.0
    %v1866 = vmax.f32 %v1855, 0.0
    %v1867 = vmax.f32 %v1860, 0.0
    %v1868 = vpack.c.bf16 %v1866, %v1865
    %v1869 = vpack.c.bf16 %v1867, %v1867
    %s1870 = scalar_lea.vmem %s3, 176
    %v1871 = vld [vmem:[%s1870] sm:$0xf]
    %v1872 = vld [vmem:[%s1870 + $0x4] sm:$0xf]
    %v1873 = vld [vmem:[%s1870 + $0x8] sm:$0xf]
    %v1874 = vld [vmem:[%s1870 + $0xc] sm:$0xf]
    %v1879 = vunpack.c.l.b16 %v1871
    %v1880 = vunpack.c.l.b16 %v1872
    %v1881 = vunpack.c.l.b16 %v1873
    %v1882 = vunpack.c.l.b16 %v1874
    %v1883 = vpack.c.b16 %v1880, %v1879
    %v1884 = vpack.c.b16 %v1882, %v1881
    %v1888 = vsel %vm343, %v1868, 0
    %v1891 = vsel %vm343, %v1869, 0
    %1893 = vmatprep.subr.bf16.mxu0 0
    %1894 = vmatpush1.bf16.msra.mxu0 %v1883
    %1895 = vmatprep.subr.bf16.mxu0 0
    %1896 = vmatpush1.bf16.msra.mxu0 %v1884
    %1897 = vmatprep.subr.bf16.mxu0 0
    %1898 = vmatpush1.bf16.msra.mxu0 0
    %1899 = vmatprep.subr.bf16.mxu0 0
    %1900 = vmatpush1.bf16.msra.mxu0 0
    %1901 = vmatprep.subr.bf16.mxu0 0
    %1902 = vmatpush1.bf16.msra.mxu0 0
    %1903 = vmatprep.subr.bf16.mxu0 0
    %1904 = vmatpush1.bf16.msra.mxu0 0
    %1905 = vmatprep.subr.bf16.mxu0 0
    %1906 = vmatpush1.bf16.msra.mxu0 0
    %1907 = vmatprep.subr.bf16.mxu0 0
    %1908 = vmatpush1.bf16.msra.mxu0 0
    %1909 = vmatprep.subr.bf16.mxu0 0
    %1910 = vmatpush1.bf16.msra.mxu0 0
    %1911 = vmatprep.subr.bf16.mxu0 0
    %1912 = vmatpush1.bf16.msra.mxu0 0
    %1913 = vmatprep.subr.bf16.mxu0 0
    %1914 = vmatpush1.bf16.msra.mxu0 0
    %1915 = vmatprep.subr.bf16.mxu0 0
    %1916 = vmatpush1.bf16.msra.mxu0 0
    %1917 = vmatprep.subr.bf16.mxu0 0
    %1918 = vmatpush1.bf16.msra.mxu0 0
    %1919 = vmatprep.subr.bf16.mxu0 0
    %1920 = vmatpush1.bf16.msra.mxu0 0
    %1921 = vmatprep.subr.bf16.mxu0 0
    %1922 = vmatpush1.bf16.msra.mxu0 0
    %1923 = vmatprep.subr.bf16.mxu0 0
    %1924 = vmatpush1.bf16.msra.mxu0 0
    %1925 = vmatprep.mubr.bf16.mxu0 0
    %1926 = vmatmul.mubr.bf16.gmra.mrb[0].mxu0 %v1888
    %v1927 = vpop.f32.mrb[0].mxu0
    %v1928 = vadd.f32 0.0, %v1927
    %v1929 = vpop.f32.mrb[0].mxu0
    %v1930 = vpop.f32.mrb[0].mxu0
    %v1931 = vadd.f32 0.0, %v1930
    %v1932 = vpop.f32.mrb[0].mxu0
    %1933 = vmatprep.mubr.bf16.mxu0 0
    %1934 = vmatmul.mubr.bf16.gmra.mrb[0].mxu0 %v1891
    %v1935 = vpop.f32.mrb[0].mxu0
    %v1936 = vadd.f32 0.0, %v1935
    %v1937 = vpop.f32.mrb[0].mxu0
    %v1938 = vpop.f32.mrb[0].mxu0
    %v1939 = vpop.f32.mrb[0].mxu0
    %1940 = vdwg.mxu0
    %v1941 = vadd.f32 %v1793, %v1928
    %v1942 = vadd.f32 %v1794, %v1931
    %v1943 = vadd.f32 %v1795, %v1936
    %s1944 = scalar_lea.vmem %s0, 288
    %v1945 = vld [vmem:[%s1944] sm:$0xff]
    %v1946 = vld [vmem:[%s1944 + $0x8] sm:$0xff]
    %v1947 = vld [vmem:[%s1944 + $0x10] sm:$0x11]
    %v1951 = vunpack.c.l.b16 %v1945
    %v1952 = vunpack.c.h.b16 %v1945
    %v1953 = vunpack.c.l.b16 %v1946
    %v1954 = vunpack.c.h.b16 %v1946
    %v1955 = vunpack.c.l.b16 %v1947
    %v1956 = vunpack.c.h.b16 %v1947
    %v1957 = vpack.c.b16 %v1953, %v1951
    %v1958 = vpack.c.b16 %v1954, %v1952
    %v1959 = vpack.c.b16 %v1955, %v1955
    %v1960 = vpack.c.b16 %v1956, %v1956
    %1965 = vmatprep.subr.bf16.mxu0 0
    %1966 = vmatpush1.bf16.msra.mxu0 %v163
    %1967 = vmatprep.subr.bf16.mxu0 0
    %1968 = vmatpush1.bf16.msra.mxu0 %v164
    %1969 = vmatprep.subr.bf16.mxu0 0
    %1970 = vmatpush1.bf16.msra.mxu0 %v165
    %1971 = vmatprep.subr.bf16.mxu0 0
    %1972 = vmatpush1.bf16.msra.mxu0 %v166
    %1973 = vmatprep.subr.bf16.mxu0 0
    %1974 = vmatpush1.bf16.msra.mxu0 %v167
    %1975 = vmatprep.subr.bf16.mxu0 0
    %1976 = vmatpush1.bf16.msra.mxu0 %v168
    %1977 = vmatprep.subr.bf16.mxu0 0
    %1978 = vmatpush1.bf16.msra.mxu0 %v169
    %1979 = vmatprep.subr.bf16.mxu0 0
    %1980 = vmatpush1.bf16.msra.mxu0 %v170
    %1981 = vmatprep.subr.bf16.mxu0 0
    %1982 = vmatpush1.bf16.msra.mxu0 %v171
    %1983 = vmatprep.subr.bf16.mxu0 0
    %1984 = vmatpush1.bf16.msra.mxu0 %v172
    %1985 = vmatprep.subr.bf16.mxu0 0
    %1986 = vmatpush1.bf16.msra.mxu0 %v173
    %1987 = vmatprep.subr.bf16.mxu0 0
    %1988 = vmatpush1.bf16.msra.mxu0 %v174
    %1989 = vmatprep.subr.bf16.mxu0 0
    %1990 = vmatpush1.bf16.msra.mxu0 %v175
    %1991 = vmatprep.subr.bf16.mxu0 0
    %1992 = vmatpush1.bf16.msra.mxu0 %v176
    %1993 = vmatprep.subr.bf16.mxu0 0
    %1994 = vmatpush1.bf16.msra.mxu0 %v177
    %1995 = vmatprep.subr.bf16.mxu0 0
    %1996 = vmatpush1.bf16.msra.mxu0 %v178
    %1997 = vmatprep.mubr.bf16.mxu0 %v1958
    %1998 = vmatmul.mubr.bf16.gmra.mrb[0].mxu0 %v1957
    %v1999 = vpop.f32.mrb[0].mxu0
    %v2000 = vadd.f32 %v80, %v1999
    %v2001 = vpop.f32.mrb[0].mxu0
    %v2002 = vpop.f32.mrb[0].mxu0
    %v2003 = vadd.f32 %v80, %v2002
    %v2004 = vpop.f32.mrb[0].mxu0
    %2005 = vmatprep.mubr.bf16.mxu0 %v1960
    %2006 = vmatmul.mubr.bf16.gmra.mrb[0].mxu0 %v1959
    %v2007 = vpop.f32.mrb[0].mxu0
    %v2008 = vadd.f32 %v80, %v2007
    %v2009 = vpop.f32.mrb[0].mxu0
    %v2010 = vpop.f32.mrb[0].mxu0
    %v2011 = vpop.f32.mrb[0].mxu0
    %2012 = vdwg.mxu0
    %v2013 = vmax.f32 %v2000, 0.0
    %v2014 = vmax.f32 %v2003, 0.0
    %v2015 = vmax.f32 %v2008, 0.0
    %v2016 = vpack.c.bf16 %v2014, %v2013
    %v2017 = vpack.c.bf16 %v2015, %v2015
    %s2018 = scalar_lea.vmem %s3, 192
    %v2019 = vld [vmem:[%s2018] sm:$0xf]
    %v2020 = vld [vmem:[%s2018 + $0x4] sm:$0xf]
    %v2021 = vld [vmem:[%s2018 + $0x8] sm:$0xf]
    %v2022 = vld [vmem:[%s2018 + $0xc] sm:$0xf]
    %v2027 = vunpack.c.l.b16 %v2019
    %v2028 = vunpack.c.l.b16 %v2020
    %v2029 = vunpack.c.l.b16 %v2021
    %v2030 = vunpack.c.l.b16 %v2022
    %v2031 = vpack.c.b16 %v2028, %v2027
    %v2032 = vpack.c.b16 %v2030, %v2029
    %v2036 = vsel %vm343, %v2016, 0
    %v2039 = vsel %vm343, %v2017, 0
    %2041 = vmatprep.subr.bf16.mxu0 0
    %2042 = vmatpush1.bf16.msra.mxu0 %v2031
    %2043 = vmatprep.subr.bf16.mxu0 0
    %2044 = vmatpush1.bf16.msra.mxu0 %v2032
    %2045 = vmatprep.subr.bf16.mxu0 0
    %2046 = vmatpush1.bf16.msra.mxu0 0
    %2047 = vmatprep.subr.bf16.mxu0 0
    %2048 = vmatpush1.bf16.msra.mxu0 0
    %2049 = vmatprep.subr.bf16.mxu0 0
    %2050 = vmatpush1.bf16.msra.mxu0 0
    %2051 = vmatprep.subr.bf16.mxu0 0
    %2052 = vmatpush1.bf16.msra.mxu0 0
    %2053 = vmatprep.subr.bf16.mxu0 0
    %2054 = vmatpush1.bf16.msra.mxu0 0
    %2055 = vmatprep.subr.bf16.mxu0 0
    %2056 = vmatpush1.bf16.msra.mxu0 0
    %2057 = vmatprep.subr.bf16.mxu0 0
    %2058 = vmatpush1.bf16.msra.mxu0 0
    %2059 = vmatprep.subr.bf16.mxu0 0
    %2060 = vmatpush1.bf16.msra.mxu0 0
    %2061 = vmatprep.subr.bf16.mxu0 0
    %2062 = vmatpush1.bf16.msra.mxu0 0
    %2063 = vmatprep.subr.bf16.mxu0 0
    %2064 = vmatpush1.bf16.msra.mxu0 0
    %2065 = vmatprep.subr.bf16.mxu0 0
    %2066 = vmatpush1.bf16.msra.mxu0 0
    %2067 = vmatprep.subr.bf16.mxu0 0
    %2068 = vmatpush1.bf16.msra.mxu0 0
    %2069 = vmatprep.subr.bf16.mxu0 0
    %2070 = vmatpush1.bf16.msra.mxu0 0
    %2071 = vmatprep.subr.bf16.mxu0 0
    %2072 = vmatpush1.bf16.msra.mxu0 0
    %2073 = vmatprep.mubr.bf16.mxu0 0
    %2074 = vmatmul.mubr.bf16.gmra.mrb[0].mxu0 %v2036
    %v2075 = vpop.f32.mrb[0].mxu0
    %v2076 = vadd.f32 0.0, %v2075
    %v2077 = vpop.f32.mrb[0].mxu0
    %v2078 = vpop.f32.mrb[0].mxu0
    %v2079 = vadd.f32 0.0, %v2078
    %v2080 = vpop.f32.mrb[0].mxu0
    %2081 = vmatprep.mubr.bf16.mxu0 0
    %2082 = vmatmul.mubr.bf16.gmra.mrb[0].mxu0 %v2039
    %v2083 = vpop.f32.mrb[0].mxu0
    %v2084 = vadd.f32 0.0, %v2083
    %v2085 = vpop.f32.mrb[0].mxu0
    %v2086 = vpop.f32.mrb[0].mxu0
    %v2087 = vpop.f32.mrb[0].mxu0
    %2088 = vdwg.mxu0
    %v2089 = vadd.f32 %v1941, %v2076
    %v2090 = vadd.f32 %v1942, %v2079
    %v2091 = vadd.f32 %v1943, %v2084
    %s2092 = scalar_lea.vmem %s0, 312
    %v2093 = vld [vmem:[%s2092] sm:$0xff]
    %v2094 = vld [vmem:[%s2092 + $0x8] sm:$0xff]
    %v2095 = vld [vmem:[%s2092 + $0x10] sm:$0x11]
    %v2099 = vunpack.c.l.b16 %v2093
    %v2100 = vunpack.c.h.b16 %v2093
    %v2101 = vunpack.c.l.b16 %v2094
    %v2102 = vunpack.c.h.b16 %v2094
    %v2103 = vunpack.c.l.b16 %v2095
    %v2104 = vunpack.c.h.b16 %v2095
    %v2105 = vpack.c.b16 %v2101, %v2099
    %v2106 = vpack.c.b16 %v2102, %v2100
    %v2107 = vpack.c.b16 %v2103, %v2103
    %v2108 = vpack.c.b16 %v2104, %v2104
    %2113 = vmatprep.subr.bf16.mxu0 0
    %2114 = vmatpush1.bf16.msra.mxu0 %v163
    %2115 = vmatprep.subr.bf16.mxu0 0
    %2116 = vmatpush1.bf16.msra.mxu0 %v164
    %2117 = vmatprep.subr.bf16.mxu0 0
    %2118 = vmatpush1.bf16.msra.mxu0 %v165
    %2119 = vmatprep.subr.bf16.mxu0 0
    %2120 = vmatpush1.bf16.msra.mxu0 %v166
    %2121 = vmatprep.subr.bf16.mxu0 0
    %2122 = vmatpush1.bf16.msra.mxu0 %v167
    %2123 = vmatprep.subr.bf16.mxu0 0
    %2124 = vmatpush1.bf16.msra.mxu0 %v168
    %2125 = vmatprep.subr.bf16.mxu0 0
    %2126 = vmatpush1.bf16.msra.mxu0 %v169
    %2127 = vmatprep.subr.bf16.mxu0 0
    %2128 = vmatpush1.bf16.msra.mxu0 %v170
    %2129 = vmatprep.subr.bf16.mxu0 0
    %2130 = vmatpush1.bf16.msra.mxu0 %v171
    %2131 = vmatprep.subr.bf16.mxu0 0
    %2132 = vmatpush1.bf16.msra.mxu0 %v172
    %2133 = vmatprep.subr.bf16.mxu0 0
    %2134 = vmatpush1.bf16.msra.mxu0 %v173
    %2135 = vmatprep.subr.bf16.mxu0 0
    %2136 = vmatpush1.bf16.msra.mxu0 %v174
    %2137 = vmatprep.subr.bf16.mxu0 0
    %2138 = vmatpush1.bf16.msra.mxu0 %v175
    %2139 = vmatprep.subr.bf16.mxu0 0
    %2140 = vmatpush1.bf16.msra.mxu0 %v176
    %2141 = vmatprep.subr.bf16.mxu0 0
    %2142 = vmatpush1.bf16.msra.mxu0 %v177
    %2143 = vmatprep.subr.bf16.mxu0 0
    %2144 = vmatpush1.bf16.msra.mxu0 %v178
    %2145 = vmatprep.mubr.bf16.mxu0 %v2106
    %2146 = vmatmul.mubr.bf16.gmra.mrb[0].mxu0 %v2105
    %v2147 = vpop.f32.mrb[0].mxu0
    %v2148 = vadd.f32 %v80, %v2147
    %v2149 = vpop.f32.mrb[0].mxu0
    %v2150 = vpop.f32.mrb[0].mxu0
    %v2151 = vadd.f32 %v80, %v2150
    %v2152 = vpop.f32.mrb[0].mxu0
    %2153 = vmatprep.mubr.bf16.mxu0 %v2108
    %2154 = vmatmul.mubr.bf16.gmra.mrb[0].mxu0 %v2107
    %v2155 = vpop.f32.mrb[0].mxu0
    %v2156 = vadd.f32 %v80, %v2155
    %v2157 = vpop.f32.mrb[0].mxu0
    %v2158 = vpop.f32.mrb[0].mxu0
    %v2159 = vpop.f32.mrb[0].mxu0
    %2160 = vdwg.mxu0
    %v2161 = vmax.f32 %v2148, 0.0
    %v2162 = vmax.f32 %v2151, 0.0
    %v2163 = vmax.f32 %v2156, 0.0
    %v2164 = vpack.c.bf16 %v2162, %v2161
    %v2165 = vpack.c.bf16 %v2163, %v2163
    %s2166 = scalar_lea.vmem %s3, 208
    %v2167 = vld [vmem:[%s2166] sm:$0xf]
    %v2168 = vld [vmem:[%s2166 + $0x4] sm:$0xf]
    %v2169 = vld [vmem:[%s2166 + $0x8] sm:$0xf]
    %v2170 = vld [vmem:[%s2166 + $0xc] sm:$0xf]
    %v2175 = vunpack.c.l.b16 %v2167
    %v2176 = vunpack.c.l.b16 %v2168
    %v2177 = vunpack.c.l.b16 %v2169
    %v2178 = vunpack.c.l.b16 %v2170
    %v2179 = vpack.c.b16 %v2176, %v2175
    %v2180 = vpack.c.b16 %v2178, %v2177
    %v2184 = vsel %vm343, %v2164, 0
    %v2187 = vsel %vm343, %v2165, 0
    %2189 = vmatprep.subr.bf16.mxu0 0
    %2190 = vmatpush1.bf16.msra.mxu0 %v2179
    %2191 = vmatprep.subr.bf16.mxu0 0
    %2192 = vmatpush1.bf16.msra.mxu0 %v2180
    %2193 = vmatprep.subr.bf16.mxu0 0
    %2194 = vmatpush1.bf16.msra.mxu0 0
    %2195 = vmatprep.subr.bf16.mxu0 0
    %2196 = vmatpush1.bf16.msra.mxu0 0
    %2197 = vmatprep.subr.bf16.mxu0 0
    %2198 = vmatpush1.bf16.msra.mxu0 0
    %2199 = vmatprep.subr.bf16.mxu0 0
    %2200 = vmatpush1.bf16.msra.mxu0 0
    %2201 = vmatprep.subr.bf16.mxu0 0
    %2202 = vmatpush1.bf16.msra.mxu0 0
    %2203 = vmatprep.subr.bf16.mxu0 0
    %2204 = vmatpush1.bf16.msra.mxu0 0
    %2205 = vmatprep.subr.bf16.mxu0 0
    %2206 = vmatpush1.bf16.msra.mxu0 0
    %2207 = vmatprep.subr.bf16.mxu0 0
    %2208 = vmatpush1.bf16.msra.mxu0 0
    %2209 = vmatprep.subr.bf16.mxu0 0
    %2210 = vmatpush1.bf16.msra.mxu0 0
    %2211 = vmatprep.subr.bf16.mxu0 0
    %2212 = vmatpush1.bf16.msra.mxu0 0
    %2213 = vmatprep.subr.bf16.mxu0 0
    %2214 = vmatpush1.bf16.msra.mxu0 0
    %2215 = vmatprep.subr.bf16.mxu0 0
    %2216 = vmatpush1.bf16.msra.mxu0 0
    %2217 = vmatprep.subr.bf16.mxu0 0
    %2218 = vmatpush1.bf16.msra.mxu0 0
    %2219 = vmatprep.subr.bf16.mxu0 0
    %2220 = vmatpush1.bf16.msra.mxu0 0
    %2221 = vmatprep.mubr.bf16.mxu0 0
    %2222 = vmatmul.mubr.bf16.gmra.mrb[0].mxu0 %v2184
    %v2223 = vpop.f32.mrb[0].mxu0
    %v2224 = vadd.f32 0.0, %v2223
    %v2225 = vpop.f32.mrb[0].mxu0
    %v2226 = vpop.f32.mrb[0].mxu0
    %v2227 = vadd.f32 0.0, %v2226
    %v2228 = vpop.f32.mrb[0].mxu0
    %2229 = vmatprep.mubr.bf16.mxu0 0
    %2230 = vmatmul.mubr.bf16.gmra.mrb[0].mxu0 %v2187
    %v2231 = vpop.f32.mrb[0].mxu0
    %v2232 = vadd.f32 0.0, %v2231
    %v2233 = vpop.f32.mrb[0].mxu0
    %v2234 = vpop.f32.mrb[0].mxu0
    %v2235 = vpop.f32.mrb[0].mxu0
    %2236 = vdwg.mxu0
    %v2237 = vadd.f32 %v2089, %v2224
    %v2238 = vadd.f32 %v2090, %v2227
    %v2239 = vadd.f32 %v2091, %v2232
    %s2240 = scalar_lea.vmem %s0, 336
    %v2241 = vld [vmem:[%s2240] sm:$0xff]
    %v2242 = vld [vmem:[%s2240 + $0x8] sm:$0xff]
    %v2243 = vld [vmem:[%s2240 + $0x10] sm:$0x11]
    %v2247 = vunpack.c.l.b16 %v2241
    %v2248 = vunpack.c.h.b16 %v2241
    %v2249 = vunpack.c.l.b16 %v2242
    %v2250 = vunpack.c.h.b16 %v2242
    %v2251 = vunpack.c.l.b16 %v2243
    %v2252 = vunpack.c.h.b16 %v2243
    %v2253 = vpack.c.b16 %v2249, %v2247
    %v2254 = vpack.c.b16 %v2250, %v2248
    %v2255 = vpack.c.b16 %v2251, %v2251
    %v2256 = vpack.c.b16 %v2252, %v2252
    %2261 = vmatprep.subr.bf16.mxu0 0
    %2262 = vmatpush1.bf16.msra.mxu0 %v163
    %2263 = vmatprep.subr.bf16.mxu0 0
    %2264 = vmatpush1.bf16.msra.mxu0 %v164
    %2265 = vmatprep.subr.bf16.mxu0 0
    %2266 = vmatpush1.bf16.msra.mxu0 %v165
    %2267 = vmatprep.subr.bf16.mxu0 0
    %2268 = vmatpush1.bf16.msra.mxu0 %v166
    %2269 = vmatprep.subr.bf16.mxu0 0
    %2270 = vmatpush1.bf16.msra.mxu0 %v167
    %2271 = vmatprep.subr.bf16.mxu0 0
    %2272 = vmatpush1.bf16.msra.mxu0 %v168
    %2273 = vmatprep.subr.bf16.mxu0 0
    %2274 = vmatpush1.bf16.msra.mxu0 %v169
    %2275 = vmatprep.subr.bf16.mxu0 0
    %2276 = vmatpush1.bf16.msra.mxu0 %v170
    %2277 = vmatprep.subr.bf16.mxu0 0
    %2278 = vmatpush1.bf16.msra.mxu0 %v171
    %2279 = vmatprep.subr.bf16.mxu0 0
    %2280 = vmatpush1.bf16.msra.mxu0 %v172
    %2281 = vmatprep.subr.bf16.mxu0 0
    %2282 = vmatpush1.bf16.msra.mxu0 %v173
    %2283 = vmatprep.subr.bf16.mxu0 0
    %2284 = vmatpush1.bf16.msra.mxu0 %v174
    %2285 = vmatprep.subr.bf16.mxu0 0
    %2286 = vmatpush1.bf16.msra.mxu0 %v175
    %2287 = vmatprep.subr.bf16.mxu0 0
    %2288 = vmatpush1.bf16.msra.mxu0 %v176
    %2289 = vmatprep.subr.bf16.mxu0 0
    %2290 = vmatpush1.bf16.msra.mxu0 %v177
    %2291 = vmatprep.subr.bf16.mxu0 0
    %2292 = vmatpush1.bf16.msra.mxu0 %v178
    %2293 = vmatprep.mubr.bf16.mxu0 %v2254
    %2294 = vmatmul.mubr.bf16.gmra.mrb[0].mxu0 %v2253
    %v2295 = vpop.f32.mrb[0].mxu0
    %v2296 = vadd.f32 %v80, %v2295
    %v2297 = vpop.f32.mrb[0].mxu0
    %v2298 = vpop.f32.mrb[0].mxu0
    %v2299 = vadd.f32 %v80, %v2298
    %v2300 = vpop.f32.mrb[0].mxu0
    %2301 = vmatprep.mubr.bf16.mxu0 %v2256
    %2302 = vmatmul.mubr.bf16.gmra.mrb[0].mxu0 %v2255
    %v2303 = vpop.f32.mrb[0].mxu0
    %v2304 = vadd.f32 %v80, %v2303
    %v2305 = vpop.f32.mrb[0].mxu0
    %v2306 = vpop.f32.mrb[0].mxu0
    %v2307 = vpop.f32.mrb[0].mxu0
    %2308 = vdwg.mxu0
    %v2309 = vmax.f32 %v2296, 0.0
    %v2310 = vmax.f32 %v2299, 0.0
    %v2311 = vmax.f32 %v2304, 0.0
    %v2312 = vpack.c.bf16 %v2310, %v2309
    %v2313 = vpack.c.bf16 %v2311, %v2311
    %s2314 = scalar_lea.vmem %s3, 224
    %v2315 = vld [vmem:[%s2314] sm:$0xf]
    %v2316 = vld [vmem:[%s2314 + $0x4] sm:$0xf]
    %v2317 = vld [vmem:[%s2314 + $0x8] sm:$0xf]
    %v2318 = vld [vmem:[%s2314 + $0xc] sm:$0xf]
    %v2323 = vunpack.c.l.b16 %v2315
    %v2324 = vunpack.c.l.b16 %v2316
    %v2325 = vunpack.c.l.b16 %v2317
    %v2326 = vunpack.c.l.b16 %v2318
    %v2327 = vpack.c.b16 %v2324, %v2323
    %v2328 = vpack.c.b16 %v2326, %v2325
    %v2332 = vsel %vm343, %v2312, 0
    %v2335 = vsel %vm343, %v2313, 0
    %2337 = vmatprep.subr.bf16.mxu0 0
    %2338 = vmatpush1.bf16.msra.mxu0 %v2327
    %2339 = vmatprep.subr.bf16.mxu0 0
    %2340 = vmatpush1.bf16.msra.mxu0 %v2328
    %2341 = vmatprep.subr.bf16.mxu0 0
    %2342 = vmatpush1.bf16.msra.mxu0 0
    %2343 = vmatprep.subr.bf16.mxu0 0
    %2344 = vmatpush1.bf16.msra.mxu0 0
    %2345 = vmatprep.subr.bf16.mxu0 0
    %2346 = vmatpush1.bf16.msra.mxu0 0
    %2347 = vmatprep.subr.bf16.mxu0 0
    %2348 = vmatpush1.bf16.msra.mxu0 0
    %2349 = vmatprep.subr.bf16.mxu0 0
    %2350 = vmatpush1.bf16.msra.mxu0 0
    %2351 = vmatprep.subr.bf16.mxu0 0
    %2352 = vmatpush1.bf16.msra.mxu0 0
    %2353 = vmatprep.subr.bf16.mxu0 0
    %2354 = vmatpush1.bf16.msra.mxu0 0
    %2355 = vmatprep.subr.bf16.mxu0 0
    %2356 = vmatpush1.bf16.msra.mxu0 0
    %2357 = vmatprep.subr.bf16.mxu0 0
    %2358 = vmatpush1.bf16.msra.mxu0 0
    %2359 = vmatprep.subr.bf16.mxu0 0
    %2360 = vmatpush1.bf16.msra.mxu0 0
    %2361 = vmatprep.subr.bf16.mxu0 0
    %2362 = vmatpush1.bf16.msra.mxu0 0
    %2363 = vmatprep.subr.bf16.mxu0 0
    %2364 = vmatpush1.bf16.msra.mxu0 0
    %2365 = vmatprep.subr.bf16.mxu0 0
    %2366 = vmatpush1.bf16.msra.mxu0 0
    %2367 = vmatprep.subr.bf16.mxu0 0
    %2368 = vmatpush1.bf16.msra.mxu0 0
    %2369 = vmatprep.mubr.bf16.mxu0 0
    %2370 = vmatmul.mubr.bf16.gmra.mrb[0].mxu0 %v2332
    %v2371 = vpop.f32.mrb[0].mxu0
    %v2372 = vadd.f32 0.0, %v2371
    %v2373 = vpop.f32.mrb[0].mxu0
    %v2374 = vpop.f32.mrb[0].mxu0
    %v2375 = vadd.f32 0.0, %v2374
    %v2376 = vpop.f32.mrb[0].mxu0
    %2377 = vmatprep.mubr.bf16.mxu0 0
    %2378 = vmatmul.mubr.bf16.gmra.mrb[0].mxu0 %v2335
    %v2379 = vpop.f32.mrb[0].mxu0
    %v2380 = vadd.f32 0.0, %v2379
    %v2381 = vpop.f32.mrb[0].mxu0
    %v2382 = vpop.f32.mrb[0].mxu0
    %v2383 = vpop.f32.mrb[0].mxu0
    %2384 = vdwg.mxu0
    %v2385 = vadd.f32 %v2237, %v2372
    %v2386 = vadd.f32 %v2238, %v2375
    %v2387 = vadd.f32 %v2239, %v2380
    %s2388 = scalar_lea.vmem %s0, 360
    %v2389 = vld [vmem:[%s2388] sm:$0xff]
    %v2390 = vld [vmem:[%s2388 + $0x8] sm:$0xff]
    %v2391 = vld [vmem:[%s2388 + $0x10] sm:$0x11]
    %v2395 = vunpack.c.l.b16 %v2389
    %v2396 = vunpack.c.h.b16 %v2389
    %v2397 = vunpack.c.l.b16 %v2390
    %v2398 = vunpack.c.h.b16 %v2390
    %v2399 = vunpack.c.l.b16 %v2391
    %v2400 = vunpack.c.h.b16 %v2391
    %v2401 = vpack.c.b16 %v2397, %v2395
    %v2402 = vpack.c.b16 %v2398, %v2396
    %v2403 = vpack.c.b16 %v2399, %v2399
    %v2404 = vpack.c.b16 %v2400, %v2400
    %2409 = vmatprep.subr.bf16.mxu0 0
    %2410 = vmatpush1.bf16.msra.mxu0 %v163
    %2411 = vmatprep.subr.bf16.mxu0 0
    %2412 = vmatpush1.bf16.msra.mxu0 %v164
    %2413 = vmatprep.subr.bf16.mxu0 0
    %2414 = vmatpush1.bf16.msra.mxu0 %v165
    %2415 = vmatprep.subr.bf16.mxu0 0
    %2416 = vmatpush1.bf16.msra.mxu0 %v166
    %2417 = vmatprep.subr.bf16.mxu0 0
    %2418 = vmatpush1.bf16.msra.mxu0 %v167
    %2419 = vmatprep.subr.bf16.mxu0 0
    %2420 = vmatpush1.bf16.msra.mxu0 %v168
    %2421 = vmatprep.subr.bf16.mxu0 0
    %2422 = vmatpush1.bf16.msra.mxu0 %v169
    %2423 = vmatprep.subr.bf16.mxu0 0
    %2424 = vmatpush1.bf16.msra.mxu0 %v170
    %2425 = vmatprep.subr.bf16.mxu0 0
    %2426 = vmatpush1.bf16.msra.mxu0 %v171
    %2427 = vmatprep.subr.bf16.mxu0 0
    %2428 = vmatpush1.bf16.msra.mxu0 %v172
    %2429 = vmatprep.subr.bf16.mxu0 0
    %2430 = vmatpush1.bf16.msra.mxu0 %v173
    %2431 = vmatprep.subr.bf16.mxu0 0
    %2432 = vmatpush1.bf16.msra.mxu0 %v174
    %2433 = vmatprep.subr.bf16.mxu0 0
    %2434 = vmatpush1.bf16.msra.mxu0 %v175
    %2435 = vmatprep.subr.bf16.mxu0 0
    %2436 = vmatpush1.bf16.msra.mxu0 %v176
    %2437 = vmatprep.subr.bf16.mxu0 0
    %2438 = vmatpush1.bf16.msra.mxu0 %v177
    %2439 = vmatprep.subr.bf16.mxu0 0
    %2440 = vmatpush1.bf16.msra.mxu0 %v178
    %2441 = vmatprep.mubr.bf16.mxu0 %v2402
    %2442 = vmatmul.mubr.bf16.gmra.mrb[0].mxu0 %v2401
    %v2443 = vpop.f32.mrb[0].mxu0
    %v2444 = vadd.f32 %v80, %v2443
    %v2445 = vpop.f32.mrb[0].mxu0
    %v2446 = vpop.f32.mrb[0].mxu0
    %v2447 = vadd.f32 %v80, %v2446
    %v2448 = vpop.f32.mrb[0].mxu0
    %2449 = vmatprep.mubr.bf16.mxu0 %v2404
    %2450 = vmatmul.mubr.bf16.gmra.mrb[0].mxu0 %v2403
    %v2451 = vpop.f32.mrb[0].mxu0
    %v2452 = vadd.f32 %v80, %v2451
    %v2453 = vpop.f32.mrb[0].mxu0
    %v2454 = vpop.f32.mrb[0].mxu0
    %v2455 = vpop.f32.mrb[0].mxu0
    %2456 = vdwg.mxu0
    %v2457 = vmax.f32 %v2444, 0.0
    %v2458 = vmax.f32 %v2447, 0.0
    %v2459 = vmax.f32 %v2452, 0.0
    %v2460 = vpack.c.bf16 %v2458, %v2457
    %v2461 = vpack.c.bf16 %v2459, %v2459
    %s2462 = scalar_lea.vmem %s3, 240
    %v2463 = vld [vmem:[%s2462] sm:$0xf]
    %v2464 = vld [vmem:[%s2462 + $0x4] sm:$0xf]
    %v2465 = vld [vmem:[%s2462 + $0x8] sm:$0xf]
    %v2466 = vld [vmem:[%s2462 + $0xc] sm:$0xf]
    %v2471 = vunpack.c.l.b16 %v2463
    %v2472 = vunpack.c.l.b16 %v2464
    %v2473 = vunpack.c.l.b16 %v2465
    %v2474 = vunpack.c.l.b16 %v2466
    %v2475 = vpack.c.b16 %v2472, %v2471
    %v2476 = vpack.c.b16 %v2474, %v2473
    %v2480 = vsel %vm343, %v2460, 0
    %v2483 = vsel %vm343, %v2461, 0
    %2485 = vmatprep.subr.bf16.mxu0 0
    %2486 = vmatpush1.bf16.msra.mxu0 %v2475
    %2487 = vmatprep.subr.bf16.mxu0 0
    %2488 = vmatpush1.bf16.msra.mxu0 %v2476
    %2489 = vmatprep.subr.bf16.mxu0 0
    %2490 = vmatpush1.bf16.msra.mxu0 0
    %2491 = vmatprep.subr.bf16.mxu0 0
    %2492 = vmatpush1.bf16.msra.mxu0 0
    %2493 = vmatprep.subr.bf16.mxu0 0
    %2494 = vmatpush1.bf16.msra.mxu0 0
    %2495 = vmatprep.subr.bf16.mxu0 0
    %2496 = vmatpush1.bf16.msra.mxu0 0
    %2497 = vmatprep.subr.bf16.mxu0 0
    %2498 = vmatpush1.bf16.msra.mxu0 0
    %2499 = vmatprep.subr.bf16.mxu0 0
    %2500 = vmatpush1.bf16.msra.mxu0 0
    %2501 = vmatprep.subr.bf16.mxu0 0
    %2502 = vmatpush1.bf16.msra.mxu0 0
    %2503 = vmatprep.subr.bf16.mxu0 0
    %2504 = vmatpush1.bf16.msra.mxu0 0
    %2505 = vmatprep.subr.bf16.mxu0 0
    %2506 = vmatpush1.bf16.msra.mxu0 0
    %2507 = vmatprep.subr.bf16.mxu0 0
    %2508 = vmatpush1.bf16.msra.mxu0 0
    %2509 = vmatprep.subr.bf16.mxu0 0
    %2510 = vmatpush1.bf16.msra.mxu0 0
    %2511 = vmatprep.subr.bf16.mxu0 0
    %2512 = vmatpush1.bf16.msra.mxu0 0
    %2513 = vmatprep.subr.bf16.mxu0 0
    %2514 = vmatpush1.bf16.msra.mxu0 0
    %2515 = vmatprep.subr.bf16.mxu0 0
    %2516 = vmatpush1.bf16.msra.mxu0 0
    %2517 = vmatprep.mubr.bf16.mxu0 0
    %2518 = vmatmul.mubr.bf16.gmra.mrb[0].mxu0 %v2480
    %v2519 = vpop.f32.mrb[0].mxu0
    %v2520 = vadd.f32 0.0, %v2519
    %v2521 = vpop.f32.mrb[0].mxu0
    %v2522 = vpop.f32.mrb[0].mxu0
    %v2523 = vadd.f32 0.0, %v2522
    %v2524 = vpop.f32.mrb[0].mxu0
    %2525 = vmatprep.mubr.bf16.mxu0 0
    %2526 = vmatmul.mubr.bf16.gmra.mrb[0].mxu0 %v2483
    %v2527 = vpop.f32.mrb[0].mxu0
    %v2528 = vadd.f32 0.0, %v2527
    %v2529 = vpop.f32.mrb[0].mxu0
    %v2530 = vpop.f32.mrb[0].mxu0
    %v2531 = vpop.f32.mrb[0].mxu0
    %2532 = vdwg.mxu0
    %v2533 = vadd.f32 %v2385, %v2520
    %v2534 = vadd.f32 %v2386, %v2523
    %v2535 = vadd.f32 %v2387, %v2528
    %v2536 = vld [vmem:[%s4] sm:$0x1]
    %v2538 = vlaneseq
    %v2539 = vshrl.u32 %v2538, 7
    %v2540 = vsub.s32 0, %v2539
    %v2541 = vrot.slane %v2536, %v2540
    %v2543 = vadd.f32 %v2533, %v2541
    %v2544 = vadd.f32 %v2534, %v2541
    %v2545 = vadd.f32 %v2535, %v2541
    %v2546 = vmax.f32 %v2543, 0.0
    %v2547 = vmax.f32 %v2544, 0.0
    %v2548 = vmax.f32 %v2545, 0.0
    %v2549 = vpack.c.bf16 %v2547, %v2546
    %v2550 = vpack.c.bf16 %v2548, %v2548
    %v2553 = vunpack.c.l.b16 %v2549
    %v2554 = vunpack.c.h.b16 %v2549
    %v2555 = vunpack.c.l.b16 %v2550
    %v2556 = vpack.c.b16 %v2553, %v2553
    %v2557 = vpack.c.b16 %v2554, %v2554
    %v2558 = vpack.c.b16 %v2555, %v2555
    %vm2562 = vcmask 519168
    %2563 = vst.msk [vmem:[#allocation2] sm:$0xf] %vm2562, %v2556
    %2564 = vst.msk [vmem:[#allocation2 + $0x4] sm:$0xf] %vm2562, %v2557
    %vm2565 = vcmask 516096
    %2566 = vst.msk [vmem:[#allocation2 + $0x8] sm:$0x1] %vm2565, %v2558
    %v2567 = vld [vmem:[#allocation2] sm:$0x1]
    %v2568 = vld [vmem:[%s5] sm:$0xf]
    %v2569 = vld [vmem:[%s5 + $0x4] sm:$0xf]
    %v2570 = vld [vmem:[%s5 + $0x8] sm:$0xf]
    %v2571 = vld [vmem:[%s5 + $0xc] sm:$0xf]
    %v2572 = vld [vmem:[%s5 + $0x10] sm:$0xf]
    %v2573 = vld [vmem:[%s5 + $0x14] sm:$0xf]
    %v2574 = vld [vmem:[%s5 + $0x18] sm:$0xf]
    %v2575 = vld [vmem:[%s5 + $0x1c] sm:$0xf]
    %v2576 = vld [vmem:[#allocation2] sm:$0x2]
    %s2577 = scalar_lea.vmem %s5, 32
    %v2578 = vld [vmem:[%s2577] sm:$0xf]
    %v2579 = vld [vmem:[%s2577 + $0x4] sm:$0xf]
    %v2580 = vld [vmem:[%s2577 + $0x8] sm:$0xf]
    %v2581 = vld [vmem:[%s2577 + $0xc] sm:$0xf]
    %v2582 = vld [vmem:[%s2577 + $0x10] sm:$0xf]
    %v2583 = vld [vmem:[%s2577 + $0x14] sm:$0xf]
    %v2584 = vld [vmem:[%s2577 + $0x18] sm:$0xf]
    %v2585 = vld [vmem:[%s2577 + $0x1c] sm:$0xf]
    %v2587 = vunpack.c.l.b16 %v2576
    %v2588 = vpack.c.b16 %v2587, %v2587
    %v2589 = vrot.slane %v2588, 1
    %v2598 = vunpack.c.l.b16 %v2578
    %v2599 = vunpack.c.l.b16 %v2579
    %v2600 = vunpack.c.l.b16 %v2580
    %v2601 = vunpack.c.l.b16 %v2581
    %v2602 = vunpack.c.l.b16 %v2582
    %v2603 = vunpack.c.l.b16 %v2583
    %v2604 = vunpack.c.l.b16 %v2584
    %v2605 = vunpack.c.l.b16 %v2585
    %v2606 = vpack.c.b16 %v2599, %v2598
    %v2607 = vpack.c.b16 %v2601, %v2600
    %v2608 = vpack.c.b16 %v2603, %v2602
    %v2609 = vpack.c.b16 %v2605, %v2604
    %vm2614 = vcmask 523264
    %v2616 = vsel %vm2614, %v2589, 0
    %2618 = vmatprep.subr.bf16.mxu0 0
    %2619 = vmatpush1.bf16.msra.mxu0 %v2606
    %2620 = vmatprep.subr.bf16.mxu0 0
    %2621 = vmatpush1.bf16.msra.mxu0 %v2607
    %2622 = vmatprep.subr.bf16.mxu0 0
    %2623 = vmatpush1.bf16.msra.mxu0 %v2608
    %2624 = vmatprep.subr.bf16.mxu0 0
    %2625 = vmatpush1.bf16.msra.mxu0 %v2609
    %2626 = vmatprep.subr.bf16.mxu0 0
    %2627 = vmatpush1.bf16.msra.mxu0 0
    %2628 = vmatprep.subr.bf16.mxu0 0
    %2629 = vmatpush1.bf16.msra.mxu0 0
    %2630 = vmatprep.subr.bf16.mxu0 0
    %2631 = vmatpush1.bf16.msra.mxu0 0
    %2632 = vmatprep.subr.bf16.mxu0 0
    %2633 = vmatpush1.bf16.msra.mxu0 0
    %2634 = vmatprep.subr.bf16.mxu0 0
    %2635 = vmatpush1.bf16.msra.mxu0 0
    %2636 = vmatprep.subr.bf16.mxu0 0
    %2637 = vmatpush1.bf16.msra.mxu0 0
    %2638 = vmatprep.subr.bf16.mxu0 0
    %2639 = vmatpush1.bf16.msra.mxu0 0
    %2640 = vmatprep.subr.bf16.mxu0 0
    %2641 = vmatpush1.bf16.msra.mxu0 0
    %2642 = vmatprep.subr.bf16.mxu0 0
    %2643 = vmatpush1.bf16.msra.mxu0 0
    %2644 = vmatprep.subr.bf16.mxu0 0
    %2645 = vmatpush1.bf16.msra.mxu0 0
    %2646 = vmatprep.subr.bf16.mxu0 0
    %2647 = vmatpush1.bf16.msra.mxu0 0
    %2648 = vmatprep.subr.bf16.mxu0 0
    %2649 = vmatpush1.bf16.msra.mxu0 0
    %2650 = vmatprep.mubr.bf16.mxu0 0
    %2651 = vmatmul.mubr.bf16.gmra.mrb[0].mxu0 %v2616
    %v2652 = vpop.f32.mrb[0].mxu0
    %v2653 = vadd.f32 0.0, %v2652
    %v2654 = vpop.f32.mrb[0].mxu0
    %v2655 = vpop.f32.mrb[0].mxu0
    %v2656 = vpop.f32.mrb[0].mxu0
    %2657 = vdwg.mxu0
    %v2666 = vunpack.c.l.b16 %v2568
    %v2667 = vunpack.c.l.b16 %v2569
    %v2668 = vunpack.c.l.b16 %v2570
    %v2669 = vunpack.c.l.b16 %v2571
    %v2670 = vunpack.c.l.b16 %v2572
    %v2671 = vunpack.c.l.b16 %v2573
    %v2672 = vunpack.c.l.b16 %v2574
    %v2673 = vunpack.c.l.b16 %v2575
    %v2674 = vpack.c.b16 %v2667, %v2666
    %v2675 = vpack.c.b16 %v2669, %v2668
    %v2676 = vpack.c.b16 %v2671, %v2670
    %v2677 = vpack.c.b16 %v2673, %v2672
    %v2683 = vsel %vm2614, %v2567, 0
    %2685 = vmatprep.subr.bf16.mxu0 0
    %2686 = vmatpush1.bf16.msra.mxu0 %v2674
    %2687 = vmatprep.subr.bf16.mxu0 0
    %2688 = vmatpush1.bf16.msra.mxu0 %v2675
    %2689 = vmatprep.subr.bf16.mxu0 0
    %2690 = vmatpush1.bf16.msra.mxu0 %v2676
    %2691 = vmatprep.subr.bf16.mxu0 0
    %2692 = vmatpush1.bf16.msra.mxu0 %v2677
    %2693 = vmatprep.subr.bf16.mxu0 0
    %2694 = vmatpush1.bf16.msra.mxu0 0
    %2695 = vmatprep.subr.bf16.mxu0 0
    %2696 = vmatpush1.bf16.msra.mxu0 0
    %2697 = vmatprep.subr.bf16.mxu0 0
    %2698 = vmatpush1.bf16.msra.mxu0 0
    %2699 = vmatprep.subr.bf16.mxu0 0
    %2700 = vmatpush1.bf16.msra.mxu0 0
    %2701 = vmatprep.subr.bf16.mxu0 0
    %2702 = vmatpush1.bf16.msra.mxu0 0
    %2703 = vmatprep.subr.bf16.mxu0 0
    %2704 = vmatpush1.bf16.msra.mxu0 0
    %2705 = vmatprep.subr.bf16.mxu0 0
    %2706 = vmatpush1.bf16.msra.mxu0 0
    %2707 = vmatprep.subr.bf16.mxu0 0
    %2708 = vmatpush1.bf16.msra.mxu0 0
    %2709 = vmatprep.subr.bf16.mxu0 0
    %2710 = vmatpush1.bf16.msra.mxu0 0
    %2711 = vmatprep.subr.bf16.mxu0 0
    %2712 = vmatpush1.bf16.msra.mxu0 0
    %2713 = vmatprep.subr.bf16.mxu0 0
    %2714 = vmatpush1.bf16.msra.mxu0 0
    %2715 = vmatprep.subr.bf16.mxu0 0
    %2716 = vmatpush1.bf16.msra.mxu0 0
    %2717 = vmatprep.mubr.bf16.mxu0 0
    %2718 = vmatmul.mubr.bf16.gmra.mrb[0].mxu0 %v2683
    %v2719 = vpop.f32.mrb[0].mxu0
    %v2720 = vadd.f32 %v2653, %v2719
    %v2721 = vpop.f32.mrb[0].mxu0
    %v2722 = vpop.f32.mrb[0].mxu0
    %v2723 = vpop.f32.mrb[0].mxu0
    %2724 = vdwg.mxu0
    %v2725 = vld [vmem:[#allocation2] sm:$0x4]
    %s2726 = scalar_lea.vmem %s5, 64
    %v2727 = vld [vmem:[%s2726] sm:$0xf]
    %v2728 = vld [vmem:[%s2726 + $0x4] sm:$0xf]
    %v2729 = vld [vmem:[%s2726 + $0x8] sm:$0xf]
    %v2730 = vld [vmem:[%s2726 + $0xc] sm:$0xf]
    %v2731 = vld [vmem:[%s2726 + $0x10] sm:$0xf]
    %v2732 = vld [vmem:[%s2726 + $0x14] sm:$0xf]
    %v2733 = vld [vmem:[%s2726 + $0x18] sm:$0xf]
    %v2734 = vld [vmem:[%s2726 + $0x1c] sm:$0xf]
    %v2736 = vunpack.c.l.b16 %v2725
    %v2737 = vpack.c.b16 %v2736, %v2736
    %v2738 = vrot.slane %v2737, 2
    %v2747 = vunpack.c.l.b16 %v2727
    %v2748 = vunpack.c.l.b16 %v2728
    %v2749 = vunpack.c.l.b16 %v2729
    %v2750 = vunpack.c.l.b16 %v2730
    %v2751 = vunpack.c.l.b16 %v2731
    %v2752 = vunpack.c.l.b16 %v2732
    %v2753 = vunpack.c.l.b16 %v2733
    %v2754 = vunpack.c.l.b16 %v2734
    %v2755 = vpack.c.b16 %v2748, %v2747
    %v2756 = vpack.c.b16 %v2750, %v2749
    %v2757 = vpack.c.b16 %v2752, %v2751
    %v2758 = vpack.c.b16 %v2754, %v2753
    %v2764 = vsel %vm2614, %v2738, 0
    %2766 = vmatprep.subr.bf16.mxu0 0
    %2767 = vmatpush1.bf16.msra.mxu0 %v2755
    %2768 = vmatprep.subr.bf16.mxu0 0
    %2769 = vmatpush1.bf16.msra.mxu0 %v2756
    %2770 = vmatprep.subr.bf16.mxu0 0
    %2771 = vmatpush1.bf16.msra.mxu0 %v2757
    %2772 = vmatprep.subr.bf16.mxu0 0
    %2773 = vmatpush1.bf16.msra.mxu0 %v2758
    %2774 = vmatprep.subr.bf16.mxu0 0
    %2775 = vmatpush1.bf16.msra.mxu0 0
    %2776 = vmatprep.subr.bf16.mxu0 0
    %2777 = vmatpush1.bf16.msra.mxu0 0
    %2778 = vmatprep.subr.bf16.mxu0 0
    %2779 = vmatpush1.bf16.msra.mxu0 0
    %2780 = vmatprep.subr.bf16.mxu0 0
    %2781 = vmatpush1.bf16.msra.mxu0 0
    %2782 = vmatprep.subr.bf16.mxu0 0
    %2783 = vmatpush1.bf16.msra.mxu0 0
    %2784 = vmatprep.subr.bf16.mxu0 0
    %2785 = vmatpush1.bf16.msra.mxu0 0
    %2786 = vmatprep.subr.bf16.mxu0 0
    %2787 = vmatpush1.bf16.msra.mxu0 0
    %2788 = vmatprep.subr.bf16.mxu0 0
    %2789 = vmatpush1.bf16.msra.mxu0 0
    %2790 = vmatprep.subr.bf16.mxu0 0
    %2791 = vmatpush1.bf16.msra.mxu0 0
    %2792 = vmatprep.subr.bf16.mxu0 0
    %2793 = vmatpush1.bf16.msra.mxu0 0
    %2794 = vmatprep.subr.bf16.mxu0 0
    %2795 = vmatpush1.bf16.msra.mxu0 0
    %2796 = vmatprep.subr.bf16.mxu0 0
    %2797 = vmatpush1.bf16.msra.mxu0 0
    %2798 = vmatprep.mubr.bf16.mxu0 0
    %2799 = vmatmul.mubr.bf16.gmra.mrb[0].mxu0 %v2764
    %v2800 = vpop.f32.mrb[0].mxu0
    %v2801 = vadd.f32 0.0, %v2800
    %v2802 = vpop.f32.mrb[0].mxu0
    %v2803 = vpop.f32.mrb[0].mxu0
    %v2804 = vpop.f32.mrb[0].mxu0
    %2805 = vdwg.mxu0
    %v2806 = vadd.f32 %v2720, %v2801
    %v2807 = vld [vmem:[#allocation2] sm:$0x8]
    %s2808 = scalar_lea.vmem %s5, 96
    %v2809 = vld [vmem:[%s2808] sm:$0xf]
    %v2810 = vld [vmem:[%s2808 + $0x4] sm:$0xf]
    %v2811 = vld [vmem:[%s2808 + $0x8] sm:$0xf]
    %v2812 = vld [vmem:[%s2808 + $0xc] sm:$0xf]
    %v2813 = vld [vmem:[%s2808 + $0x10] sm:$0xf]
    %v2814 = vld [vmem:[%s2808 + $0x14] sm:$0xf]
    %v2815 = vld [vmem:[%s2808 + $0x18] sm:$0xf]
    %v2816 = vld [vmem:[%s2808 + $0x1c] sm:$0xf]
    %v2818 = vunpack.c.l.b16 %v2807
    %v2819 = vpack.c.b16 %v2818, %v2818
    %v2820 = vrot.slane %v2819, 3
    %v2829 = vunpack.c.l.b16 %v2809
    %v2830 = vunpack.c.l.b16 %v2810
    %v2831 = vunpack.c.l.b16 %v2811
    %v2832 = vunpack.c.l.b16 %v2812
    %v2833 = vunpack.c.l.b16 %v2813
    %v2834 = vunpack.c.l.b16 %v2814
    %v2835 = vunpack.c.l.b16 %v2815
    %v2836 = vunpack.c.l.b16 %v2816
    %v2837 = vpack.c.b16 %v2830, %v2829
    %v2838 = vpack.c.b16 %v2832, %v2831
    %v2839 = vpack.c.b16 %v2834, %v2833
    %v2840 = vpack.c.b16 %v2836, %v2835
    %v2846 = vsel %vm2614, %v2820, 0
    %2848 = vmatprep.subr.bf16.mxu0 0
    %2849 = vmatpush1.bf16.msra.mxu0 %v2837
    %2850 = vmatprep.subr.bf16.mxu0 0
    %2851 = vmatpush1.bf16.msra.mxu0 %v2838
    %2852 = vmatprep.subr.bf16.mxu0 0
    %2853 = vmatpush1.bf16.msra.mxu0 %v2839
    %2854 = vmatprep.subr.bf16.mxu0 0
    %2855 = vmatpush1.bf16.msra.mxu0 %v2840
    %2856 = vmatprep.subr.bf16.mxu0 0
    %2857 = vmatpush1.bf16.msra.mxu0 0
    %2858 = vmatprep.subr.bf16.mxu0 0
    %2859 = vmatpush1.bf16.msra.mxu0 0
    %2860 = vmatprep.subr.bf16.mxu0 0
    %2861 = vmatpush1.bf16.msra.mxu0 0
    %2862 = vmatprep.subr.bf16.mxu0 0
    %2863 = vmatpush1.bf16.msra.mxu0 0
    %2864 = vmatprep.subr.bf16.mxu0 0
    %2865 = vmatpush1.bf16.msra.mxu0 0
    %2866 = vmatprep.subr.bf16.mxu0 0
    %2867 = vmatpush1.bf16.msra.mxu0 0
    %2868 = vmatprep.subr.bf16.mxu0 0
    %2869 = vmatpush1.bf16.msra.mxu0 0
    %2870 = vmatprep.subr.bf16.mxu0 0
    %2871 = vmatpush1.bf16.msra.mxu0 0
    %2872 = vmatprep.subr.bf16.mxu0 0
    %2873 = vmatpush1.bf16.msra.mxu0 0
    %2874 = vmatprep.subr.bf16.mxu0 0
    %2875 = vmatpush1.bf16.msra.mxu0 0
    %2876 = vmatprep.subr.bf16.mxu0 0
    %2877 = vmatpush1.bf16.msra.mxu0 0
    %2878 = vmatprep.subr.bf16.mxu0 0
    %2879 = vmatpush1.bf16.msra.mxu0 0
    %2880 = vmatprep.mubr.bf16.mxu0 0
    %2881 = vmatmul.mubr.bf16.gmra.mrb[0].mxu0 %v2846
    %v2882 = vpop.f32.mrb[0].mxu0
    %v2883 = vadd.f32 0.0, %v2882
    %v2884 = vpop.f32.mrb[0].mxu0
    %v2885 = vpop.f32.mrb[0].mxu0
    %v2886 = vpop.f32.mrb[0].mxu0
    %2887 = vdwg.mxu0
    %v2888 = vadd.f32 %v2806, %v2883
    %v2889 = vld [vmem:[#allocation2 + $0x4] sm:$0x1]
    %s2890 = scalar_lea.vmem %s5, 128
    %v2891 = vld [vmem:[%s2890] sm:$0xf]
    %v2892 = vld [vmem:[%s2890 + $0x4] sm:$0xf]
    %v2893 = vld [vmem:[%s2890 + $0x8] sm:$0xf]
    %v2894 = vld [vmem:[%s2890 + $0xc] sm:$0xf]
    %v2895 = vld [vmem:[%s2890 + $0x10] sm:$0xf]
    %v2896 = vld [vmem:[%s2890 + $0x14] sm:$0xf]
    %v2897 = vld [vmem:[%s2890 + $0x18] sm:$0xf]
    %v2898 = vld [vmem:[%s2890 + $0x1c] sm:$0xf]
    %v2907 = vunpack.c.l.b16 %v2891
    %v2908 = vunpack.c.l.b16 %v2892
    %v2909 = vunpack.c.l.b16 %v2893
    %v2910 = vunpack.c.l.b16 %v2894
    %v2911 = vunpack.c.l.b16 %v2895
    %v2912 = vunpack.c.l.b16 %v2896
    %v2913 = vunpack.c.l.b16 %v2897
    %v2914 = vunpack.c.l.b16 %v2898
    %v2915 = vpack.c.b16 %v2908, %v2907
    %v2916 = vpack.c.b16 %v2910, %v2909
    %v2917 = vpack.c.b16 %v2912, %v2911
    %v2918 = vpack.c.b16 %v2914, %v2913
    %v2924 = vsel %vm2614, %v2889, 0
    %2926 = vmatprep.subr.bf16.mxu0 0
    %2927 = vmatpush1.bf16.msra.mxu0 %v2915
    %2928 = vmatprep.subr.bf16.mxu0 0
    %2929 = vmatpush1.bf16.msra.mxu0 %v2916
    %2930 = vmatprep.subr.bf16.mxu0 0
    %2931 = vmatpush1.bf16.msra.mxu0 %v2917
    %2932 = vmatprep.subr.bf16.mxu0 0
    %2933 = vmatpush1.bf16.msra.mxu0 %v2918
    %2934 = vmatprep.subr.bf16.mxu0 0
    %2935 = vmatpush1.bf16.msra.mxu0 0
    %2936 = vmatprep.subr.bf16.mxu0 0
    %2937 = vmatpush1.bf16.msra.mxu0 0
    %2938 = vmatprep.subr.bf16.mxu0 0
    %2939 = vmatpush1.bf16.msra.mxu0 0
    %2940 = vmatprep.subr.bf16.mxu0 0
    %2941 = vmatpush1.bf16.msra.mxu0 0
    %2942 = vmatprep.subr.bf16.mxu0 0
    %2943 = vmatpush1.bf16.msra.mxu0 0
    %2944 = vmatprep.subr.bf16.mxu0 0
    %2945 = vmatpush1.bf16.msra.mxu0 0
    %2946 = vmatprep.subr.bf16.mxu0 0
    %2947 = vmatpush1.bf16.msra.mxu0 0
    %2948 = vmatprep.subr.bf16.mxu0 0
    %2949 = vmatpush1.bf16.msra.mxu0 0
    %2950 = vmatprep.subr.bf16.mxu0 0
    %2951 = vmatpush1.bf16.msra.mxu0 0
    %2952 = vmatprep.subr.bf16.mxu0 0
    %2953 = vmatpush1.bf16.msra.mxu0 0
    %2954 = vmatprep.subr.bf16.mxu0 0
    %2955 = vmatpush1.bf16.msra.mxu0 0
    %2956 = vmatprep.subr.bf16.mxu0 0
    %2957 = vmatpush1.bf16.msra.mxu0 0
    %2958 = vmatprep.mubr.bf16.mxu0 0
    %2959 = vmatmul.mubr.bf16.gmra.mrb[0].mxu0 %v2924
    %v2960 = vpop.f32.mrb[0].mxu0
    %v2961 = vadd.f32 0.0, %v2960
    %v2962 = vpop.f32.mrb[0].mxu0
    %v2963 = vpop.f32.mrb[0].mxu0
    %v2964 = vpop.f32.mrb[0].mxu0
    %2965 = vdwg.mxu0
    %v2966 = vadd.f32 %v2888, %v2961
    %v2967 = vld [vmem:[#allocation2 + $0x4] sm:$0x2]
    %s2968 = scalar_lea.vmem %s5, 160
    %v2969 = vld [vmem:[%s2968] sm:$0xf]
    %v2970 = vld [vmem:[%s2968 + $0x4] sm:$0xf]
    %v2971 = vld [vmem:[%s2968 + $0x8] sm:$0xf]
    %v2972 = vld [vmem:[%s2968 + $0xc] sm:$0xf]
    %v2973 = vld [vmem:[%s2968 + $0x10] sm:$0xf]
    %v2974 = vld [vmem:[%s2968 + $0x14] sm:$0xf]
    %v2975 = vld [vmem:[%s2968 + $0x18] sm:$0xf]
    %v2976 = vld [vmem:[%s2968 + $0x1c] sm:$0xf]
    %v2978 = vunpack.c.l.b16 %v2967
    %v2979 = vpack.c.b16 %v2978, %v2978
    %v2980 = vrot.slane %v2979, 1
    %v2989 = vunpack.c.l.b16 %v2969
    %v2990 = vunpack.c.l.b16 %v2970
    %v2991 = vunpack.c.l.b16 %v2971
    %v2992 = vunpack.c.l.b16 %v2972
    %v2993 = vunpack.c.l.b16 %v2973
    %v2994 = vunpack.c.l.b16 %v2974
    %v2995 = vunpack.c.l.b16 %v2975
    %v2996 = vunpack.c.l.b16 %v2976
    %v2997 = vpack.c.b16 %v2990, %v2989
    %v2998 = vpack.c.b16 %v2992, %v2991
    %v2999 = vpack.c.b16 %v2994, %v2993
    %v3000 = vpack.c.b16 %v2996, %v2995
    %v3006 = vsel %vm2614, %v2980, 0
    %3008 = vmatprep.subr.bf16.mxu0 0
    %3009 = vmatpush1.bf16.msra.mxu0 %v2997
    %3010 = vmatprep.subr.bf16.mxu0 0
    %3011 = vmatpush1.bf16.msra.mxu0 %v2998
    %3012 = vmatprep.subr.bf16.mxu0 0
    %3013 = vmatpush1.bf16.msra.mxu0 %v2999
    %3014 = vmatprep.subr.bf16.mxu0 0
    %3015 = vmatpush1.bf16.msra.mxu0 %v3000
    %3016 = vmatprep.subr.bf16.mxu0 0
    %3017 = vmatpush1.bf16.msra.mxu0 0
    %3018 = vmatprep.subr.bf16.mxu0 0
    %3019 = vmatpush1.bf16.msra.mxu0 0
    %3020 = vmatprep.subr.bf16.mxu0 0
    %3021 = vmatpush1.bf16.msra.mxu0 0
    %3022 = vmatprep.subr.bf16.mxu0 0
    %3023 = vmatpush1.bf16.msra.mxu0 0
    %3024 = vmatprep.subr.bf16.mxu0 0
    %3025 = vmatpush1.bf16.msra.mxu0 0
    %3026 = vmatprep.subr.bf16.mxu0 0
    %3027 = vmatpush1.bf16.msra.mxu0 0
    %3028 = vmatprep.subr.bf16.mxu0 0
    %3029 = vmatpush1.bf16.msra.mxu0 0
    %3030 = vmatprep.subr.bf16.mxu0 0
    %3031 = vmatpush1.bf16.msra.mxu0 0
    %3032 = vmatprep.subr.bf16.mxu0 0
    %3033 = vmatpush1.bf16.msra.mxu0 0
    %3034 = vmatprep.subr.bf16.mxu0 0
    %3035 = vmatpush1.bf16.msra.mxu0 0
    %3036 = vmatprep.subr.bf16.mxu0 0
    %3037 = vmatpush1.bf16.msra.mxu0 0
    %3038 = vmatprep.subr.bf16.mxu0 0
    %3039 = vmatpush1.bf16.msra.mxu0 0
    %3040 = vmatprep.mubr.bf16.mxu0 0
    %3041 = vmatmul.mubr.bf16.gmra.mrb[0].mxu0 %v3006
    %v3042 = vpop.f32.mrb[0].mxu0
    %v3043 = vadd.f32 0.0, %v3042
    %v3044 = vpop.f32.mrb[0].mxu0
    %v3045 = vpop.f32.mrb[0].mxu0
    %v3046 = vpop.f32.mrb[0].mxu0
    %3047 = vdwg.mxu0
    %v3048 = vadd.f32 %v2966, %v3043
    %v3049 = vld [vmem:[#allocation2 + $0x4] sm:$0x4]
    %s3050 = scalar_lea.vmem %s5, 192
    %v3051 = vld [vmem:[%s3050] sm:$0xf]
    %v3052 = vld [vmem:[%s3050 + $0x4] sm:$0xf]
    %v3053 = vld [vmem:[%s3050 + $0x8] sm:$0xf]
    %v3054 = vld [vmem:[%s3050 + $0xc] sm:$0xf]
    %v3055 = vld [vmem:[%s3050 + $0x10] sm:$0xf]
    %v3056 = vld [vmem:[%s3050 + $0x14] sm:$0xf]
    %v3057 = vld [vmem:[%s3050 + $0x18] sm:$0xf]
    %v3058 = vld [vmem:[%s3050 + $0x1c] sm:$0xf]
    %v3060 = vunpack.c.l.b16 %v3049
    %v3061 = vpack.c.b16 %v3060, %v3060
    %v3062 = vrot.slane %v3061, 2
    %v3071 = vunpack.c.l.b16 %v3051
    %v3072 = vunpack.c.l.b16 %v3052
    %v3073 = vunpack.c.l.b16 %v3053
    %v3074 = vunpack.c.l.b16 %v3054
    %v3075 = vunpack.c.l.b16 %v3055
    %v3076 = vunpack.c.l.b16 %v3056
    %v3077 = vunpack.c.l.b16 %v3057
    %v3078 = vunpack.c.l.b16 %v3058
    %v3079 = vpack.c.b16 %v3072, %v3071
    %v3080 = vpack.c.b16 %v3074, %v3073
    %v3081 = vpack.c.b16 %v3076, %v3075
    %v3082 = vpack.c.b16 %v3078, %v3077
    %v3088 = vsel %vm2614, %v3062, 0
    %3090 = vmatprep.subr.bf16.mxu0 0
    %3091 = vmatpush1.bf16.msra.mxu0 %v3079
    %3092 = vmatprep.subr.bf16.mxu0 0
    %3093 = vmatpush1.bf16.msra.mxu0 %v3080
    %3094 = vmatprep.subr.bf16.mxu0 0
    %3095 = vmatpush1.bf16.msra.mxu0 %v3081
    %3096 = vmatprep.subr.bf16.mxu0 0
    %3097 = vmatpush1.bf16.msra.mxu0 %v3082
    %3098 = vmatprep.subr.bf16.mxu0 0
    %3099 = vmatpush1.bf16.msra.mxu0 0
    %3100 = vmatprep.subr.bf16.mxu0 0
    %3101 = vmatpush1.bf16.msra.mxu0 0
    %3102 = vmatprep.subr.bf16.mxu0 0
    %3103 = vmatpush1.bf16.msra.mxu0 0
    %3104 = vmatprep.subr.bf16.mxu0 0
    %3105 = vmatpush1.bf16.msra.mxu0 0
    %3106 = vmatprep.subr.bf16.mxu0 0
    %3107 = vmatpush1.bf16.msra.mxu0 0
    %3108 = vmatprep.subr.bf16.mxu0 0
    %3109 = vmatpush1.bf16.msra.mxu0 0
    %3110 = vmatprep.subr.bf16.mxu0 0
    %3111 = vmatpush1.bf16.msra.mxu0 0
    %3112 = vmatprep.subr.bf16.mxu0 0
    %3113 = vmatpush1.bf16.msra.mxu0 0
    %3114 = vmatprep.subr.bf16.mxu0 0
    %3115 = vmatpush1.bf16.msra.mxu0 0
    %3116 = vmatprep.subr.bf16.mxu0 0
    %3117 = vmatpush1.bf16.msra.mxu0 0
    %3118 = vmatprep.subr.bf16.mxu0 0
    %3119 = vmatpush1.bf16.msra.mxu0 0
    %3120 = vmatprep.subr.bf16.mxu0 0
    %3121 = vmatpush1.bf16.msra.mxu0 0
    %3122 = vmatprep.mubr.bf16.mxu0 0
    %3123 = vmatmul.mubr.bf16.gmra.mrb[0].mxu0 %v3088
    %v3124 = vpop.f32.mrb[0].mxu0
    %v3125 = vadd.f32 0.0, %v3124
    %v3126 = vpop.f32.mrb[0].mxu0
    %v3127 = vpop.f32.mrb[0].mxu0
    %v3128 = vpop.f32.mrb[0].mxu0
    %3129 = vdwg.mxu0
    %v3130 = vadd.f32 %v3048, %v3125
    %v3131 = vld [vmem:[#allocation2 + $0x4] sm:$0x8]
    %s3132 = scalar_lea.vmem %s5, 224
    %v3133 = vld [vmem:[%s3132] sm:$0xf]
    %v3134 = vld [vmem:[%s3132 + $0x4] sm:$0xf]
    %v3135 = vld [vmem:[%s3132 + $0x8] sm:$0xf]
    %v3136 = vld [vmem:[%s3132 + $0xc] sm:$0xf]
    %v3137 = vld [vmem:[%s3132 + $0x10] sm:$0xf]
    %v3138 = vld [vmem:[%s3132 + $0x14] sm:$0xf]
    %v3139 = vld [vmem:[%s3132 + $0x18] sm:$0xf]
    %v3140 = vld [vmem:[%s3132 + $0x1c] sm:$0xf]
    %v3142 = vunpack.c.l.b16 %v3131
    %v3143 = vpack.c.b16 %v3142, %v3142
    %v3144 = vrot.slane %v3143, 3
    %v3153 = vunpack.c.l.b16 %v3133
    %v3154 = vunpack.c.l.b16 %v3134
    %v3155 = vunpack.c.l.b16 %v3135
    %v3156 = vunpack.c.l.b16 %v3136
    %v3157 = vunpack.c.l.b16 %v3137
    %v3158 = vunpack.c.l.b16 %v3138
    %v3159 = vunpack.c.l.b16 %v3139
    %v3160 = vunpack.c.l.b16 %v3140
    %v3161 = vpack.c.b16 %v3154, %v3153
    %v3162 = vpack.c.b16 %v3156, %v3155
    %v3163 = vpack.c.b16 %v3158, %v3157
    %v3164 = vpack.c.b16 %v3160, %v3159
    %v3170 = vsel %vm2614, %v3144, 0
    %3172 = vmatprep.subr.bf16.mxu0 0
    %3173 = vmatpush1.bf16.msra.mxu0 %v3161
    %3174 = vmatprep.subr.bf16.mxu0 0
    %3175 = vmatpush1.bf16.msra.mxu0 %v3162
    %3176 = vmatprep.subr.bf16.mxu0 0
    %3177 = vmatpush1.bf16.msra.mxu0 %v3163
    %3178 = vmatprep.subr.bf16.mxu0 0
    %3179 = vmatpush1.bf16.msra.mxu0 %v3164
    %3180 = vmatprep.subr.bf16.mxu0 0
    %3181 = vmatpush1.bf16.msra.mxu0 0
    %3182 = vmatprep.subr.bf16.mxu0 0
    %3183 = vmatpush1.bf16.msra.mxu0 0
    %3184 = vmatprep.subr.bf16.mxu0 0
    %3185 = vmatpush1.bf16.msra.mxu0 0
    %3186 = vmatprep.subr.bf16.mxu0 0
    %3187 = vmatpush1.bf16.msra.mxu0 0
    %3188 = vmatprep.subr.bf16.mxu0 0
    %3189 = vmatpush1.bf16.msra.mxu0 0
    %3190 = vmatprep.subr.bf16.mxu0 0
    %3191 = vmatpush1.bf16.msra.mxu0 0
    %3192 = vmatprep.subr.bf16.mxu0 0
    %3193 = vmatpush1.bf16.msra.mxu0 0
    %3194 = vmatprep.subr.bf16.mxu0 0
    %3195 = vmatpush1.bf16.msra.mxu0 0
    %3196 = vmatprep.subr.bf16.mxu0 0
    %3197 = vmatpush1.bf16.msra.mxu0 0
    %3198 = vmatprep.subr.bf16.mxu0 0
    %3199 = vmatpush1.bf16.msra.mxu0 0
    %3200 = vmatprep.subr.bf16.mxu0 0
    %3201 = vmatpush1.bf16.msra.mxu0 0
    %3202 = vmatprep.subr.bf16.mxu0 0
    %3203 = vmatpush1.bf16.msra.mxu0 0
    %3204 = vmatprep.mubr.bf16.mxu0 0
    %3205 = vmatmul.mubr.bf16.gmra.mrb[0].mxu0 %v3170
    %v3206 = vpop.f32.mrb[0].mxu0
    %v3207 = vadd.f32 0.0, %v3206
    %v3208 = vpop.f32.mrb[0].mxu0
    %v3209 = vpop.f32.mrb[0].mxu0
    %v3210 = vpop.f32.mrb[0].mxu0
    %3211 = vdwg.mxu0
    %v3212 = vadd.f32 %v3130, %v3207
    %v3213 = vld [vmem:[#allocation2 + $0x8] sm:$0x1]
    %s3214 = scalar_lea.vmem %s5, 256
    %v3215 = vld [vmem:[%s3214] sm:$0xf]
    %v3216 = vld [vmem:[%s3214 + $0x4] sm:$0xf]
    %v3217 = vld [vmem:[%s3214 + $0x8] sm:$0xf]
    %v3218 = vld [vmem:[%s3214 + $0xc] sm:$0xf]
    %v3219 = vld [vmem:[%s3214 + $0x10] sm:$0xf]
    %v3220 = vld [vmem:[%s3214 + $0x14] sm:$0xf]
    %v3221 = vld [vmem:[%s3214 + $0x18] sm:$0xf]
    %v3222 = vld [vmem:[%s3214 + $0x1c] sm:$0xf]
    %v3231 = vunpack.c.l.b16 %v3215
    %v3232 = vunpack.c.l.b16 %v3216
    %v3233 = vunpack.c.l.b16 %v3217
    %v3234 = vunpack.c.l.b16 %v3218
    %v3235 = vunpack.c.l.b16 %v3219
    %v3236 = vunpack.c.l.b16 %v3220
    %v3237 = vunpack.c.l.b16 %v3221
    %v3238 = vunpack.c.l.b16 %v3222
    %v3239 = vpack.c.b16 %v3232, %v3231
    %v3240 = vpack.c.b16 %v3234, %v3233
    %v3241 = vpack.c.b16 %v3236, %v3235
    %v3242 = vpack.c.b16 %v3238, %v3237
    %v3248 = vsel %vm2614, %v3213, 0
    %3250 = vmatprep.subr.bf16.mxu0 0
    %3251 = vmatpush1.bf16.msra.mxu0 %v3239
    %3252 = vmatprep.subr.bf16.mxu0 0
    %3253 = vmatpush1.bf16.msra.mxu0 %v3240
    %3254 = vmatprep.subr.bf16.mxu0 0
    %3255 = vmatpush1.bf16.msra.mxu0 %v3241
    %3256 = vmatprep.subr.bf16.mxu0 0
    %3257 = vmatpush1.bf16.msra.mxu0 %v3242
    %3258 = vmatprep.subr.bf16.mxu0 0
    %3259 = vmatpush1.bf16.msra.mxu0 0
    %3260 = vmatprep.subr.bf16.mxu0 0
    %3261 = vmatpush1.bf16.msra.mxu0 0
    %3262 = vmatprep.subr.bf16.mxu0 0
    %3263 = vmatpush1.bf16.msra.mxu0 0
    %3264 = vmatprep.subr.bf16.mxu0 0
    %3265 = vmatpush1.bf16.msra.mxu0 0
    %3266 = vmatprep.subr.bf16.mxu0 0
    %3267 = vmatpush1.bf16.msra.mxu0 0
    %3268 = vmatprep.subr.bf16.mxu0 0
    %3269 = vmatpush1.bf16.msra.mxu0 0
    %3270 = vmatprep.subr.bf16.mxu0 0
    %3271 = vmatpush1.bf16.msra.mxu0 0
    %3272 = vmatprep.subr.bf16.mxu0 0
    %3273 = vmatpush1.bf16.msra.mxu0 0
    %3274 = vmatprep.subr.bf16.mxu0 0
    %3275 = vmatpush1.bf16.msra.mxu0 0
    %3276 = vmatprep.subr.bf16.mxu0 0
    %3277 = vmatpush1.bf16.msra.mxu0 0
    %3278 = vmatprep.subr.bf16.mxu0 0
    %3279 = vmatpush1.bf16.msra.mxu0 0
    %3280 = vmatprep.subr.bf16.mxu0 0
    %3281 = vmatpush1.bf16.msra.mxu0 0
    %3282 = vmatprep.mubr.bf16.mxu0 0
    %3283 = vmatmul.mubr.bf16.gmra.mrb[0].mxu0 %v3248
    %v3284 = vpop.f32.mrb[0].mxu0
    %v3285 = vadd.f32 0.0, %v3284
    %v3286 = vpop.f32.mrb[0].mxu0
    %v3287 = vpop.f32.mrb[0].mxu0
    %v3288 = vpop.f32.mrb[0].mxu0
    %3289 = vdwg.mxu0
    %v3290 = vadd.f32 %v3212, %v3285
    %v3291 = vld [vmem:[%s6] sm:$0x1]
    %v3293 = vlaneseq
    %v3294 = vshrl.u32 %v3293, 7
    %v3295 = vsub.s32 0, %v3294
    %v3296 = vrot.slane %v3291, %v3295
    %v3298 = vadd.f32 %v3290, %v3296
    %v3299 = vmax.f32 %v3298, 0.0
    %v3300 = vpack.c.bf16 %v3299, %v3299
    %v3301 = vld [vmem:[%s7] sm:$0xff]
    %v3302 = vld [vmem:[%s7 + $0x8] sm:$0xff]
    %v3303 = vld [vmem:[%s7 + $0x10] sm:$0xff]
    %v3304 = vld [vmem:[%s7 + $0x18] sm:$0xff]
    %v3305 = vld [vmem:[%s7 + $0x20] sm:$0xff]
    %v3306 = vld [vmem:[%s7 + $0x28] sm:$0xff]
    %v3307 = vld [vmem:[%s7 + $0x30] sm:$0xff]
    %v3308 = vld [vmem:[%s7 + $0x38] sm:$0xff]
    %v3309 = vld [vmem:[%s7 + $0x40] sm:$0xff]
    %v3310 = vld [vmem:[%s7 + $0x48] sm:$0xff]
    %v3311 = vld [vmem:[%s7 + $0x50] sm:$0xff]
    %v3312 = vld [vmem:[%s7 + $0x58] sm:$0xff]
    %v3313 = vld [vmem:[%s7 + $0x60] sm:$0xff]
    %v3314 = vld [vmem:[%s7 + $0x68] sm:$0xff]
    %v3315 = vld [vmem:[%s7 + $0x70] sm:$0xff]
    %v3316 = vld [vmem:[%s7 + $0x78] sm:$0xff]
    %v3317 = vld [vmem:[%s8] sm:$0xf]
    %v3319 = vlaneseq
    %v3320 = vshrl.u32 %v3319, 7
    %v3321 = vsub.s32 0, %v3320
    %v3322 = vrot.slane %v3317, %v3321
    %v3323 = vlaneseq
    %v3324 = vshrl.u32 %v3323, 7
    %v3325 = vsub.s32 1, %v3324
    %v3326 = vrot.slane %v3317, %v3325
    %v3327 = vlaneseq
    %v3328 = vshrl.u32 %v3327, 7
    %v3329 = vsub.s32 2, %v3328
    %v3330 = vrot.slane %v3317, %v3329
    %v3331 = vlaneseq
    %v3332 = vshrl.u32 %v3331, 7
    %v3333 = vsub.s32 3, %v3332
    %v3334 = vrot.slane %v3317, %v3333
    %v3355 = vunpack.c.l.b16 %v3301
    %v3356 = vunpack.c.h.b16 %v3301
    %v3357 = vunpack.c.l.b16 %v3302
    %v3358 = vunpack.c.h.b16 %v3302
    %v3359 = vunpack.c.l.b16 %v3303
    %v3360 = vunpack.c.h.b16 %v3303
    %v3361 = vunpack.c.l.b16 %v3304
    %v3362 = vunpack.c.h.b16 %v3304
    %v3363 = vunpack.c.l.b16 %v3305
    %v3364 = vunpack.c.h.b16 %v3305
    %v3365 = vunpack.c.l.b16 %v3306
    %v3366 = vunpack.c.h.b16 %v3306
    %v3367 = vunpack.c.l.b16 %v3307
    %v3368 = vunpack.c.h.b16 %v3307
    %v3369 = vunpack.c.l.b16 %v3308
    %v3370 = vunpack.c.h.b16 %v3308
    %v3371 = vunpack.c.l.b16 %v3309
    %v3372 = vunpack.c.h.b16 %v3309
    %v3373 = vunpack.c.l.b16 %v3310
    %v3374 = vunpack.c.h.b16 %v3310
    %v3375 = vunpack.c.l.b16 %v3311
    %v3376 = vunpack.c.h.b16 %v3311
    %v3377 = vunpack.c.l.b16 %v3312
    %v3378 = vunpack.c.h.b16 %v3312
    %v3379 = vunpack.c.l.b16 %v3313
    %v3380 = vunpack.c.h.b16 %v3313
    %v3381 = vunpack.c.l.b16 %v3314
    %v3382 = vunpack.c.h.b16 %v3314
    %v3383 = vunpack.c.l.b16 %v3315
    %v3384 = vunpack.c.h.b16 %v3315
    %v3385 = vunpack.c.l.b16 %v3316
    %v3386 = vunpack.c.h.b16 %v3316
    %v3387 = vpack.c.b16 %v3359, %v3355
    %v3388 = vpack.c.b16 %v3360, %v3356
    %v3389 = vpack.c.b16 %v3361, %v3357
    %v3390 = vpack.c.b16 %v3362, %v3358
    %v3391 = vpack.c.b16 %v3367, %v3363
    %v3392 = vpack.c.b16 %v3368, %v3364
    %v3393 = vpack.c.b16 %v3369, %v3365
    %v3394 = vpack.c.b16 %v3370, %v3366
    %v3395 = vpack.c.b16 %v3375, %v3371
    %v3396 = vpack.c.b16 %v3376, %v3372
    %v3397 = vpack.c.b16 %v3377, %v3373
    %v3398 = vpack.c.b16 %v3378, %v3374
    %v3399 = vpack.c.b16 %v3383, %v3379
    %v3400 = vpack.c.b16 %v3384, %v3380
    %v3401 = vpack.c.b16 %v3385, %v3381
    %v3402 = vpack.c.b16 %v3386, %v3382
    %v3420 = vsel %vm2614, %v3300, 0
    %3422 = vmatprep.subr.bf16.mxu0 %v3388
    %3423 = vmatpush1.bf16.msra.mxu0 %v3387
    %3424 = vmatprep.subr.bf16.mxu0 %v3392
    %3425 = vmatpush1.bf16.msra.mxu0 %v3391
    %3426 = vmatprep.subr.bf16.mxu0 %v3396
    %3427 = vmatpush1.bf16.msra.mxu0 %v3395
    %3428 = vmatprep.subr.bf16.mxu0 %v3400
    %3429 = vmatpush1.bf16.msra.mxu0 %v3399
    %3430 = vmatprep.subr.bf16.mxu0 0
    %3431 = vmatpush1.bf16.msra.mxu0 0
    %3432 = vmatprep.subr.bf16.mxu0 0
    %3433 = vmatpush1.bf16.msra.mxu0 0
    %3434 = vmatprep.subr.bf16.mxu0 0
    %3435 = vmatpush1.bf16.msra.mxu0 0
    %3436 = vmatprep.subr.bf16.mxu0 0
    %3437 = vmatpush1.bf16.msra.mxu0 0
    %3438 = vmatprep.subr.bf16.mxu0 0
    %3439 = vmatpush1.bf16.msra.mxu0 0
    %3440 = vmatprep.subr.bf16.mxu0 0
    %3441 = vmatpush1.bf16.msra.mxu0 0
    %3442 = vmatprep.subr.bf16.mxu0 0
    %3443 = vmatpush1.bf16.msra.mxu0 0
    %3444 = vmatprep.subr.bf16.mxu0 0
    %3445 = vmatpush1.bf16.msra.mxu0 0
    %3446 = vmatprep.subr.bf16.mxu0 0
    %3447 = vmatpush1.bf16.msra.mxu0 0
    %3448 = vmatprep.subr.bf16.mxu0 0
    %3449 = vmatpush1.bf16.msra.mxu0 0
    %3450 = vmatprep.subr.bf16.mxu0 0
    %3451 = vmatpush1.bf16.msra.mxu0 0
    %3452 = vmatprep.subr.bf16.mxu0 0
    %3453 = vmatpush1.bf16.msra.mxu0 0
    %3454 = vmatprep.mubr.bf16.mxu0 0
    %3455 = vmatmul.mubr.bf16.gmra.mrb[0].mxu0 %v3420
    %v3456 = vpop.f32.mrb[0].mxu0
    %v3457 = vadd.f32 %v3322, %v3456
    %v3458 = vpop.f32.mrb[0].mxu0
    %v3459 = vadd.f32 %v3326, %v3458
    %v3460 = vpop.f32.mrb[0].mxu0
    %v3461 = vpop.f32.mrb[0].mxu0
    %3462 = vdwg.mxu0
    %3463 = vmatprep.subr.bf16.mxu0 %v3390
    %3464 = vmatpush1.bf16.msra.mxu0 %v3389
    %3465 = vmatprep.subr.bf16.mxu0 %v3394
    %3466 = vmatpush1.bf16.msra.mxu0 %v3393
    %3467 = vmatprep.subr.bf16.mxu0 %v3398
    %3468 = vmatpush1.bf16.msra.mxu0 %v3397
    %3469 = vmatprep.subr.bf16.mxu0 %v3402
    %3470 = vmatpush1.bf16.msra.mxu0 %v3401
    %3471 = vmatprep.subr.bf16.mxu0 0
    %3472 = vmatpush1.bf16.msra.mxu0 0
    %3473 = vmatprep.subr.bf16.mxu0 0
    %3474 = vmatpush1.bf16.msra.mxu0 0
    %3475 = vmatprep.subr.bf16.mxu0 0
    %3476 = vmatpush1.bf16.msra.mxu0 0
    %3477 = vmatprep.subr.bf16.mxu0 0
    %3478 = vmatpush1.bf16.msra.mxu0 0
    %3479 = vmatprep.subr.bf16.mxu0 0
    %3480 = vmatpush1.bf16.msra.mxu0 0
    %3481 = vmatprep.subr.bf16.mxu0 0
    %3482 = vmatpush1.bf16.msra.mxu0 0
    %3483 = vmatprep.subr.bf16.mxu0 0
    %3484 = vmatpush1.bf16.msra.mxu0 0
    %3485 = vmatprep.subr.bf16.mxu0 0
    %3486 = vmatpush1.bf16.msra.mxu0 0
    %3487 = vmatprep.subr.bf16.mxu0 0
    %3488 = vmatpush1.bf16.msra.mxu0 0
    %3489 = vmatprep.subr.bf16.mxu0 0
    %3490 = vmatpush1.bf16.msra.mxu0 0
    %3491 = vmatprep.subr.bf16.mxu0 0
    %3492 = vmatpush1.bf16.msra.mxu0 0
    %3493 = vmatprep.subr.bf16.mxu0 0
    %3494 = vmatpush1.bf16.msra.mxu0 0
    %3495 = vmatprep.mubr.bf16.mxu0 0
    %3496 = vmatmul.mubr.bf16.gmra.mrb[0].mxu0 %v3420
    %v3497 = vpop.f32.mrb[0].mxu0
    %v3498 = vadd.f32 %v3330, %v3497
    %v3499 = vpop.f32.mrb[0].mxu0
    %v3500 = vadd.f32 %v3334, %v3499
    %v3501 = vpop.f32.mrb[0].mxu0
    %v3502 = vpop.f32.mrb[0].mxu0
    %3503 = vdwg.mxu0
    %v3504 = vmax.f32 %v3457, 0.0
    %v3505 = vmax.f32 %v3459, 0.0
    %v3506 = vmax.f32 %v3498, 0.0
    %v3507 = vmax.f32 %v3500, 0.0
    %v3508 = vpack.c.bf16 %v3504, %v3504
    %v3509 = vpack.c.bf16 %v3505, %v3505
    %v3510 = vpack.c.bf16 %v3506, %v3506
    %v3511 = vpack.c.bf16 %v3507, %v3507
    %v3512 = vld [vmem:[%s9] sm:$0xf]
    %v3513 = vld [vmem:[%s9 + $0x4] sm:$0xf]
    %v3514 = vld [vmem:[%s9 + $0x8] sm:$0xf]
    %v3515 = vld [vmem:[%s9 + $0xc] sm:$0xf]
    %v3516 = vld [vmem:[%s9 + $0x10] sm:$0xf]
    %v3517 = vld [vmem:[%s9 + $0x14] sm:$0xf]
    %v3518 = vld [vmem:[%s9 + $0x18] sm:$0xf]
    %v3519 = vld [vmem:[%s9 + $0x1c] sm:$0xf]
    %v3520 = vld [vmem:[%s9 + $0x20] sm:$0xf]
    %v3521 = vld [vmem:[%s9 + $0x24] sm:$0xf]
    %v3522 = vld [vmem:[%s9 + $0x28] sm:$0xf]
    %v3523 = vld [vmem:[%s9 + $0x2c] sm:$0xf]
    %v3524 = vld [vmem:[%s9 + $0x30] sm:$0xf]
    %v3525 = vld [vmem:[%s9 + $0x34] sm:$0xf]
    %v3526 = vld [vmem:[%s9 + $0x38] sm:$0xf]
    %v3527 = vld [vmem:[%s9 + $0x3c] sm:$0xf]
    %v3528 = vld [vmem:[%s9 + $0x40] sm:$0xf]
    %v3529 = vld [vmem:[%s9 + $0x44] sm:$0xf]
    %v3530 = vld [vmem:[%s9 + $0x48] sm:$0xf]
    %v3531 = vld [vmem:[%s9 + $0x4c] sm:$0xf]
    %v3532 = vld [vmem:[%s9 + $0x50] sm:$0xf]
    %v3533 = vld [vmem:[%s9 + $0x54] sm:$0xf]
    %v3534 = vld [vmem:[%s9 + $0x58] sm:$0xf]
    %v3535 = vld [vmem:[%s9 + $0x5c] sm:$0xf]
    %v3536 = vld [vmem:[%s9 + $0x60] sm:$0xf]
    %v3537 = vld [vmem:[%s9 + $0x64] sm:$0xf]
    %v3538 = vld [vmem:[%s9 + $0x68] sm:$0xf]
    %v3539 = vld [vmem:[%s9 + $0x6c] sm:$0xf]
    %v3540 = vld [vmem:[%s9 + $0x70] sm:$0xf]
    %v3541 = vld [vmem:[%s9 + $0x74] sm:$0xf]
    %v3542 = vld [vmem:[%s9 + $0x78] sm:$0xf]
    %v3543 = vld [vmem:[%s9 + $0x7c] sm:$0xf]
    %v3544 = vld [vmem:[%s9 + $0x80] sm:$0xf]
    %v3545 = vld [vmem:[%s9 + $0x84] sm:$0xf]
    %v3546 = vld [vmem:[%s9 + $0x88] sm:$0xf]
    %v3547 = vld [vmem:[%s9 + $0x8c] sm:$0xf]
    %v3548 = vld [vmem:[%s9 + $0x90] sm:$0xf]
    %v3549 = vld [vmem:[%s9 + $0x94] sm:$0xf]
    %v3550 = vld [vmem:[%s9 + $0x98] sm:$0xf]
    %v3551 = vld [vmem:[%s9 + $0x9c] sm:$0xf]
    %v3552 = vld [vmem:[%s9 + $0xa0] sm:$0xf]
    %v3553 = vld [vmem:[%s9 + $0xa4] sm:$0xf]
    %v3554 = vld [vmem:[%s9 + $0xa8] sm:$0xf]
    %v3555 = vld [vmem:[%s9 + $0xac] sm:$0xf]
    %v3556 = vld [vmem:[%s9 + $0xb0] sm:$0xf]
    %v3557 = vld [vmem:[%s9 + $0xb4] sm:$0xf]
    %v3558 = vld [vmem:[%s9 + $0xb8] sm:$0xf]
    %v3559 = vld [vmem:[%s9 + $0xbc] sm:$0xf]
    %v3560 = vld [vmem:[%s9 + $0xc0] sm:$0xf]
    %v3561 = vld [vmem:[%s9 + $0xc4] sm:$0xf]
    %v3562 = vld [vmem:[%s9 + $0xc8] sm:$0xf]
    %v3563 = vld [vmem:[%s9 + $0xcc] sm:$0xf]
    %v3564 = vld [vmem:[%s9 + $0xd0] sm:$0xf]
    %v3565 = vld [vmem:[%s9 + $0xd4] sm:$0xf]
    %v3566 = vld [vmem:[%s9 + $0xd8] sm:$0xf]
    %v3567 = vld [vmem:[%s9 + $0xdc] sm:$0xf]
    %v3568 = vld [vmem:[%s9 + $0xe0] sm:$0xf]
    %v3569 = vld [vmem:[%s9 + $0xe4] sm:$0xf]
    %v3570 = vld [vmem:[%s9 + $0xe8] sm:$0xf]
    %v3571 = vld [vmem:[%s9 + $0xec] sm:$0xf]
    %v3572 = vld [vmem:[%s9 + $0xf0] sm:$0xf]
    %v3573 = vld [vmem:[%s9 + $0xf4] sm:$0xf]
    %v3574 = vld [vmem:[%s9 + $0xf8] sm:$0xf]
    %v3575 = vld [vmem:[%s9 + $0xfc] sm:$0xf]
    %v3576 = vld [vmem:[%s10] sm:$0x1]
    %v3578 = vlaneseq
    %v3579 = vshrl.u32 %v3578, 7
    %v3580 = vsub.s32 0, %v3579
    %v3581 = vrot.slane %v3576, %v3580
    %v3647 = vunpack.c.l.b16 %v3512
    %v3648 = vunpack.c.l.b16 %v3513
    %v3649 = vunpack.c.l.b16 %v3514
    %v3650 = vunpack.c.l.b16 %v3515
    %v3651 = vunpack.c.l.b16 %v3516
    %v3652 = vunpack.c.l.b16 %v3517
    %v3653 = vunpack.c.l.b16 %v3518
    %v3654 = vunpack.c.l.b16 %v3519
    %v3655 = vunpack.c.l.b16 %v3520
    %v3656 = vunpack.c.l.b16 %v3521
    %v3657 = vunpack.c.l.b16 %v3522
    %v3658 = vunpack.c.l.b16 %v3523
    %v3659 = vunpack.c.l.b16 %v3524
    %v3660 = vunpack.c.l.b16 %v3525
    %v3661 = vunpack.c.l.b16 %v3526
    %v3662 = vunpack.c.l.b16 %v3527
    %v3663 = vunpack.c.l.b16 %v3528
    %v3664 = vunpack.c.l.b16 %v3529
    %v3665 = vunpack.c.l.b16 %v3530
    %v3666 = vunpack.c.l.b16 %v3531
    %v3667 = vunpack.c.l.b16 %v3532
    %v3668 = vunpack.c.l.b16 %v3533
    %v3669 = vunpack.c.l.b16 %v3534
    %v3670 = vunpack.c.l.b16 %v3535
    %v3671 = vunpack.c.l.b16 %v3536
    %v3672 = vunpack.c.l.b16 %v3537
    %v3673 = vunpack.c.l.b16 %v3538
    %v3674 = vunpack.c.l.b16 %v3539
    %v3675 = vunpack.c.l.b16 %v3540
    %v3676 = vunpack.c.l.b16 %v3541
    %v3677 = vunpack.c.l.b16 %v3542
    %v3678 = vunpack.c.l.b16 %v3543
    %v3679 = vunpack.c.l.b16 %v3544
    %v3680 = vunpack.c.l.b16 %v3545
    %v3681 = vunpack.c.l.b16 %v3546
    %v3682 = vunpack.c.l.b16 %v3547
    %v3683 = vunpack.c.l.b16 %v3548
    %v3684 = vunpack.c.l.b16 %v3549
    %v3685 = vunpack.c.l.b16 %v3550
    %v3686 = vunpack.c.l.b16 %v3551
    %v3687 = vunpack.c.l.b16 %v3552
    %v3688 = vunpack.c.l.b16 %v3553
    %v3689 = vunpack.c.l.b16 %v3554
    %v3690 = vunpack.c.l.b16 %v3555
    %v3691 = vunpack.c.l.b16 %v3556
    %v3692 = vunpack.c.l.b16 %v3557
    %v3693 = vunpack.c.l.b16 %v3558
    %v3694 = vunpack.c.l.b16 %v3559
    %v3695 = vunpack.c.l.b16 %v3560
    %v3696 = vunpack.c.l.b16 %v3561
    %v3697 = vunpack.c.l.b16 %v3562
    %v3698 = vunpack.c.l.b16 %v3563
    %v3699 = vunpack.c.l.b16 %v3564
    %v3700 = vunpack.c.l.b16 %v3565
    %v3701 = vunpack.c.l.b16 %v3566
    %v3702 = vunpack.c.l.b16 %v3567
    %v3703 = vunpack.c.l.b16 %v3568
    %v3704 = vunpack.c.l.b16 %v3569
    %v3705 = vunpack.c.l.b16 %v3570
    %v3706 = vunpack.c.l.b16 %v3571
    %v3707 = vunpack.c.l.b16 %v3572
    %v3708 = vunpack.c.l.b16 %v3573
    %v3709 = vunpack.c.l.b16 %v3574
    %v3710 = vunpack.c.l.b16 %v3575
    %v3711 = vpack.c.b16 %v3648, %v3647
    %v3712 = vpack.c.b16 %v3650, %v3649
    %v3713 = vpack.c.b16 %v3652, %v3651
    %v3714 = vpack.c.b16 %v3654, %v3653
    %v3715 = vpack.c.b16 %v3656, %v3655
    %v3716 = vpack.c.b16 %v3658, %v3657
    %v3717 = vpack.c.b16 %v3660, %v3659
    %v3718 = vpack.c.b16 %v3662, %v3661
    %v3719 = vpack.c.b16 %v3664, %v3663
    %v3720 = vpack.c.b16 %v3666, %v3665
    %v3721 = vpack.c.b16 %v3668, %v3667
    %v3722 = vpack.c.b16 %v3670, %v3669
    %v3723 = vpack.c.b16 %v3672, %v3671
    %v3724 = vpack.c.b16 %v3674, %v3673
    %v3725 = vpack.c.b16 %v3676, %v3675
    %v3726 = vpack.c.b16 %v3678, %v3677
    %v3727 = vpack.c.b16 %v3680, %v3679
    %v3728 = vpack.c.b16 %v3682, %v3681
    %v3729 = vpack.c.b16 %v3684, %v3683
    %v3730 = vpack.c.b16 %v3686, %v3685
    %v3731 = vpack.c.b16 %v3688, %v3687
    %v3732 = vpack.c.b16 %v3690, %v3689
    %v3733 = vpack.c.b16 %v3692, %v3691
    %v3734 = vpack.c.b16 %v3694, %v3693
    %v3735 = vpack.c.b16 %v3696, %v3695
    %v3736 = vpack.c.b16 %v3698, %v3697
    %v3737 = vpack.c.b16 %v3700, %v3699
    %v3738 = vpack.c.b16 %v3702, %v3701
    %v3739 = vpack.c.b16 %v3704, %v3703
    %v3740 = vpack.c.b16 %v3706, %v3705
    %v3741 = vpack.c.b16 %v3708, %v3707
    %v3742 = vpack.c.b16 %v3710, %v3709
    %3775 = vmatprep.subr.bf16.mxu0 0
    %3776 = vmatpush1.bf16.msra.mxu0 %v3711
    %3777 = vmatprep.subr.bf16.mxu0 0
    %3778 = vmatpush1.bf16.msra.mxu0 %v3712
    %3779 = vmatprep.subr.bf16.mxu0 0
    %3780 = vmatpush1.bf16.msra.mxu0 %v3713
    %3781 = vmatprep.subr.bf16.mxu0 0
    %3782 = vmatpush1.bf16.msra.mxu0 %v3714
    %3783 = vmatprep.subr.bf16.mxu0 0
    %3784 = vmatpush1.bf16.msra.mxu0 %v3715
    %3785 = vmatprep.subr.bf16.mxu0 0
    %3786 = vmatpush1.bf16.msra.mxu0 %v3716
    %3787 = vmatprep.subr.bf16.mxu0 0
    %3788 = vmatpush1.bf16.msra.mxu0 %v3717
    %3789 = vmatprep.subr.bf16.mxu0 0
    %3790 = vmatpush1.bf16.msra.mxu0 %v3718
    %3791 = vmatprep.subr.bf16.mxu0 0
    %3792 = vmatpush1.bf16.msra.mxu0 %v3719
    %3793 = vmatprep.subr.bf16.mxu0 0
    %3794 = vmatpush1.bf16.msra.mxu0 %v3720
    %3795 = vmatprep.subr.bf16.mxu0 0
    %3796 = vmatpush1.bf16.msra.mxu0 %v3721
    %3797 = vmatprep.subr.bf16.mxu0 0
    %3798 = vmatpush1.bf16.msra.mxu0 %v3722
    %3799 = vmatprep.subr.bf16.mxu0 0
    %3800 = vmatpush1.bf16.msra.mxu0 %v3723
    %3801 = vmatprep.subr.bf16.mxu0 0
    %3802 = vmatpush1.bf16.msra.mxu0 %v3724
    %3803 = vmatprep.subr.bf16.mxu0 0
    %3804 = vmatpush1.bf16.msra.mxu0 %v3725
    %3805 = vmatprep.subr.bf16.mxu0 0
    %3806 = vmatpush1.bf16.msra.mxu0 %v3726
    %3807 = vmatprep.mubr.bf16.mxu0 %v3509
    %3808 = vmatmul.mubr.bf16.gmra.mrb[0].mxu0 %v3508
    %v3809 = vpop.f32.mrb[0].mxu0
    %v3810 = vadd.f32 %v3581, %v3809
    %v3811 = vpop.f32.mrb[0].mxu0
    %v3812 = vpop.f32.mrb[0].mxu0
    %v3813 = vpop.f32.mrb[0].mxu0
    %3814 = vdwg.mxu0
    %3815 = vmatprep.subr.bf16.mxu0 0
    %3816 = vmatpush1.bf16.msra.mxu0 %v3727
    %3817 = vmatprep.subr.bf16.mxu0 0
    %3818 = vmatpush1.bf16.msra.mxu0 %v3728
    %3819 = vmatprep.subr.bf16.mxu0 0
    %3820 = vmatpush1.bf16.msra.mxu0 %v3729
    %3821 = vmatprep.subr.bf16.mxu0 0
    %3822 = vmatpush1.bf16.msra.mxu0 %v3730
    %3823 = vmatprep.subr.bf16.mxu0 0
    %3824 = vmatpush1.bf16.msra.mxu0 %v3731
    %3825 = vmatprep.subr.bf16.mxu0 0
    %3826 = vmatpush1.bf16.msra.mxu0 %v3732
    %3827 = vmatprep.subr.bf16.mxu0 0
    %3828 = vmatpush1.bf16.msra.mxu0 %v3733
    %3829 = vmatprep.subr.bf16.mxu0 0
    %3830 = vmatpush1.bf16.msra.mxu0 %v3734
    %3831 = vmatprep.subr.bf16.mxu0 0
    %3832 = vmatpush1.bf16.msra.mxu0 %v3735
    %3833 = vmatprep.subr.bf16.mxu0 0
    %3834 = vmatpush1.bf16.msra.mxu0 %v3736
    %3835 = vmatprep.subr.bf16.mxu0 0
    %3836 = vmatpush1.bf16.msra.mxu0 %v3737
    %3837 = vmatprep.subr.bf16.mxu0 0
    %3838 = vmatpush1.bf16.msra.mxu0 %v3738
    %3839 = vmatprep.subr.bf16.mxu0 0
    %3840 = vmatpush1.bf16.msra.mxu0 %v3739
    %3841 = vmatprep.subr.bf16.mxu0 0
    %3842 = vmatpush1.bf16.msra.mxu0 %v3740
    %3843 = vmatprep.subr.bf16.mxu0 0
    %3844 = vmatpush1.bf16.msra.mxu0 %v3741
    %3845 = vmatprep.subr.bf16.mxu0 0
    %3846 = vmatpush1.bf16.msra.mxu0 %v3742
    %3847 = vmatprep.mubr.bf16.mxu0 %v3511
    %3848 = vmatmul.mubr.bf16.gmra.mrb[0].mxu0 %v3510
    %v3849 = vpop.f32.mrb[0].mxu0
    %v3850 = vadd.f32 %v3810, %v3849
    %v3851 = vpop.f32.mrb[0].mxu0
    %v3852 = vpop.f32.mrb[0].mxu0
    %v3853 = vpop.f32.mrb[0].mxu0
    %3854 = vdwg.mxu0
    %3855 = vst [vmem:[#allocation3] sm:$0x3] %v3850
    // Predicated region
    $region46: #{deep_q_forward.1} parent=1 // pred_check
      _
    $region47: #{deep_q_forward.1} parent=1 // pred_check_branch
      %3857 = sbr.rel (0) target = $region49
    $region48: #{deep_q_forward.1} parent=1 // pred_region
      %s3859 = ssub.s32 32, 32
      %3860 = vsyncadd [#allocation4], %s3859
      %s3862 = sshll.u32 [#allocation3], 4
      %s3863 = int_to_ptr.vmem [resolvable:$true] %s3862
      %3865 = dma.vmem_to_hbm [thread:$0]  %s3863, 32, %s11, [#allocation4]
    $region49: #{deep_q_forward.1} parent=1 // pred_fallthru
      _
    // Predicated region
    $region50: #{deep_q_forward.1} parent=1 // pred_check
      _
    $region51: #{deep_q_forward.1} parent=1 // pred_check_branch
      %3867 = sbr.rel (0) target = $region53
    $region52: #{deep_q_forward.1} parent=1 // pred_region
      %3868 = dma.done [#allocation4], 32
    $region53: #{deep_q_forward.1} parent=1 // pred_fallthru
      _
    %3869 = vsyncpa [#allocation4], 1

</llo_original>
